<compile_context>
chip_gen: v5e
topology: v5e:2x2
jax: 0.10.0
libtpu: 0.0.40
codegen_flags: <defaults>
</compile_context>

<pallas_src>
import jax
import jax.numpy as jnp
from jax import lax
from jax.experimental import pallas as pl
from jax.experimental.pallas import tpu as pltpu


# ------------------------------ in-kernel math ------------------------------ #

def _erf_approx(x):
    # Abramowitz & Stegun 7.1.26 rational approximation, |err| <= 1.5e-7.
    # Keeps exact-erf GELU semantics to within f32 noise while using only
    # guaranteed-lowerable Mosaic elementwise ops (abs/div/mul/add/exp/where).
    p = 0.3275911
    a1, a2, a3, a4, a5 = 0.254829592, -0.284496736, 1.421413741, -1.453152027, 1.061405429
    ax = jnp.abs(x)
    t = 1.0 / (1.0 + p * ax)
    poly = t * (a1 + t * (a2 + t * (a3 + t * (a4 + t * a5))))
    y = 1.0 - poly * jnp.exp(-(ax * ax))
    return jnp.where(x >= 0, y, -y)


def _gelu_exact(x):
    # Matches torch.nn.functional.gelu default (erf form): 0.5 * x * (1 + erf(x / sqrt(2)))
    return 0.5 * x * (1.0 + _erf_approx(x * 0.7071067811865476))


# ------------------------------ fused kernel -------------------------------- #

def _build_fused_kernel(B, T, d_in, hidden, block_meta):
    """block_meta: list of dicts {dilation, cin, cout, has_proj} (static Python metadata)."""

    def mm(a2d, w_ref, b_ref):
        # (N, K) @ (K, C) + (1, C); HIGHEST => full-f32 MXU passes (matches the reference).
        return jnp.dot(a2d, w_ref[...],
                       precision=lax.Precision.HIGHEST,
                       preferred_element_type=jnp.float32) + b_ref[...]

    def dilated_conv(v3, w_ref, b_ref, d, cin, cout):
        # v3: (B, T, cin), already GELU'd.  'same' padding (d zeros each side, exact zeros).
        z = jnp.zeros((B, d, cin), jnp.float32)
        vp = jnp.concatenate([z, v3, z], axis=1)                  # (B, T + 2d, cin)
        taps = [vp[:, k * d:k * d + T, :] for k in range(3)]      # shifted static slices
        cat = jnp.concatenate(taps, axis=-1).reshape(B * T, 3 * cin)
        y = mm(cat, w_ref, b_ref)                                 # one wide-K MXU matmul
        return y.reshape(B, T, cout)

    def kernel(*refs):
        o_ref = refs[-1]
        it = iter(refs[:-1])
        x_ref = next(it)
        fc_w = next(it)
        fc_b = next(it)

        # input_fc; mask == 'all_true' with finite inputs => masking is the identity.
        # TODO(synk): TSEncoder's NaN-masking path (x[~nan_mask] = 0) is not modeled.
        h = mm(x_ref[...].reshape(B * T, d_in), fc_w, fc_b).reshape(B, T, hidden)

        for meta in block_meta:
            d, cin, cout = meta["dilation"], meta["cin"], meta["cout"]
            if meta["has_proj"]:
                pw = next(it)
                pb = next(it)
                res = mm(h.reshape(B * T, cin), pw, pb).reshape(B, T, cout)
            else:
                res = h
            w1 = next(it); b1 = next(it); w2 = next(it); b2 = next(it)
            v = _gelu_exact(h)                      # GELU once per slab, not per tap
            y = dilated_conv(v, w1, b1, d, cin, cout)
            y = _gelu_exact(y)
            y = dilated_conv(y, w2, b2, d, cout, cout)
            h = y + res

        # repr_dropout is identity at inference; wrapper keeps the last time step.
        o_ref[...] = h[:, T - 1, :]

    return kernel


def ts2vec_wrapper_forward(x, params):
    """TS2VecEncoderWrapper.forward: encoder(x, mask='all_true')[:, -1] — single pallas_call."""
    B, T, d_in = x.shape
    hidden = params["fc_w"].shape[1]

    flat_inputs = [x, params["fc_w"], params["fc_b"].reshape(1, -1)]
    block_meta = []
    for blk in params["blocks"]:
        _, cin, cout = blk["w1"].shape
        has_proj = blk["proj_w"] is not None
        block_meta.append(dict(dilation=int(blk["dilation"]), cin=cin, cout=cout,
                               has_proj=has_proj))
        if has_proj:
            flat_inputs += [blk["proj_w"], blk["proj_b"].reshape(1, -1)]
        # Pre-reshape conv weights to (3*Cin, Cout) (tap-major) so the kernel does one matmul.
        flat_inputs += [blk["w1"].reshape(3 * cin, cout), blk["b1"].reshape(1, -1),
                        blk["w2"].reshape(3 * cout, cout), blk["b2"].reshape(1, -1)]
    c_out = block_meta[-1]["cout"]

    kernel = _build_fused_kernel(B, T, d_in, hidden, block_meta)

    def full_spec(a):
        nd = a.ndim
        return pl.BlockSpec(a.shape, lambda i, _nd=nd: (0,) * _nd)

    return pl.pallas_call(
        kernel,
        grid=(1,),
        out_shape=jax.ShapeDtypeStruct((B, c_out), jnp.float32),
        in_specs=[full_spec(a) for a in flat_inputs],
        out_specs=pl.BlockSpec((B, c_out), lambda i: (0, 0)),
        compiler_params=pltpu.CompilerParams(dimension_semantics=("arbitrary",)),
    )(*flat_inputs)


# --------------------------- parameters (synthetic) -------------------------- #

def init_params(seed, input_dims, hidden_dims, output_dims, depth):
    channels = [hidden_dims] * depth + [output_dims]
    key = jax.random.PRNGKey(seed)
    keys = iter(jax.random.split(key, 4 + 8 * len(channels)))

    def uni(shape, fan_in):
        bound = float(fan_in) ** -0.5
        return jax.random.uniform(next(keys), shape, jnp.float32, -bound, bound)

    params = {
        "fc_w": uni((input_dims, hidden_dims), input_dims),
        "fc_b": uni((hidden_dims,), input_dims),
        "blocks": [],
    }
    for i, cout in enumerate(channels):
        cin = hidden_dims if i == 0 else channels[i - 1]
        final = i == len(channels) - 1
        needs_proj = (cin != cout) or final
        params["blocks"].append({
            "dilation": 2 ** i,
            "w1": uni((3, cin, cout), 3 * cin),
            "b1": uni((cout,), 3 * cin),
            "w2": uni((3, cout, cout), 3 * cout),
            "b2": uni((cout,), 3 * cout),
            "proj_w": uni((cin, cout), cin) if needs_proj else None,
            "proj_b": uni((cout,), cin) if needs_proj else None,
        })
    return params


# ------------------------------ pure-JAX reference --------------------------- #

def _ref_conv(x, w, b, d):
    y = lax.conv_general_dilated(
        x, w, window_strides=(1,), padding=[(d, d)], rhs_dilation=(d,),
        dimension_numbers=("NWC", "WIO", "NWC"), precision=lax.Precision.HIGHEST)
    return y + b[None, None, :]


def ts2vec_wrapper_forward_ref(x, params):
    h = jnp.dot(x, params["fc_w"], precision=lax.Precision.HIGHEST) + params["fc_b"]
    for blk in params["blocks"]:
        if blk["proj_w"] is not None:
            res = jnp.dot(h, blk["proj_w"], precision=lax.Precision.HIGHEST) + blk["proj_b"]
        else:
            res = h
        y = jax.nn.gelu(h, approximate=False)
        y = _ref_conv(y, blk["w1"], blk["b1"], blk["dilation"])
        y = jax.nn.gelu(y, approximate=False)
        y = _ref_conv(y, blk["w2"], blk["b2"], blk["dilation"])
        h = y + res
    return h[:, -1, :]


# ----------------------------------- main ------------------------------------ #

if __name__ == "__main__":
    B, T, input_dims = 2, 16, 4
    hidden_dims, output_dims, depth = 32, 64, 2   # 3 conv blocks, dilations 1, 2, 4

    params = init_params(0, input_dims, hidden_dims, output_dims, depth)
    x = jax.random.normal(jax.random.PRNGKey(0), (B, T, input_dims), dtype=jnp.float32)

    out = jax.block_until_ready(ts2vec_wrapper_forward(x, params))
    assert out.shape == (B, output_dims), out.shape

    ref = ts2vec_wrapper_forward_ref(x, params)
    max_err = float(jnp.max(jnp.abs(out - ref)))
    assert jnp.allclose(out, ref, atol=1e-4, rtol=1e-4), max_err

    print("KERNEL_OK")
</pallas_src>

<mosaic_0001>
module attributes {stable_mosaic.version = 11 : i64} {
  func.func @kernel(%arg0: i32, %arg1: memref<2x16x4xf32, #tpu.memory_space<vmem>>, %arg2: memref<4x32xf32, #tpu.memory_space<vmem>>, %arg3: memref<1x32xf32, #tpu.memory_space<vmem>>, %arg4: memref<96x32xf32, #tpu.memory_space<vmem>>, %arg5: memref<1x32xf32, #tpu.memory_space<vmem>>, %arg6: memref<96x32xf32, #tpu.memory_space<vmem>>, %arg7: memref<1x32xf32, #tpu.memory_space<vmem>>, %arg8: memref<96x32xf32, #tpu.memory_space<vmem>>, %arg9: memref<1x32xf32, #tpu.memory_space<vmem>>, %arg10: memref<96x32xf32, #tpu.memory_space<vmem>>, %arg11: memref<1x32xf32, #tpu.memory_space<vmem>>, %arg12: memref<32x64xf32, #tpu.memory_space<vmem>>, %arg13: memref<1x64xf32, #tpu.memory_space<vmem>>, %arg14: memref<96x64xf32, #tpu.memory_space<vmem>>, %arg15: memref<1x64xf32, #tpu.memory_space<vmem>>, %arg16: memref<192x64xf32, #tpu.memory_space<vmem>>, %arg17: memref<1x64xf32, #tpu.memory_space<vmem>>, %arg18: memref<2x64xf32, #tpu.memory_space<vmem>>) attributes {dimension_semantics = [#tpu.dimension_semantics<arbitrary>], iteration_bounds = array<i64: 1>, scalar_prefetch = 0 : i64, scratch_operands = 0 : i64, tpu.core_type = #tpu.core_type<tc>, window_params = [{pipeline_mode = #tpu.pipeline_mode<synchronous>, transform_indices = @transform_0, window_bounds = array<i64: 2, 16, 4>}, {pipeline_mode = #tpu.pipeline_mode<synchronous>, transform_indices = @transform_1, window_bounds = array<i64: 4, 32>}, {pipeline_mode = #tpu.pipeline_mode<synchronous>, transform_indices = @transform_2, window_bounds = array<i64: 1, 32>}, {pipeline_mode = #tpu.pipeline_mode<synchronous>, transform_indices = @transform_3, window_bounds = array<i64: 96, 32>}, {pipeline_mode = #tpu.pipeline_mode<synchronous>, transform_indices = @transform_4, window_bounds = array<i64: 1, 32>}, {pipeline_mode = #tpu.pipeline_mode<synchronous>, transform_indices = @transform_5, window_bounds = array<i64: 96, 32>}, {pipeline_mode = #tpu.pipeline_mode<synchronous>, transform_indices = @transform_6, window_bounds = array<i64: 1, 32>}, {pipeline_mode = #tpu.pipeline_mode<synchronous>, transform_indices = @transform_7, window_bounds = array<i64: 96, 32>}, {pipeline_mode = #tpu.pipeline_mode<synchronous>, transform_indices = @transform_8, window_bounds = array<i64: 1, 32>}, {pipeline_mode = #tpu.pipeline_mode<synchronous>, transform_indices = @transform_9, window_bounds = array<i64: 96, 32>}, {pipeline_mode = #tpu.pipeline_mode<synchronous>, transform_indices = @transform_10, window_bounds = array<i64: 1, 32>}, {pipeline_mode = #tpu.pipeline_mode<synchronous>, transform_indices = @transform_11, window_bounds = array<i64: 32, 64>}, {pipeline_mode = #tpu.pipeline_mode<synchronous>, transform_indices = @transform_12, window_bounds = array<i64: 1, 64>}, {pipeline_mode = #tpu.pipeline_mode<synchronous>, transform_indices = @transform_13, window_bounds = array<i64: 96, 64>}, {pipeline_mode = #tpu.pipeline_mode<synchronous>, transform_indices = @transform_14, window_bounds = array<i64: 1, 64>}, {pipeline_mode = #tpu.pipeline_mode<synchronous>, transform_indices = @transform_15, window_bounds = array<i64: 192, 64>}, {pipeline_mode = #tpu.pipeline_mode<synchronous>, transform_indices = @transform_16, window_bounds = array<i64: 1, 64>}, {pipeline_mode = #tpu.pipeline_mode<synchronous>, transform_indices = @transform_17, window_bounds = array<i64: 2, 64>}]} {
    %c0 = arith.constant 0 : index
    %c0_0 = arith.constant 0 : index
    %c0_1 = arith.constant 0 : index
    %0 = vector.load %arg1[%c0, %c0_0, %c0_1] : memref<2x16x4xf32, #tpu.memory_space<vmem>>, vector<2x16x4xf32>
    %1 = vector.shape_cast %0 : vector<2x16x4xf32> to vector<32x4xf32>
    %c0_2 = arith.constant 0 : index
    %c0_3 = arith.constant 0 : index
    %2 = vector.load %arg2[%c0_2, %c0_3] : memref<4x32xf32, #tpu.memory_space<vmem>>, vector<4x32xf32>
    %cst = arith.constant dense<0.000000e+00> : vector<32x32xf32>
    %3 = tpu.matmul %1, %2, %cst {dimension_numbers = #tpu.dot_dimension_numbers<[1], [0], [0], [1], [0, 0, 1, 1], [], []>, precision = #tpu.contract_precision<fp32>} : vector<32x4xf32>, vector<4x32xf32>, vector<32x32xf32> -> vector<32x32xf32>
    %c0_4 = arith.constant 0 : index
    %c0_5 = arith.constant 0 : index
    %4 = vector.load %arg3[%c0_4, %c0_5] : memref<1x32xf32, #tpu.memory_space<vmem>>, vector<1x32xf32>
    %5 = vector.broadcast %4 : vector<1x32xf32> to vector<32x32xf32>
    %6 = arith.addf %3, %5 : vector<32x32xf32>
    %7 = vector.shape_cast %6 : vector<32x32xf32> to vector<2x16x32xf32>
    %cst_6 = arith.constant 5.000000e-01 : f32
    %8 = vector.broadcast %cst_6 : f32 to vector<2x16x32xf32>
    %9 = arith.mulf %8, %7 : vector<2x16x32xf32>
    %cst_7 = arith.constant 0.707106769 : f32
    %10 = vector.broadcast %cst_7 : f32 to vector<2x16x32xf32>
    %11 = arith.mulf %7, %10 : vector<2x16x32xf32>
    %12 = math.absf %11 : vector<2x16x32xf32>
    %cst_8 = arith.constant 0.327591091 : f32
    %13 = vector.broadcast %cst_8 : f32 to vector<2x16x32xf32>
    %14 = arith.mulf %13, %12 : vector<2x16x32xf32>
    %cst_9 = arith.constant 1.000000e+00 : f32
    %15 = vector.broadcast %cst_9 : f32 to vector<2x16x32xf32>
    %16 = arith.addf %15, %14 : vector<2x16x32xf32>
    %cst_10 = arith.constant 1.000000e+00 : f32
    %17 = vector.broadcast %cst_10 : f32 to vector<2x16x32xf32>
    %18 = arith.divf %17, %16 : vector<2x16x32xf32>
    %cst_11 = arith.constant 1.06140542 : f32
    %19 = vector.broadcast %cst_11 : f32 to vector<2x16x32xf32>
    %20 = arith.mulf %18, %19 : vector<2x16x32xf32>
    %cst_12 = arith.constant -1.45315206 : f32
    %21 = vector.broadcast %cst_12 : f32 to vector<2x16x32xf32>
    %22 = arith.addf %21, %20 : vector<2x16x32xf32>
    %23 = arith.mulf %18, %22 : vector<2x16x32xf32>
    %cst_13 = arith.constant 1.42141378 : f32
    %24 = vector.broadcast %cst_13 : f32 to vector<2x16x32xf32>
    %25 = arith.addf %24, %23 : vector<2x16x32xf32>
    %26 = arith.mulf %18, %25 : vector<2x16x32xf32>
    %cst_14 = arith.constant -0.284496725 : f32
    %27 = vector.broadcast %cst_14 : f32 to vector<2x16x32xf32>
    %28 = arith.addf %27, %26 : vector<2x16x32xf32>
    %29 = arith.mulf %18, %28 : vector<2x16x32xf32>
    %cst_15 = arith.constant 0.254829586 : f32
    %30 = vector.broadcast %cst_15 : f32 to vector<2x16x32xf32>
    %31 = arith.addf %30, %29 : vector<2x16x32xf32>
    %32 = arith.mulf %18, %31 : vector<2x16x32xf32>
    %33 = arith.mulf %12, %12 : vector<2x16x32xf32>
    %cst_16 = arith.constant 0.000000e+00 : f32
    %34 = vector.broadcast %cst_16 : f32 to vector<2x16x32xf32>
    %35 = arith.subf %34, %33 : vector<2x16x32xf32>
    %36 = math.exp %35 : vector<2x16x32xf32>
    %37 = arith.mulf %32, %36 : vector<2x16x32xf32>
    %cst_17 = arith.constant 1.000000e+00 : f32
    %38 = vector.broadcast %cst_17 : f32 to vector<2x16x32xf32>
    %39 = arith.subf %38, %37 : vector<2x16x32xf32>
    %cst_18 = arith.constant 0.000000e+00 : f32
    %40 = vector.broadcast %cst_18 : f32 to vector<2x16x32xf32>
    %41 = arith.cmpf oge, %11, %40 : vector<2x16x32xf32>
    %cst_19 = arith.constant 0.000000e+00 : f32
    %42 = vector.broadcast %cst_19 : f32 to vector<2x16x32xf32>
    %43 = arith.subf %42, %39 : vector<2x16x32xf32>
    %44 = arith.select %41, %39, %43 : vector<2x16x32xi1>, vector<2x16x32xf32>
    %cst_20 = arith.constant 1.000000e+00 : f32
    %45 = vector.broadcast %cst_20 : f32 to vector<2x16x32xf32>
    %46 = arith.addf %45, %44 : vector<2x16x32xf32>
    %47 = arith.mulf %9, %46 : vector<2x16x32xf32>
    %cst_21 = arith.constant 0.000000e+00 : f32
    %48 = vector.broadcast %cst_21 : f32 to vector<2x1x32xf32>
    %49 = tpu.concatenate %48, %47, %48 in 1 : vector<2x1x32xf32>, vector<2x16x32xf32>, vector<2x1x32xf32> -> vector<2x18x32xf32>
    %50 = vector.extract_strided_slice %49 {offsets = [0, 0, 0], sizes = [2, 16, 32], strides = [1, 1, 1]} : vector<2x18x32xf32> to vector<2x16x32xf32>
    %51 = vector.extract_strided_slice %49 {offsets = [0, 1, 0], sizes = [2, 16, 32], strides = [1, 1, 1]} : vector<2x18x32xf32> to vector<2x16x32xf32>
    %52 = vector.extract_strided_slice %49 {offsets = [0, 2, 0], sizes = [2, 16, 32], strides = [1, 1, 1]} : vector<2x18x32xf32> to vector<2x16x32xf32>
    %53 = tpu.concatenate %50, %51, %52 in 2 : vector<2x16x32xf32>, vector<2x16x32xf32>, vector<2x16x32xf32> -> vector<2x16x96xf32>
    %54 = vector.shape_cast %53 : vector<2x16x96xf32> to vector<32x96xf32>
    %c0_22 = arith.constant 0 : index
    %c0_23 = arith.constant 0 : index
    %55 = vector.load %arg4[%c0_22, %c0_23] : memref<96x32xf32, #tpu.memory_space<vmem>>, vector<96x32xf32>
    %cst_24 = arith.constant dense<0.000000e+00> : vector<32x32xf32>
    %56 = tpu.matmul %54, %55, %cst_24 {dimension_numbers = #tpu.dot_dimension_numbers<[1], [0], [0], [1], [0, 0, 1, 1], [], []>, precision = #tpu.contract_precision<fp32>} : vector<32x96xf32>, vector<96x32xf32>, vector<32x32xf32> -> vector<32x32xf32>
    %c0_25 = arith.constant 0 : index
    %c0_26 = arith.constant 0 : index
    %57 = vector.load %arg5[%c0_25, %c0_26] : memref<1x32xf32, #tpu.memory_space<vmem>>, vector<1x32xf32>
    %58 = vector.broadcast %57 : vector<1x32xf32> to vector<32x32xf32>
    %59 = arith.addf %56, %58 : vector<32x32xf32>
    %60 = vector.shape_cast %59 : vector<32x32xf32> to vector<2x16x32xf32>
    %cst_27 = arith.constant 5.000000e-01 : f32
    %61 = vector.broadcast %cst_27 : f32 to vector<2x16x32xf32>
    %62 = arith.mulf %61, %60 : vector<2x16x32xf32>
    %cst_28 = arith.constant 0.707106769 : f32
    %63 = vector.broadcast %cst_28 : f32 to vector<2x16x32xf32>
    %64 = arith.mulf %60, %63 : vector<2x16x32xf32>
    %65 = math.absf %64 : vector<2x16x32xf32>
    %cst_29 = arith.constant 0.327591091 : f32
    %66 = vector.broadcast %cst_29 : f32 to vector<2x16x32xf32>
    %67 = arith.mulf %66, %65 : vector<2x16x32xf32>
    %cst_30 = arith.constant 1.000000e+00 : f32
    %68 = vector.broadcast %cst_30 : f32 to vector<2x16x32xf32>
    %69 = arith.addf %68, %67 : vector<2x16x32xf32>
    %cst_31 = arith.constant 1.000000e+00 : f32
    %70 = vector.broadcast %cst_31 : f32 to vector<2x16x32xf32>
    %71 = arith.divf %70, %69 : vector<2x16x32xf32>
    %cst_32 = arith.constant 1.06140542 : f32
    %72 = vector.broadcast %cst_32 : f32 to vector<2x16x32xf32>
    %73 = arith.mulf %71, %72 : vector<2x16x32xf32>
    %cst_33 = arith.constant -1.45315206 : f32
    %74 = vector.broadcast %cst_33 : f32 to vector<2x16x32xf32>
    %75 = arith.addf %74, %73 : vector<2x16x32xf32>
    %76 = arith.mulf %71, %75 : vector<2x16x32xf32>
    %cst_34 = arith.constant 1.42141378 : f32
    %77 = vector.broadcast %cst_34 : f32 to vector<2x16x32xf32>
    %78 = arith.addf %77, %76 : vector<2x16x32xf32>
    %79 = arith.mulf %71, %78 : vector<2x16x32xf32>
    %cst_35 = arith.constant -0.284496725 : f32
    %80 = vector.broadcast %cst_35 : f32 to vector<2x16x32xf32>
    %81 = arith.addf %80, %79 : vector<2x16x32xf32>
    %82 = arith.mulf %71, %81 : vector<2x16x32xf32>
    %cst_36 = arith.constant 0.254829586 : f32
    %83 = vector.broadcast %cst_36 : f32 to vector<2x16x32xf32>
    %84 = arith.addf %83, %82 : vector<2x16x32xf32>
    %85 = arith.mulf %71, %84 : vector<2x16x32xf32>
    %86 = arith.mulf %65, %65 : vector<2x16x32xf32>
    %cst_37 = arith.constant 0.000000e+00 : f32
    %87 = vector.broadcast %cst_37 : f32 to vector<2x16x32xf32>
    %88 = arith.subf %87, %86 : vector<2x16x32xf32>
    %89 = math.exp %88 : vector<2x16x32xf32>
    %90 = arith.mulf %85, %89 : vector<2x16x32xf32>
    %cst_38 = arith.constant 1.000000e+00 : f32
    %91 = vector.broadcast %cst_38 : f32 to vector<2x16x32xf32>
    %92 = arith.subf %91, %90 : vector<2x16x32xf32>
    %cst_39 = arith.constant 0.000000e+00 : f32
    %93 = vector.broadcast %cst_39 : f32 to vector<2x16x32xf32>
    %94 = arith.cmpf oge, %64, %93 : vector<2x16x32xf32>
    %cst_40 = arith.constant 0.000000e+00 : f32
    %95 = vector.broadcast %cst_40 : f32 to vector<2x16x32xf32>
    %96 = arith.subf %95, %92 : vector<2x16x32xf32>
    %97 = arith.select %94, %92, %96 : vector<2x16x32xi1>, vector<2x16x32xf32>
    %cst_41 = arith.constant 1.000000e+00 : f32
    %98 = vector.broadcast %cst_41 : f32 to vector<2x16x32xf32>
    %99 = arith.addf %98, %97 : vector<2x16x32xf32>
    %100 = arith.mulf %62, %99 : vector<2x16x32xf32>
    %cst_42 = arith.constant 0.000000e+00 : f32
    %101 = vector.broadcast %cst_42 : f32 to vector<2x1x32xf32>
    %102 = tpu.concatenate %101, %100, %101 in 1 : vector<2x1x32xf32>, vector<2x16x32xf32>, vector<2x1x32xf32> -> vector<2x18x32xf32>
    %103 = vector.extract_strided_slice %102 {offsets = [0, 0, 0], sizes = [2, 16, 32], strides = [1, 1, 1]} : vector<2x18x32xf32> to vector<2x16x32xf32>
    %104 = vector.extract_strided_slice %102 {offsets = [0, 1, 0], sizes = [2, 16, 32], strides = [1, 1, 1]} : vector<2x18x32xf32> to vector<2x16x32xf32>
    %105 = vector.extract_strided_slice %102 {offsets = [0, 2, 0], sizes = [2, 16, 32], strides = [1, 1, 1]} : vector<2x18x32xf32> to vector<2x16x32xf32>
    %106 = tpu.concatenate %103, %104, %105 in 2 : vector<2x16x32xf32>, vector<2x16x32xf32>, vector<2x16x32xf32> -> vector<2x16x96xf32>
    %107 = vector.shape_cast %106 : vector<2x16x96xf32> to vector<32x96xf32>
    %c0_43 = arith.constant 0 : index
    %c0_44 = arith.constant 0 : index
    %108 = vector.load %arg6[%c0_43, %c0_44] : memref<96x32xf32, #tpu.memory_space<vmem>>, vector<96x32xf32>
    %cst_45 = arith.constant dense<0.000000e+00> : vector<32x32xf32>
    %109 = tpu.matmul %107, %108, %cst_45 {dimension_numbers = #tpu.dot_dimension_numbers<[1], [0], [0], [1], [0, 0, 1, 1], [], []>, precision = #tpu.contract_precision<fp32>} : vector<32x96xf32>, vector<96x32xf32>, vector<32x32xf32> -> vector<32x32xf32>
    %c0_46 = arith.constant 0 : index
    %c0_47 = arith.constant 0 : index
    %110 = vector.load %arg7[%c0_46, %c0_47] : memref<1x32xf32, #tpu.memory_space<vmem>>, vector<1x32xf32>
    %111 = vector.broadcast %110 : vector<1x32xf32> to vector<32x32xf32>
    %112 = arith.addf %109, %111 : vector<32x32xf32>
    %113 = vector.shape_cast %112 : vector<32x32xf32> to vector<2x16x32xf32>
    %114 = arith.addf %113, %7 : vector<2x16x32xf32>
    %cst_48 = arith.constant 5.000000e-01 : f32
    %115 = vector.broadcast %cst_48 : f32 to vector<2x16x32xf32>
    %116 = arith.mulf %115, %114 : vector<2x16x32xf32>
    %cst_49 = arith.constant 0.707106769 : f32
    %117 = vector.broadcast %cst_49 : f32 to vector<2x16x32xf32>
    %118 = arith.mulf %114, %117 : vector<2x16x32xf32>
    %119 = math.absf %118 : vector<2x16x32xf32>
    %cst_50 = arith.constant 0.327591091 : f32
    %120 = vector.broadcast %cst_50 : f32 to vector<2x16x32xf32>
    %121 = arith.mulf %120, %119 : vector<2x16x32xf32>
    %cst_51 = arith.constant 1.000000e+00 : f32
    %122 = vector.broadcast %cst_51 : f32 to vector<2x16x32xf32>
    %123 = arith.addf %122, %121 : vector<2x16x32xf32>
    %cst_52 = arith.constant 1.000000e+00 : f32
    %124 = vector.broadcast %cst_52 : f32 to vector<2x16x32xf32>
    %125 = arith.divf %124, %123 : vector<2x16x32xf32>
    %cst_53 = arith.constant 1.06140542 : f32
    %126 = vector.broadcast %cst_53 : f32 to vector<2x16x32xf32>
    %127 = arith.mulf %125, %126 : vector<2x16x32xf32>
    %cst_54 = arith.constant -1.45315206 : f32
    %128 = vector.broadcast %cst_54 : f32 to vector<2x16x32xf32>
    %129 = arith.addf %128, %127 : vector<2x16x32xf32>
    %130 = arith.mulf %125, %129 : vector<2x16x32xf32>
    %cst_55 = arith.constant 1.42141378 : f32
    %131 = vector.broadcast %cst_55 : f32 to vector<2x16x32xf32>
    %132 = arith.addf %131, %130 : vector<2x16x32xf32>
    %133 = arith.mulf %125, %132 : vector<2x16x32xf32>
    %cst_56 = arith.constant -0.284496725 : f32
    %134 = vector.broadcast %cst_56 : f32 to vector<2x16x32xf32>
    %135 = arith.addf %134, %133 : vector<2x16x32xf32>
    %136 = arith.mulf %125, %135 : vector<2x16x32xf32>
    %cst_57 = arith.constant 0.254829586 : f32
    %137 = vector.broadcast %cst_57 : f32 to vector<2x16x32xf32>
    %138 = arith.addf %137, %136 : vector<2x16x32xf32>
    %139 = arith.mulf %125, %138 : vector<2x16x32xf32>
    %140 = arith.mulf %119, %119 : vector<2x16x32xf32>
    %cst_58 = arith.constant 0.000000e+00 : f32
    %141 = vector.broadcast %cst_58 : f32 to vector<2x16x32xf32>
    %142 = arith.subf %141, %140 : vector<2x16x32xf32>
    %143 = math.exp %142 : vector<2x16x32xf32>
    %144 = arith.mulf %139, %143 : vector<2x16x32xf32>
    %cst_59 = arith.constant 1.000000e+00 : f32
    %145 = vector.broadcast %cst_59 : f32 to vector<2x16x32xf32>
    %146 = arith.subf %145, %144 : vector<2x16x32xf32>
    %cst_60 = arith.constant 0.000000e+00 : f32
    %147 = vector.broadcast %cst_60 : f32 to vector<2x16x32xf32>
    %148 = arith.cmpf oge, %118, %147 : vector<2x16x32xf32>
    %cst_61 = arith.constant 0.000000e+00 : f32
    %149 = vector.broadcast %cst_61 : f32 to vector<2x16x32xf32>
    %150 = arith.subf %149, %146 : vector<2x16x32xf32>
    %151 = arith.select %148, %146, %150 : vector<2x16x32xi1>, vector<2x16x32xf32>
    %cst_62 = arith.constant 1.000000e+00 : f32
    %152 = vector.broadcast %cst_62 : f32 to vector<2x16x32xf32>
    %153 = arith.addf %152, %151 : vector<2x16x32xf32>
    %154 = arith.mulf %116, %153 : vector<2x16x32xf32>
    %cst_63 = arith.constant 0.000000e+00 : f32
    %155 = vector.broadcast %cst_63 : f32 to vector<2x2x32xf32>
    %156 = tpu.concatenate %155, %154, %155 in 1 : vector<2x2x32xf32>, vector<2x16x32xf32>, vector<2x2x32xf32> -> vector<2x20x32xf32>
    %157 = vector.extract_strided_slice %156 {offsets = [0, 0, 0], sizes = [2, 16, 32], strides = [1, 1, 1]} : vector<2x20x32xf32> to vector<2x16x32xf32>
    %158 = vector.extract_strided_slice %156 {offsets = [0, 2, 0], sizes = [2, 16, 32], strides = [1, 1, 1]} : vector<2x20x32xf32> to vector<2x16x32xf32>
    %159 = vector.extract_strided_slice %156 {offsets = [0, 4, 0], sizes = [2, 16, 32], strides = [1, 1, 1]} : vector<2x20x32xf32> to vector<2x16x32xf32>
    %160 = tpu.concatenate %157, %158, %159 in 2 : vector<2x16x32xf32>, vector<2x16x32xf32>, vector<2x16x32xf32> -> vector<2x16x96xf32>
    %161 = vector.shape_cast %160 : vector<2x16x96xf32> to vector<32x96xf32>
    %c0_64 = arith.constant 0 : index
    %c0_65 = arith.constant 0 : index
    %162 = vector.load %arg8[%c0_64, %c0_65] : memref<96x32xf32, #tpu.memory_space<vmem>>, vector<96x32xf32>
    %cst_66 = arith.constant dense<0.000000e+00> : vector<32x32xf32>
    %163 = tpu.matmul %161, %162, %cst_66 {dimension_numbers = #tpu.dot_dimension_numbers<[1], [0], [0], [1], [0, 0, 1, 1], [], []>, precision = #tpu.contract_precision<fp32>} : vector<32x96xf32>, vector<96x32xf32>, vector<32x32xf32> -> vector<32x32xf32>
    %c0_67 = arith.constant 0 : index
    %c0_68 = arith.constant 0 : index
    %164 = vector.load %arg9[%c0_67, %c0_68] : memref<1x32xf32, #tpu.memory_space<vmem>>, vector<1x32xf32>
    %165 = vector.broadcast %164 : vector<1x32xf32> to vector<32x32xf32>
    %166 = arith.addf %163, %165 : vector<32x32xf32>
    %167 = vector.shape_cast %166 : vector<32x32xf32> to vector<2x16x32xf32>
    %cst_69 = arith.constant 5.000000e-01 : f32
    %168 = vector.broadcast %cst_69 : f32 to vector<2x16x32xf32>
    %169 = arith.mulf %168, %167 : vector<2x16x32xf32>
    %cst_70 = arith.constant 0.707106769 : f32
    %170 = vector.broadcast %cst_70 : f32 to vector<2x16x32xf32>
    %171 = arith.mulf %167, %170 : vector<2x16x32xf32>
    %172 = math.absf %171 : vector<2x16x32xf32>
    %cst_71 = arith.constant 0.327591091 : f32
    %173 = vector.broadcast %cst_71 : f32 to vector<2x16x32xf32>
    %174 = arith.mulf %173, %172 : vector<2x16x32xf32>
    %cst_72 = arith.constant 1.000000e+00 : f32
    %175 = vector.broadcast %cst_72 : f32 to vector<2x16x32xf32>
    %176 = arith.addf %175, %174 : vector<2x16x32xf32>
    %cst_73 = arith.constant 1.000000e+00 : f32
    %177 = vector.broadcast %cst_73 : f32 to vector<2x16x32xf32>
    %178 = arith.divf %177, %176 : vector<2x16x32xf32>
    %cst_74 = arith.constant 1.06140542 : f32
    %179 = vector.broadcast %cst_74 : f32 to vector<2x16x32xf32>
    %180 = arith.mulf %178, %179 : vector<2x16x32xf32>
    %cst_75 = arith.constant -1.45315206 : f32
    %181 = vector.broadcast %cst_75 : f32 to vector<2x16x32xf32>
    %182 = arith.addf %181, %180 : vector<2x16x32xf32>
    %183 = arith.mulf %178, %182 : vector<2x16x32xf32>
    %cst_76 = arith.constant 1.42141378 : f32
    %184 = vector.broadcast %cst_76 : f32 to vector<2x16x32xf32>
    %185 = arith.addf %184, %183 : vector<2x16x32xf32>
    %186 = arith.mulf %178, %185 : vector<2x16x32xf32>
    %cst_77 = arith.constant -0.284496725 : f32
    %187 = vector.broadcast %cst_77 : f32 to vector<2x16x32xf32>
    %188 = arith.addf %187, %186 : vector<2x16x32xf32>
    %189 = arith.mulf %178, %188 : vector<2x16x32xf32>
    %cst_78 = arith.constant 0.254829586 : f32
    %190 = vector.broadcast %cst_78 : f32 to vector<2x16x32xf32>
    %191 = arith.addf %190, %189 : vector<2x16x32xf32>
    %192 = arith.mulf %178, %191 : vector<2x16x32xf32>
    %193 = arith.mulf %172, %172 : vector<2x16x32xf32>
    %cst_79 = arith.constant 0.000000e+00 : f32
    %194 = vector.broadcast %cst_79 : f32 to vector<2x16x32xf32>
    %195 = arith.subf %194, %193 : vector<2x16x32xf32>
    %196 = math.exp %195 : vector<2x16x32xf32>
    %197 = arith.mulf %192, %196 : vector<2x16x32xf32>
    %cst_80 = arith.constant 1.000000e+00 : f32
    %198 = vector.broadcast %cst_80 : f32 to vector<2x16x32xf32>
    %199 = arith.subf %198, %197 : vector<2x16x32xf32>
    %cst_81 = arith.constant 0.000000e+00 : f32
    %200 = vector.broadcast %cst_81 : f32 to vector<2x16x32xf32>
    %201 = arith.cmpf oge, %171, %200 : vector<2x16x32xf32>
    %cst_82 = arith.constant 0.000000e+00 : f32
    %202 = vector.broadcast %cst_82 : f32 to vector<2x16x32xf32>
    %203 = arith.subf %202, %199 : vector<2x16x32xf32>
    %204 = arith.select %201, %199, %203 : vector<2x16x32xi1>, vector<2x16x32xf32>
    %cst_83 = arith.constant 1.000000e+00 : f32
    %205 = vector.broadcast %cst_83 : f32 to vector<2x16x32xf32>
    %206 = arith.addf %205, %204 : vector<2x16x32xf32>
    %207 = arith.mulf %169, %206 : vector<2x16x32xf32>
    %cst_84 = arith.constant 0.000000e+00 : f32
    %208 = vector.broadcast %cst_84 : f32 to vector<2x2x32xf32>
    %209 = tpu.concatenate %208, %207, %208 in 1 : vector<2x2x32xf32>, vector<2x16x32xf32>, vector<2x2x32xf32> -> vector<2x20x32xf32>
    %210 = vector.extract_strided_slice %209 {offsets = [0, 0, 0], sizes = [2, 16, 32], strides = [1, 1, 1]} : vector<2x20x32xf32> to vector<2x16x32xf32>
    %211 = vector.extract_strided_slice %209 {offsets = [0, 2, 0], sizes = [2, 16, 32], strides = [1, 1, 1]} : vector<2x20x32xf32> to vector<2x16x32xf32>
    %212 = vector.extract_strided_slice %209 {offsets = [0, 4, 0], sizes = [2, 16, 32], strides = [1, 1, 1]} : vector<2x20x32xf32> to vector<2x16x32xf32>
    %213 = tpu.concatenate %210, %211, %212 in 2 : vector<2x16x32xf32>, vector<2x16x32xf32>, vector<2x16x32xf32> -> vector<2x16x96xf32>
    %214 = vector.shape_cast %213 : vector<2x16x96xf32> to vector<32x96xf32>
    %c0_85 = arith.constant 0 : index
    %c0_86 = arith.constant 0 : index
    %215 = vector.load %arg10[%c0_85, %c0_86] : memref<96x32xf32, #tpu.memory_space<vmem>>, vector<96x32xf32>
    %cst_87 = arith.constant dense<0.000000e+00> : vector<32x32xf32>
    %216 = tpu.matmul %214, %215, %cst_87 {dimension_numbers = #tpu.dot_dimension_numbers<[1], [0], [0], [1], [0, 0, 1, 1], [], []>, precision = #tpu.contract_precision<fp32>} : vector<32x96xf32>, vector<96x32xf32>, vector<32x32xf32> -> vector<32x32xf32>
    %c0_88 = arith.constant 0 : index
    %c0_89 = arith.constant 0 : index
    %217 = vector.load %arg11[%c0_88, %c0_89] : memref<1x32xf32, #tpu.memory_space<vmem>>, vector<1x32xf32>
    %218 = vector.broadcast %217 : vector<1x32xf32> to vector<32x32xf32>
    %219 = arith.addf %216, %218 : vector<32x32xf32>
    %220 = vector.shape_cast %219 : vector<32x32xf32> to vector<2x16x32xf32>
    %221 = arith.addf %220, %114 : vector<2x16x32xf32>
    %222 = vector.shape_cast %221 : vector<2x16x32xf32> to vector<32x32xf32>
    %c0_90 = arith.constant 0 : index
    %c0_91 = arith.constant 0 : index
    %223 = vector.load %arg12[%c0_90, %c0_91] : memref<32x64xf32, #tpu.memory_space<vmem>>, vector<32x64xf32>
    %cst_92 = arith.constant dense<0.000000e+00> : vector<32x64xf32>
    %224 = tpu.matmul %222, %223, %cst_92 {dimension_numbers = #tpu.dot_dimension_numbers<[1], [0], [0], [1], [0, 0, 1, 1], [], []>, precision = #tpu.contract_precision<fp32>} : vector<32x32xf32>, vector<32x64xf32>, vector<32x64xf32> -> vector<32x64xf32>
    %c0_93 = arith.constant 0 : index
    %c0_94 = arith.constant 0 : index
    %225 = vector.load %arg13[%c0_93, %c0_94] : memref<1x64xf32, #tpu.memory_space<vmem>>, vector<1x64xf32>
    %226 = vector.broadcast %225 : vector<1x64xf32> to vector<32x64xf32>
    %227 = arith.addf %224, %226 : vector<32x64xf32>
    %228 = vector.shape_cast %227 : vector<32x64xf32> to vector<2x16x64xf32>
    %cst_95 = arith.constant 5.000000e-01 : f32
    %229 = vector.broadcast %cst_95 : f32 to vector<2x16x32xf32>
    %230 = arith.mulf %229, %221 : vector<2x16x32xf32>
    %cst_96 = arith.constant 0.707106769 : f32
    %231 = vector.broadcast %cst_96 : f32 to vector<2x16x32xf32>
    %232 = arith.mulf %221, %231 : vector<2x16x32xf32>
    %233 = math.absf %232 : vector<2x16x32xf32>
    %cst_97 = arith.constant 0.327591091 : f32
    %234 = vector.broadcast %cst_97 : f32 to vector<2x16x32xf32>
    %235 = arith.mulf %234, %233 : vector<2x16x32xf32>
    %cst_98 = arith.constant 1.000000e+00 : f32
    %236 = vector.broadcast %cst_98 : f32 to vector<2x16x32xf32>
    %237 = arith.addf %236, %235 : vector<2x16x32xf32>
    %cst_99 = arith.constant 1.000000e+00 : f32
    %238 = vector.broadcast %cst_99 : f32 to vector<2x16x32xf32>
    %239 = arith.divf %238, %237 : vector<2x16x32xf32>
    %cst_100 = arith.constant 1.06140542 : f32
    %240 = vector.broadcast %cst_100 : f32 to vector<2x16x32xf32>
    %241 = arith.mulf %239, %240 : vector<2x16x32xf32>
    %cst_101 = arith.constant -1.45315206 : f32
    %242 = vector.broadcast %cst_101 : f32 to vector<2x16x32xf32>
    %243 = arith.addf %242, %241 : vector<2x16x32xf32>
    %244 = arith.mulf %239, %243 : vector<2x16x32xf32>
    %cst_102 = arith.constant 1.42141378 : f32
    %245 = vector.broadcast %cst_102 : f32 to vector<2x16x32xf32>
    %246 = arith.addf %245, %244 : vector<2x16x32xf32>
    %247 = arith.mulf %239, %246 : vector<2x16x32xf32>
    %cst_103 = arith.constant -0.284496725 : f32
    %248 = vector.broadcast %cst_103 : f32 to vector<2x16x32xf32>
    %249 = arith.addf %248, %247 : vector<2x16x32xf32>
    %250 = arith.mulf %239, %249 : vector<2x16x32xf32>
    %cst_104 = arith.constant 0.254829586 : f32
    %251 = vector.broadcast %cst_104 : f32 to vector<2x16x32xf32>
    %252 = arith.addf %251, %250 : vector<2x16x32xf32>
    %253 = arith.mulf %239, %252 : vector<2x16x32xf32>
    %254 = arith.mulf %233, %233 : vector<2x16x32xf32>
    %cst_105 = arith.constant 0.000000e+00 : f32
    %255 = vector.broadcast %cst_105 : f32 to vector<2x16x32xf32>
    %256 = arith.subf %255, %254 : vector<2x16x32xf32>
    %257 = math.exp %256 : vector<2x16x32xf32>
    %258 = arith.mulf %253, %257 : vector<2x16x32xf32>
    %cst_106 = arith.constant 1.000000e+00 : f32
    %259 = vector.broadcast %cst_106 : f32 to vector<2x16x32xf32>
    %260 = arith.subf %259, %258 : vector<2x16x32xf32>
    %cst_107 = arith.constant 0.000000e+00 : f32
    %261 = vector.broadcast %cst_107 : f32 to vector<2x16x32xf32>
    %262 = arith.cmpf oge, %232, %261 : vector<2x16x32xf32>
    %cst_108 = arith.constant 0.000000e+00 : f32
    %263 = vector.broadcast %cst_108 : f32 to vector<2x16x32xf32>
    %264 = arith.subf %263, %260 : vector<2x16x32xf32>
    %265 = arith.select %262, %260, %264 : vector<2x16x32xi1>, vector<2x16x32xf32>
    %cst_109 = arith.constant 1.000000e+00 : f32
    %266 = vector.broadcast %cst_109 : f32 to vector<2x16x32xf32>
    %267 = arith.addf %266, %265 : vector<2x16x32xf32>
    %268 = arith.mulf %230, %267 : vector<2x16x32xf32>
    %cst_110 = arith.constant 0.000000e+00 : f32
    %269 = vector.broadcast %cst_110 : f32 to vector<2x4x32xf32>
    %270 = tpu.concatenate %269, %268, %269 in 1 : vector<2x4x32xf32>, vector<2x16x32xf32>, vector<2x4x32xf32> -> vector<2x24x32xf32>
    %271 = vector.extract_strided_slice %270 {offsets = [0, 0, 0], sizes = [2, 16, 32], strides = [1, 1, 1]} : vector<2x24x32xf32> to vector<2x16x32xf32>
    %272 = vector.extract_strided_slice %270 {offsets = [0, 4, 0], sizes = [2, 16, 32], strides = [1, 1, 1]} : vector<2x24x32xf32> to vector<2x16x32xf32>
    %273 = vector.extract_strided_slice %270 {offsets = [0, 8, 0], sizes = [2, 16, 32], strides = [1, 1, 1]} : vector<2x24x32xf32> to vector<2x16x32xf32>
    %274 = tpu.concatenate %271, %272, %273 in 2 : vector<2x16x32xf32>, vector<2x16x32xf32>, vector<2x16x32xf32> -> vector<2x16x96xf32>
    %275 = vector.shape_cast %274 : vector<2x16x96xf32> to vector<32x96xf32>
    %c0_111 = arith.constant 0 : index
    %c0_112 = arith.constant 0 : index
    %276 = vector.load %arg14[%c0_111, %c0_112] : memref<96x64xf32, #tpu.memory_space<vmem>>, vector<96x64xf32>
    %cst_113 = arith.constant dense<0.000000e+00> : vector<32x64xf32>
    %277 = tpu.matmul %275, %276, %cst_113 {dimension_numbers = #tpu.dot_dimension_numbers<[1], [0], [0], [1], [0, 0, 1, 1], [], []>, precision = #tpu.contract_precision<fp32>} : vector<32x96xf32>, vector<96x64xf32>, vector<32x64xf32> -> vector<32x64xf32>
    %c0_114 = arith.constant 0 : index
    %c0_115 = arith.constant 0 : index
    %278 = vector.load %arg15[%c0_114, %c0_115] : memref<1x64xf32, #tpu.memory_space<vmem>>, vector<1x64xf32>
    %279 = vector.broadcast %278 : vector<1x64xf32> to vector<32x64xf32>
    %280 = arith.addf %277, %279 : vector<32x64xf32>
    %281 = vector.shape_cast %280 : vector<32x64xf32> to vector<2x16x64xf32>
    %cst_116 = arith.constant 5.000000e-01 : f32
    %282 = vector.broadcast %cst_116 : f32 to vector<2x16x64xf32>
    %283 = arith.mulf %282, %281 : vector<2x16x64xf32>
    %cst_117 = arith.constant 0.707106769 : f32
    %284 = vector.broadcast %cst_117 : f32 to vector<2x16x64xf32>
    %285 = arith.mulf %281, %284 : vector<2x16x64xf32>
    %286 = math.absf %285 : vector<2x16x64xf32>
    %cst_118 = arith.constant 0.327591091 : f32
    %287 = vector.broadcast %cst_118 : f32 to vector<2x16x64xf32>
    %288 = arith.mulf %287, %286 : vector<2x16x64xf32>
    %cst_119 = arith.constant 1.000000e+00 : f32
    %289 = vector.broadcast %cst_119 : f32 to vector<2x16x64xf32>
    %290 = arith.addf %289, %288 : vector<2x16x64xf32>
    %cst_120 = arith.constant 1.000000e+00 : f32
    %291 = vector.broadcast %cst_120 : f32 to vector<2x16x64xf32>
    %292 = arith.divf %291, %290 : vector<2x16x64xf32>
    %cst_121 = arith.constant 1.06140542 : f32
    %293 = vector.broadcast %cst_121 : f32 to vector<2x16x64xf32>
    %294 = arith.mulf %292, %293 : vector<2x16x64xf32>
    %cst_122 = arith.constant -1.45315206 : f32
    %295 = vector.broadcast %cst_122 : f32 to vector<2x16x64xf32>
    %296 = arith.addf %295, %294 : vector<2x16x64xf32>
    %297 = arith.mulf %292, %296 : vector<2x16x64xf32>
    %cst_123 = arith.constant 1.42141378 : f32
    %298 = vector.broadcast %cst_123 : f32 to vector<2x16x64xf32>
    %299 = arith.addf %298, %297 : vector<2x16x64xf32>
    %300 = arith.mulf %292, %299 : vector<2x16x64xf32>
    %cst_124 = arith.constant -0.284496725 : f32
    %301 = vector.broadcast %cst_124 : f32 to vector<2x16x64xf32>
    %302 = arith.addf %301, %300 : vector<2x16x64xf32>
    %303 = arith.mulf %292, %302 : vector<2x16x64xf32>
    %cst_125 = arith.constant 0.254829586 : f32
    %304 = vector.broadcast %cst_125 : f32 to vector<2x16x64xf32>
    %305 = arith.addf %304, %303 : vector<2x16x64xf32>
    %306 = arith.mulf %292, %305 : vector<2x16x64xf32>
    %307 = arith.mulf %286, %286 : vector<2x16x64xf32>
    %cst_126 = arith.constant 0.000000e+00 : f32
    %308 = vector.broadcast %cst_126 : f32 to vector<2x16x64xf32>
    %309 = arith.subf %308, %307 : vector<2x16x64xf32>
    %310 = math.exp %309 : vector<2x16x64xf32>
    %311 = arith.mulf %306, %310 : vector<2x16x64xf32>
    %cst_127 = arith.constant 1.000000e+00 : f32
    %312 = vector.broadcast %cst_127 : f32 to vector<2x16x64xf32>
    %313 = arith.subf %312, %311 : vector<2x16x64xf32>
    %cst_128 = arith.constant 0.000000e+00 : f32
    %314 = vector.broadcast %cst_128 : f32 to vector<2x16x64xf32>
    %315 = arith.cmpf oge, %285, %314 : vector<2x16x64xf32>
    %cst_129 = arith.constant 0.000000e+00 : f32
    %316 = vector.broadcast %cst_129 : f32 to vector<2x16x64xf32>
    %317 = arith.subf %316, %313 : vector<2x16x64xf32>
    %318 = arith.select %315, %313, %317 : vector<2x16x64xi1>, vector<2x16x64xf32>
    %cst_130 = arith.constant 1.000000e+00 : f32
    %319 = vector.broadcast %cst_130 : f32 to vector<2x16x64xf32>
    %320 = arith.addf %319, %318 : vector<2x16x64xf32>
    %321 = arith.mulf %283, %320 : vector<2x16x64xf32>
    %cst_131 = arith.constant 0.000000e+00 : f32
    %322 = vector.broadcast %cst_131 : f32 to vector<2x4x64xf32>
    %323 = tpu.concatenate %322, %321, %322 in 1 : vector<2x4x64xf32>, vector<2x16x64xf32>, vector<2x4x64xf32> -> vector<2x24x64xf32>
    %324 = vector.extract_strided_slice %323 {offsets = [0, 0, 0], sizes = [2, 16, 64], strides = [1, 1, 1]} : vector<2x24x64xf32> to vector<2x16x64xf32>
    %325 = vector.extract_strided_slice %323 {offsets = [0, 4, 0], sizes = [2, 16, 64], strides = [1, 1, 1]} : vector<2x24x64xf32> to vector<2x16x64xf32>
    %326 = vector.extract_strided_slice %323 {offsets = [0, 8, 0], sizes = [2, 16, 64], strides = [1, 1, 1]} : vector<2x24x64xf32> to vector<2x16x64xf32>
    %327 = tpu.concatenate %324, %325, %326 in 2 : vector<2x16x64xf32>, vector<2x16x64xf32>, vector<2x16x64xf32> -> vector<2x16x192xf32>
    %328 = vector.shape_cast %327 : vector<2x16x192xf32> to vector<32x192xf32>
    %c0_132 = arith.constant 0 : index
    %c0_133 = arith.constant 0 : index
    %329 = vector.load %arg16[%c0_132, %c0_133] : memref<192x64xf32, #tpu.memory_space<vmem>>, vector<192x64xf32>
    %cst_134 = arith.constant dense<0.000000e+00> : vector<32x64xf32>
    %330 = tpu.matmul %328, %329, %cst_134 {dimension_numbers = #tpu.dot_dimension_numbers<[1], [0], [0], [1], [0, 0, 1, 1], [], []>, precision = #tpu.contract_precision<fp32>} : vector<32x192xf32>, vector<192x64xf32>, vector<32x64xf32> -> vector<32x64xf32>
    %c0_135 = arith.constant 0 : index
    %c0_136 = arith.constant 0 : index
    %331 = vector.load %arg17[%c0_135, %c0_136] : memref<1x64xf32, #tpu.memory_space<vmem>>, vector<1x64xf32>
    %332 = vector.broadcast %331 : vector<1x64xf32> to vector<32x64xf32>
    %333 = arith.addf %330, %332 : vector<32x64xf32>
    %334 = vector.shape_cast %333 : vector<32x64xf32> to vector<2x16x64xf32>
    %335 = arith.addf %334, %228 : vector<2x16x64xf32>
    %336 = vector.extract_strided_slice %335 {offsets = [0, 15, 0], sizes = [2, 1, 64], strides = [1, 1, 1]} : vector<2x16x64xf32> to vector<2x1x64xf32>
    %337 = vector.shape_cast %336 : vector<2x1x64xf32> to vector<2x64xf32>
    %c0_137 = arith.constant 0 : index
    %c0_138 = arith.constant 0 : index
    %338 = vector.load %arg18[%c0_137, %c0_138] : memref<2x64xf32, #tpu.memory_space<vmem>>, vector<2x64xf32>
    tpu.vector_store %arg18[%c0_137, %c0_138], %337 {strides = array<i32>} : memref<2x64xf32, #tpu.memory_space<vmem>>, vector<2x64xf32>,
    return
  }
  func.func @transform_0(%arg0: i32) -> (i32, i32, i32) {
    %c0_i32 = arith.constant 0 : i32
    %c0_i32_0 = arith.constant 0 : i32
    %c0_i32_1 = arith.constant 0 : i32
    %c0_i32_2 = arith.constant 0 : i32
    return %c0_i32, %c0_i32_0, %c0_i32_1 : i32, i32, i32
  }
  func.func @transform_1(%arg0: i32) -> (i32, i32) {
    %c0_i32 = arith.constant 0 : i32
    %c0_i32_0 = arith.constant 0 : i32
    %c0_i32_1 = arith.constant 0 : i32
    return %c0_i32, %c0_i32_0 : i32, i32
  }
  func.func @transform_2(%arg0: i32) -> (i32, i32) {
    %c0_i32 = arith.constant 0 : i32
    %c0_i32_0 = arith.constant 0 : i32
    %c0_i32_1 = arith.constant 0 : i32
    return %c0_i32, %c0_i32_0 : i32, i32
  }
  func.func @transform_3(%arg0: i32) -> (i32, i32) {
    %c0_i32 = arith.constant 0 : i32
    %c0_i32_0 = arith.constant 0 : i32
    %c0_i32_1 = arith.constant 0 : i32
    return %c0_i32, %c0_i32_0 : i32, i32
  }
  func.func @transform_4(%arg0: i32) -> (i32, i32) {
    %c0_i32 = arith.constant 0 : i32
    %c0_i32_0 = arith.constant 0 : i32
    %c0_i32_1 = arith.constant 0 : i32
    return %c0_i32, %c0_i32_0 : i32, i32
  }
  func.func @transform_5(%arg0: i32) -> (i32, i32) {
    %c0_i32 = arith.constant 0 : i32
    %c0_i32_0 = arith.constant 0 : i32
    %c0_i32_1 = arith.constant 0 : i32
    return %c0_i32, %c0_i32_0 : i32, i32
  }
  func.func @transform_6(%arg0: i32) -> (i32, i32) {
    %c0_i32 = arith.constant 0 : i32
    %c0_i32_0 = arith.constant 0 : i32
    %c0_i32_1 = arith.constant 0 : i32
    return %c0_i32, %c0_i32_0 : i32, i32
  }
  func.func @transform_7(%arg0: i32) -> (i32, i32) {
    %c0_i32 = arith.constant 0 : i32
    %c0_i32_0 = arith.constant 0 : i32
    %c0_i32_1 = arith.constant 0 : i32
    return %c0_i32, %c0_i32_0 : i32, i32
  }
  func.func @transform_8(%arg0: i32) -> (i32, i32) {
    %c0_i32 = arith.constant 0 : i32
    %c0_i32_0 = arith.constant 0 : i32
    %c0_i32_1 = arith.constant 0 : i32
    return %c0_i32, %c0_i32_0 : i32, i32
  }
  func.func @transform_9(%arg0: i32) -> (i32, i32) {
    %c0_i32 = arith.constant 0 : i32
    %c0_i32_0 = arith.constant 0 : i32
    %c0_i32_1 = arith.constant 0 : i32
    return %c0_i32, %c0_i32_0 : i32, i32
  }
  func.func @transform_10(%arg0: i32) -> (i32, i32) {
    %c0_i32 = arith.constant 0 : i32
    %c0_i32_0 = arith.constant 0 : i32
    %c0_i32_1 = arith.constant 0 : i32
    return %c0_i32, %c0_i32_0 : i32, i32
  }
  func.func @transform_11(%arg0: i32) -> (i32, i32) {
    %c0_i32 = arith.constant 0 : i32
    %c0_i32_0 = arith.constant 0 : i32
    %c0_i32_1 = arith.constant 0 : i32
    return %c0_i32, %c0_i32_0 : i32, i32
  }
  func.func @transform_12(%arg0: i32) -> (i32, i32) {
    %c0_i32 = arith.constant 0 : i32
    %c0_i32_0 = arith.constant 0 : i32
    %c0_i32_1 = arith.constant 0 : i32
    return %c0_i32, %c0_i32_0 : i32, i32
  }
  func.func @transform_13(%arg0: i32) -> (i32, i32) {
    %c0_i32 = arith.constant 0 : i32
    %c0_i32_0 = arith.constant 0 : i32
    %c0_i32_1 = arith.constant 0 : i32
    return %c0_i32, %c0_i32_0 : i32, i32
  }
  func.func @transform_14(%arg0: i32) -> (i32, i32) {
    %c0_i32 = arith.constant 0 : i32
    %c0_i32_0 = arith.constant 0 : i32
    %c0_i32_1 = arith.constant 0 : i32
    return %c0_i32, %c0_i32_0 : i32, i32
  }
  func.func @transform_15(%arg0: i32) -> (i32, i32) {
    %c0_i32 = arith.constant 0 : i32
    %c0_i32_0 = arith.constant 0 : i32
    %c0_i32_1 = arith.constant 0 : i32
    return %c0_i32, %c0_i32_0 : i32, i32
  }
  func.func @transform_16(%arg0: i32) -> (i32, i32) {
    %c0_i32 = arith.constant 0 : i32
    %c0_i32_0 = arith.constant 0 : i32
    %c0_i32_1 = arith.constant 0 : i32
    return %c0_i32, %c0_i32_0 : i32, i32
  }
  func.func @transform_17(%arg0: i32) -> (i32, i32) {
    %c0_i32 = arith.constant 0 : i32
    %c0_i32_0 = arith.constant 0 : i32
    %c0_i32_1 = arith.constant 0 : i32
    return %c0_i32, %c0_i32_0 : i32, i32
  }
}

</mosaic_0001>

<llo_original>
// kernel: tpu_custom_call.1
$region0: #{tpu_custom_call.1}
  #allocation0 [shape = 'u32[]', space=smem, size = 0x4, offset = 0x4, fixed_abs, tag = 'smem constant byte address 0x4 - core index']
  #allocation1 [shape = 'u32[72,128]{1,0:T(1,128)}', space=vmem, size = 0x9000, scoped, tag = 'internal scratch']
  %s0 = inlined_call_operand.vmem [shape: f32[2,16,4], index: 0, kind: input, shape index: {}]
  %s1 = inlined_call_operand.vmem [shape: f32[4,32], index: 1, kind: input, shape index: {}]
  %s2 = inlined_call_operand.vmem [shape: f32[1,32], index: 2, kind: input, shape index: {}]
  %s3 = inlined_call_operand.vmem [shape: f32[96,32], index: 3, kind: input, shape index: {}]
  %s4 = inlined_call_operand.vmem [shape: f32[1,32], index: 4, kind: input, shape index: {}]
  %s5 = inlined_call_operand.vmem [shape: f32[96,32], index: 5, kind: input, shape index: {}]
  %s6 = inlined_call_operand.vmem [shape: f32[1,32], index: 6, kind: input, shape index: {}]
  %s7 = inlined_call_operand.vmem [shape: f32[96,32], index: 7, kind: input, shape index: {}]
  %s8 = inlined_call_operand.vmem [shape: f32[1,32], index: 8, kind: input, shape index: {}]
  %s9 = inlined_call_operand.vmem [shape: f32[96,32], index: 9, kind: input, shape index: {}]
  %s10 = inlined_call_operand.vmem [shape: f32[1,32], index: 10, kind: input, shape index: {}]
  %s11 = inlined_call_operand.vmem [shape: f32[32,64], index: 11, kind: input, shape index: {}]
  %s12 = inlined_call_operand.vmem [shape: f32[1,64], index: 12, kind: input, shape index: {}]
  %s13 = inlined_call_operand.vmem [shape: f32[96,64], index: 13, kind: input, shape index: {}]
  %s14 = inlined_call_operand.vmem [shape: f32[1,64], index: 14, kind: input, shape index: {}]
  %s15 = inlined_call_operand.vmem [shape: f32[192,64], index: 15, kind: input, shape index: {}]
  %s16 = inlined_call_operand.vmem [shape: f32[1,64], index: 16, kind: input, shape index: {}]
  %s17 = inlined_call_operand.hbm [shape: f32[2,64], index: 17, kind: output, shape index: {}]
  %s18 = sld [smem:[#allocation0]]
  $region78: #{tpu_custom_call.1} parent=0
    _
  %s20 = ssub.s32 1, %s18
  %s21 = scalar_select 0, %s20, %s18
  $region1: #{tpu_custom_call.1} parent=0
    #allocation2 [shape = 'u8[1024]{0}', space=vmem, size = 0x400, scoped, tag = 'output window, operand 0, single buffered']
    #allocation3 [shape = 's32[1]{0}', space=sflag, size = 0x4, scoped, tag = 'scoped memory for tpu_custom_call.1']
    %22 = vsyncpa [#allocation3], 0
    // Predicated region
    $region2: #{tpu_custom_call.1} parent=1 // pred_check
      _
    $region3: #{tpu_custom_call.1} parent=1 // pred_check_branch
      %24 = sbr.rel (0) target = $region5
    $region4: #{tpu_custom_call.1} parent=1 // pred_region
      _
    $region5: #{tpu_custom_call.1} parent=1 // pred_fallthru
      _
    // Predicated region
    $region6: #{tpu_custom_call.1} parent=1 // pred_check
      _
    $region7: #{tpu_custom_call.1} parent=1 // pred_check_branch
      %26 = sbr.rel (0) target = $region9
    $region8: #{tpu_custom_call.1} parent=1 // pred_region
      _
    $region9: #{tpu_custom_call.1} parent=1 // pred_fallthru
      _
    // Predicated region
    $region10: #{tpu_custom_call.1} parent=1 // pred_check
      _
    $region11: #{tpu_custom_call.1} parent=1 // pred_check_branch
      %28 = sbr.rel (0) target = $region13
    $region12: #{tpu_custom_call.1} parent=1 // pred_region
      _
    $region13: #{tpu_custom_call.1} parent=1 // pred_fallthru
      _
    // Predicated region
    $region14: #{tpu_custom_call.1} parent=1 // pred_check
      _
    $region15: #{tpu_custom_call.1} parent=1 // pred_check_branch
      %30 = sbr.rel (0) target = $region17
    $region16: #{tpu_custom_call.1} parent=1 // pred_region
      _
    $region17: #{tpu_custom_call.1} parent=1 // pred_fallthru
      _
    // Predicated region
    $region18: #{tpu_custom_call.1} parent=1 // pred_check
      _
    $region19: #{tpu_custom_call.1} parent=1 // pred_check_branch
      %32 = sbr.rel (0) target = $region21
    $region20: #{tpu_custom_call.1} parent=1 // pred_region
      _
    $region21: #{tpu_custom_call.1} parent=1 // pred_fallthru
      _
    // Predicated region
    $region22: #{tpu_custom_call.1} parent=1 // pred_check
      _
    $region23: #{tpu_custom_call.1} parent=1 // pred_check_branch
      %34 = sbr.rel (0) target = $region25
    $region24: #{tpu_custom_call.1} parent=1 // pred_region
      _
    $region25: #{tpu_custom_call.1} parent=1 // pred_fallthru
      _
    // Predicated region
    $region26: #{tpu_custom_call.1} parent=1 // pred_check
      _
    $region27: #{tpu_custom_call.1} parent=1 // pred_check_branch
      %36 = sbr.rel (0) target = $region29
    $region28: #{tpu_custom_call.1} parent=1 // pred_region
      _
    $region29: #{tpu_custom_call.1} parent=1 // pred_fallthru
      _
    // Predicated region
    $region30: #{tpu_custom_call.1} parent=1 // pred_check
      _
    $region31: #{tpu_custom_call.1} parent=1 // pred_check_branch
      %38 = sbr.rel (0) target = $region33
    $region32: #{tpu_custom_call.1} parent=1 // pred_region
      _
    $region33: #{tpu_custom_call.1} parent=1 // pred_fallthru
      _
    // Predicated region
    $region34: #{tpu_custom_call.1} parent=1 // pred_check
      _
    $region35: #{tpu_custom_call.1} parent=1 // pred_check_branch
      %40 = sbr.rel (0) target = $region37
    $region36: #{tpu_custom_call.1} parent=1 // pred_region
      _
    $region37: #{tpu_custom_call.1} parent=1 // pred_fallthru
      _
    // Predicated region
    $region38: #{tpu_custom_call.1} parent=1 // pred_check
      _
    $region39: #{tpu_custom_call.1} parent=1 // pred_check_branch
      %42 = sbr.rel (0) target = $region41
    $region40: #{tpu_custom_call.1} parent=1 // pred_region
      _
    $region41: #{tpu_custom_call.1} parent=1 // pred_fallthru
      _
    // Predicated region
    $region42: #{tpu_custom_call.1} parent=1 // pred_check
      _
    $region43: #{tpu_custom_call.1} parent=1 // pred_check_branch
      %44 = sbr.rel (0) target = $region45
    $region44: #{tpu_custom_call.1} parent=1 // pred_region
      _
    $region45: #{tpu_custom_call.1} parent=1 // pred_fallthru
      _
    // Predicated region
    $region46: #{tpu_custom_call.1} parent=1 // pred_check
      _
    $region47: #{tpu_custom_call.1} parent=1 // pred_check_branch
      %46 = sbr.rel (0) target = $region49
    $region48: #{tpu_custom_call.1} parent=1 // pred_region
      _
    $region49: #{tpu_custom_call.1} parent=1 // pred_fallthru
      _
    // Predicated region
    $region50: #{tpu_custom_call.1} parent=1 // pred_check
      _
    $region51: #{tpu_custom_call.1} parent=1 // pred_check_branch
      %48 = sbr.rel (0) target = $region53
    $region52: #{tpu_custom_call.1} parent=1 // pred_region
      _
    $region53: #{tpu_custom_call.1} parent=1 // pred_fallthru
      _
    // Predicated region
    $region54: #{tpu_custom_call.1} parent=1 // pred_check
      _
    $region55: #{tpu_custom_call.1} parent=1 // pred_check_branch
      %50 = sbr.rel (0) target = $region57
    $region56: #{tpu_custom_call.1} parent=1 // pred_region
      _
    $region57: #{tpu_custom_call.1} parent=1 // pred_fallthru
      _
    // Predicated region
    $region58: #{tpu_custom_call.1} parent=1 // pred_check
      _
    $region59: #{tpu_custom_call.1} parent=1 // pred_check_branch
      %52 = sbr.rel (0) target = $region61
    $region60: #{tpu_custom_call.1} parent=1 // pred_region
      _
    $region61: #{tpu_custom_call.1} parent=1 // pred_fallthru
      _
    // Predicated region
    $region62: #{tpu_custom_call.1} parent=1 // pred_check
      _
    $region63: #{tpu_custom_call.1} parent=1 // pred_check_branch
      %54 = sbr.rel (0) target = $region65
    $region64: #{tpu_custom_call.1} parent=1 // pred_region
      _
    $region65: #{tpu_custom_call.1} parent=1 // pred_fallthru
      _
    // Predicated region
    $region66: #{tpu_custom_call.1} parent=1 // pred_check
      _
    $region67: #{tpu_custom_call.1} parent=1 // pred_check_branch
      %56 = sbr.rel (0) target = $region69
    $region68: #{tpu_custom_call.1} parent=1 // pred_region
      _
    $region69: #{tpu_custom_call.1} parent=1 // pred_fallthru
      _
    %v57 = vld [vmem:[%s0] sm:$0xff]
    %v58 = vld [vmem:[%s0 + $0x8] sm:$0xff]
    %v59 = vld [vmem:[%s0 + $0x10] sm:$0xff]
    %v60 = vld [vmem:[%s0 + $0x18] sm:$0xff]
    %v61 = vld [vmem:[%s1] sm:$0xf]
    %v62 = vld [vmem:[%s2] sm:$0x1]
    %v64 = vperm.slane %v62, 0
    %vm66 = vcmask 31744
    %v68 = vsel %vm66, %v57, 0
    %v71 = vsel %vm66, %v58, 0
    %v74 = vsel %vm66, %v59, 0
    %v77 = vsel %vm66, %v60, 0
    %vm79 = vcmask 1043456
    %v81 = vsel %vm79, %v61, 0
    %83 = vmatpush.msra.mxu0 0.0
    %84 = vmatpush.msra.mxu0 0.0
    %85 = vmatpush.msra.mxu0 0.0
    %86 = vmatpush.msra.mxu0 0.0
    %87 = vmatpush.msra.mxu0 0.0
    %88 = vmatpush.msra.mxu0 0.0
    %89 = vmatpush.msra.mxu0 0.0
    %90 = vmatpush.msra.mxu0 0.0
    %91 = vmatpush.msra.mxu0 0.0
    %92 = vmatpush.msra.mxu0 0.0
    %93 = vmatpush.msra.mxu0 0.0
    %94 = vmatpush.msra.mxu0 0.0
    %95 = vmatpush.msra.mxu0 0.0
    %96 = vmatpush.msra.mxu0 0.0
    %97 = vmatpush.msra.mxu0 0.0
    %v98 = vand.u32 %v81, 4294901760
    %99 = vmatpush.msra.mxu0 %v98
    %v100 = vand.u32 %v68, 4294901760
    %v101 = vsub.f32 %v68, %v100
    %v102 = vand.u32 %v101, 4294901760
    %v103 = vsub.f32 %v101, %v102
    %v104 = vand.u32 %v103, 4294901760
    %105 = vmatmul.f32.gmra.mxu0 %v104
    %v106 = vpop.f32.mrf.mxu0
    %v107 = vadd.f32 %v64, %v106
    %v108 = vand.u32 %v71, 4294901760
    %v109 = vsub.f32 %v71, %v108
    %v110 = vand.u32 %v109, 4294901760
    %v111 = vsub.f32 %v109, %v110
    %v112 = vand.u32 %v111, 4294901760
    %113 = vmatmul.f32.gmra.mxu0 %v112
    %v114 = vpop.f32.mrf.mxu0
    %v115 = vadd.f32 %v64, %v114
    %v116 = vand.u32 %v74, 4294901760
    %v117 = vsub.f32 %v74, %v116
    %v118 = vand.u32 %v117, 4294901760
    %v119 = vsub.f32 %v117, %v118
    %v120 = vand.u32 %v119, 4294901760
    %121 = vmatmul.f32.gmra.mxu0 %v120
    %v122 = vpop.f32.mrf.mxu0
    %v123 = vadd.f32 %v64, %v122
    %v124 = vand.u32 %v77, 4294901760
    %v125 = vsub.f32 %v77, %v124
    %v126 = vand.u32 %v125, 4294901760
    %v127 = vsub.f32 %v125, %v126
    %v128 = vand.u32 %v127, 4294901760
    %129 = vmatmul.f32.gmra.mxu0 %v128
    %v130 = vpop.f32.mrf.mxu0
    %v131 = vadd.f32 %v64, %v130
    %132 = vdwg.mxu0
    %133 = vmatpush.msra.mxu0 0.0
    %134 = vmatpush.msra.mxu0 0.0
    %135 = vmatpush.msra.mxu0 0.0
    %136 = vmatpush.msra.mxu0 0.0
    %137 = vmatpush.msra.mxu0 0.0
    %138 = vmatpush.msra.mxu0 0.0
    %139 = vmatpush.msra.mxu0 0.0
    %140 = vmatpush.msra.mxu0 0.0
    %141 = vmatpush.msra.mxu0 0.0
    %142 = vmatpush.msra.mxu0 0.0
    %143 = vmatpush.msra.mxu0 0.0
    %144 = vmatpush.msra.mxu0 0.0
    %145 = vmatpush.msra.mxu0 0.0
    %146 = vmatpush.msra.mxu0 0.0
    %147 = vmatpush.msra.mxu0 0.0
    %v148 = vand.u32 %v81, 4294901760
    %v149 = vsub.f32 %v81, %v148
    %v150 = vand.u32 %v149, 4294901760
    %v151 = vsub.f32 %v149, %v150
    %v152 = vand.u32 %v151, 4294901760
    %153 = vmatpush.msra.mxu0 %v152
    %v154 = vand.u32 %v68, 4294901760
    %155 = vmatmul.f32.gmra.mxu0 %v154
    %v156 = vpop.f32.mrf.mxu0
    %v157 = vadd.f32 %v107, %v156
    %v158 = vand.u32 %v71, 4294901760
    %159 = vmatmul.f32.gmra.mxu0 %v158
    %v160 = vpop.f32.mrf.mxu0
    %v161 = vadd.f32 %v115, %v160
    %v162 = vand.u32 %v74, 4294901760
    %163 = vmatmul.f32.gmra.mxu0 %v162
    %v164 = vpop.f32.mrf.mxu0
    %v165 = vadd.f32 %v123, %v164
    %v166 = vand.u32 %v77, 4294901760
    %167 = vmatmul.f32.gmra.mxu0 %v166
    %v168 = vpop.f32.mrf.mxu0
    %v169 = vadd.f32 %v131, %v168
    %170 = vdwg.mxu0
    %171 = vmatpush.msra.mxu0 0.0
    %172 = vmatpush.msra.mxu0 0.0
    %173 = vmatpush.msra.mxu0 0.0
    %174 = vmatpush.msra.mxu0 0.0
    %175 = vmatpush.msra.mxu0 0.0
    %176 = vmatpush.msra.mxu0 0.0
    %177 = vmatpush.msra.mxu0 0.0
    %178 = vmatpush.msra.mxu0 0.0
    %179 = vmatpush.msra.mxu0 0.0
    %180 = vmatpush.msra.mxu0 0.0
    %181 = vmatpush.msra.mxu0 0.0
    %182 = vmatpush.msra.mxu0 0.0
    %183 = vmatpush.msra.mxu0 0.0
    %184 = vmatpush.msra.mxu0 0.0
    %185 = vmatpush.msra.mxu0 0.0
    %v186 = vand.u32 %v81, 4294901760
    %v187 = vsub.f32 %v81, %v186
    %188 = vmatpush.msra.mxu0 %v187
    %v189 = vand.u32 %v68, 4294901760
    %v190 = vsub.f32 %v68, %v189
    %191 = vmatmul.f32.gmra.mxu0 %v190
    %v192 = vpop.f32.mrf.mxu0
    %v193 = vadd.f32 %v157, %v192
    %v194 = vand.u32 %v71, 4294901760
    %v195 = vsub.f32 %v71, %v194
    %196 = vmatmul.f32.gmra.mxu0 %v195
    %v197 = vpop.f32.mrf.mxu0
    %v198 = vadd.f32 %v161, %v197
    %v199 = vand.u32 %v74, 4294901760
    %v200 = vsub.f32 %v74, %v199
    %201 = vmatmul.f32.gmra.mxu0 %v200
    %v202 = vpop.f32.mrf.mxu0
    %v203 = vadd.f32 %v165, %v202
    %v204 = vand.u32 %v77, 4294901760
    %v205 = vsub.f32 %v77, %v204
    %206 = vmatmul.f32.gmra.mxu0 %v205
    %v207 = vpop.f32.mrf.mxu0
    %v208 = vadd.f32 %v169, %v207
    %209 = vdwg.mxu0
    %210 = vmatpush.msra.mxu0 0.0
    %211 = vmatpush.msra.mxu0 0.0
    %212 = vmatpush.msra.mxu0 0.0
    %213 = vmatpush.msra.mxu0 0.0
    %214 = vmatpush.msra.mxu0 0.0
    %215 = vmatpush.msra.mxu0 0.0
    %216 = vmatpush.msra.mxu0 0.0
    %217 = vmatpush.msra.mxu0 0.0
    %218 = vmatpush.msra.mxu0 0.0
    %219 = vmatpush.msra.mxu0 0.0
    %220 = vmatpush.msra.mxu0 0.0
    %221 = vmatpush.msra.mxu0 0.0
    %222 = vmatpush.msra.mxu0 0.0
    %223 = vmatpush.msra.mxu0 0.0
    %224 = vmatpush.msra.mxu0 0.0
    %v225 = vand.u32 %v81, 4294901760
    %226 = vmatpush.msra.mxu0 %v225
    %v227 = vand.u32 %v68, 4294901760
    %v228 = vsub.f32 %v68, %v227
    %v229 = vand.u32 %v228, 4294901760
    %230 = vmatmul.f32.gmra.mxu0 %v229
    %v231 = vpop.f32.mrf.mxu0
    %v232 = vadd.f32 %v193, %v231
    %v233 = vand.u32 %v71, 4294901760
    %v234 = vsub.f32 %v71, %v233
    %v235 = vand.u32 %v234, 4294901760
    %236 = vmatmul.f32.gmra.mxu0 %v235
    %v237 = vpop.f32.mrf.mxu0
    %v238 = vadd.f32 %v198, %v237
    %v239 = vand.u32 %v74, 4294901760
    %v240 = vsub.f32 %v74, %v239
    %v241 = vand.u32 %v240, 4294901760
    %242 = vmatmul.f32.gmra.mxu0 %v241
    %v243 = vpop.f32.mrf.mxu0
    %v244 = vadd.f32 %v203, %v243
    %v245 = vand.u32 %v77, 4294901760
    %v246 = vsub.f32 %v77, %v245
    %v247 = vand.u32 %v246, 4294901760
    %248 = vmatmul.f32.gmra.mxu0 %v247
    %v249 = vpop.f32.mrf.mxu0
    %v250 = vadd.f32 %v208, %v249
    %251 = vdwg.mxu0
    %252 = vmatpush.msra.mxu0 0.0
    %253 = vmatpush.msra.mxu0 0.0
    %254 = vmatpush.msra.mxu0 0.0
    %255 = vmatpush.msra.mxu0 0.0
    %256 = vmatpush.msra.mxu0 0.0
    %257 = vmatpush.msra.mxu0 0.0
    %258 = vmatpush.msra.mxu0 0.0
    %259 = vmatpush.msra.mxu0 0.0
    %260 = vmatpush.msra.mxu0 0.0
    %261 = vmatpush.msra.mxu0 0.0
    %262 = vmatpush.msra.mxu0 0.0
    %263 = vmatpush.msra.mxu0 0.0
    %264 = vmatpush.msra.mxu0 0.0
    %265 = vmatpush.msra.mxu0 0.0
    %266 = vmatpush.msra.mxu0 0.0
    %v267 = vand.u32 %v81, 4294901760
    %v268 = vsub.f32 %v81, %v267
    %v269 = vand.u32 %v268, 4294901760
    %270 = vmatpush.msra.mxu0 %v269
    %v271 = vand.u32 %v68, 4294901760
    %272 = vmatmul.f32.gmra.mxu0 %v271
    %v273 = vpop.f32.mrf.mxu0
    %v274 = vadd.f32 %v232, %v273
    %v275 = vand.u32 %v71, 4294901760
    %276 = vmatmul.f32.gmra.mxu0 %v275
    %v277 = vpop.f32.mrf.mxu0
    %v278 = vadd.f32 %v238, %v277
    %v279 = vand.u32 %v74, 4294901760
    %280 = vmatmul.f32.gmra.mxu0 %v279
    %v281 = vpop.f32.mrf.mxu0
    %v282 = vadd.f32 %v244, %v281
    %v283 = vand.u32 %v77, 4294901760
    %284 = vmatmul.f32.gmra.mxu0 %v283
    %v285 = vpop.f32.mrf.mxu0
    %v286 = vadd.f32 %v250, %v285
    %287 = vdwg.mxu0
    %288 = vmatpush.msra.mxu0 0.0
    %289 = vmatpush.msra.mxu0 0.0
    %290 = vmatpush.msra.mxu0 0.0
    %291 = vmatpush.msra.mxu0 0.0
    %292 = vmatpush.msra.mxu0 0.0
    %293 = vmatpush.msra.mxu0 0.0
    %294 = vmatpush.msra.mxu0 0.0
    %295 = vmatpush.msra.mxu0 0.0
    %296 = vmatpush.msra.mxu0 0.0
    %297 = vmatpush.msra.mxu0 0.0
    %298 = vmatpush.msra.mxu0 0.0
    %299 = vmatpush.msra.mxu0 0.0
    %300 = vmatpush.msra.mxu0 0.0
    %301 = vmatpush.msra.mxu0 0.0
    %302 = vmatpush.msra.mxu0 0.0
    %v303 = vand.u32 %v81, 4294901760
    %304 = vmatpush.msra.mxu0 %v303
    %v305 = vand.u32 %v68, 4294901760
    %306 = vmatmul.f32.gmra.mxu0 %v305
    %v307 = vpop.f32.mrf.mxu0
    %v308 = vadd.f32 %v274, %v307
    %v309 = vand.u32 %v71, 4294901760
    %310 = vmatmul.f32.gmra.mxu0 %v309
    %v311 = vpop.f32.mrf.mxu0
    %v312 = vadd.f32 %v278, %v311
    %v313 = vand.u32 %v74, 4294901760
    %314 = vmatmul.f32.gmra.mxu0 %v313
    %v315 = vpop.f32.mrf.mxu0
    %v316 = vadd.f32 %v282, %v315
    %v317 = vand.u32 %v77, 4294901760
    %318 = vmatmul.f32.gmra.mxu0 %v317
    %v319 = vpop.f32.mrf.mxu0
    %v320 = vadd.f32 %v286, %v319
    %321 = vdwg.mxu0
    %v322 = vmul.f32 %v308, 0.5
    %v323 = vmul.f32 %v312, 0.5
    %v324 = vmul.f32 %v316, 0.5
    %v325 = vmul.f32 %v320, 0.5
    %v326 = vmul.f32 %v308, 0.70710677
    %v327 = vmul.f32 %v312, 0.70710677
    %v328 = vmul.f32 %v316, 0.70710677
    %v329 = vmul.f32 %v320, 0.70710677
    %v330 = vand.u32 2147483647, %v326
    %v331 = vand.u32 2147483647, %v327
    %v332 = vand.u32 2147483647, %v328
    %v333 = vand.u32 2147483647, %v329
    %v334 = vmul.f32 %v330, 0.3275911
    %v335 = vmul.f32 %v331, 0.3275911
    %v336 = vmul.f32 %v332, 0.3275911
    %v337 = vmul.f32 %v333, 0.3275911
    %v338 = vadd.f32 %v334, 1.0
    %v339 = vadd.f32 %v335, 1.0
    %v340 = vadd.f32 %v336, 1.0
    %v341 = vadd.f32 %v337, 1.0
    %v342 = vrcp.pop %v338
    %v343 = vmul.f32 %v338, %v342
    %v344 = vsub.f32 1.0, %v343
    %v345 = vmul.f32 %v342, %v344
    %v346 = vadd.f32 %v342, %v345
    %vm347 = vweird.f32 %v338
    %vm348 = vweird.f32 %v342
    %vm349 = vmor %vm347, %vm348
    %v350 = vsel %vm349, %v342, %v346
    %v351 = vand.u32 2147483647, %v338
    %vm352 = vcmp.eq.f32.partialorder %v351, 8.507059e+37
    %v353 = vand.u32 %v338, 2147483648
    %v354 = vor.u32 1.1754944e-38, %v353
    %v355 = vsel %vm352, %v354, %v350
    %v356 = vmul.f32 1.0, %v355
    %v357 = vrcp.pop %v339
    %v358 = vmul.f32 %v339, %v357
    %v359 = vsub.f32 1.0, %v358
    %v360 = vmul.f32 %v357, %v359
    %v361 = vadd.f32 %v357, %v360
    %vm362 = vweird.f32 %v339
    %vm363 = vweird.f32 %v357
    %vm364 = vmor %vm362, %vm363
    %v365 = vsel %vm364, %v357, %v361
    %v366 = vand.u32 2147483647, %v339
    %vm367 = vcmp.eq.f32.partialorder %v366, 8.507059e+37
    %v368 = vand.u32 %v339, 2147483648
    %v369 = vor.u32 1.1754944e-38, %v368
    %v370 = vsel %vm367, %v369, %v365
    %v371 = vmul.f32 1.0, %v370
    %v372 = vrcp.pop %v340
    %v373 = vmul.f32 %v340, %v372
    %v374 = vsub.f32 1.0, %v373
    %v375 = vmul.f32 %v372, %v374
    %v376 = vadd.f32 %v372, %v375
    %vm377 = vweird.f32 %v340
    %vm378 = vweird.f32 %v372
    %vm379 = vmor %vm377, %vm378
    %v380 = vsel %vm379, %v372, %v376
    %v381 = vand.u32 2147483647, %v340
    %vm382 = vcmp.eq.f32.partialorder %v381, 8.507059e+37
    %v383 = vand.u32 %v340, 2147483648
    %v384 = vor.u32 1.1754944e-38, %v383
    %v385 = vsel %vm382, %v384, %v380
    %v386 = vmul.f32 1.0, %v385
    %v387 = vrcp.pop %v341
    %v388 = vmul.f32 %v341, %v387
    %v389 = vsub.f32 1.0, %v388
    %v390 = vmul.f32 %v387, %v389
    %v391 = vadd.f32 %v387, %v390
    %vm392 = vweird.f32 %v341
    %vm393 = vweird.f32 %v387
    %vm394 = vmor %vm392, %vm393
    %v395 = vsel %vm394, %v387, %v391
    %v396 = vand.u32 2147483647, %v341
    %vm397 = vcmp.eq.f32.partialorder %v396, 8.507059e+37
    %v398 = vand.u32 %v341, 2147483648
    %v399 = vor.u32 1.1754944e-38, %v398
    %v400 = vsel %vm397, %v399, %v395
    %v401 = vmul.f32 1.0, %v400
    %v402 = vmul.f32 %v356, 1.0614054
    %v403 = vmul.f32 %v371, 1.0614054
    %v404 = vmul.f32 %v386, 1.0614054
    %v405 = vmul.f32 %v401, 1.0614054
    %v406 = vadd.f32 %v402, -1.4531521
    %v407 = vadd.f32 %v403, -1.4531521
    %v408 = vadd.f32 %v404, -1.4531521
    %v409 = vadd.f32 %v405, -1.4531521
    %v410 = vmul.f32 %v356, %v406
    %v411 = vmul.f32 %v371, %v407
    %v412 = vmul.f32 %v386, %v408
    %v413 = vmul.f32 %v401, %v409
    %v414 = vadd.f32 %v410, 1.4214138
    %v415 = vadd.f32 %v411, 1.4214138
    %v416 = vadd.f32 %v412, 1.4214138
    %v417 = vadd.f32 %v413, 1.4214138
    %v418 = vmul.f32 %v356, %v414
    %v419 = vmul.f32 %v371, %v415
    %v420 = vmul.f32 %v386, %v416
    %v421 = vmul.f32 %v401, %v417
    %v422 = vadd.f32 %v418, -0.28449672
    %v423 = vadd.f32 %v419, -0.28449672
    %v424 = vadd.f32 %v420, -0.28449672
    %v425 = vadd.f32 %v421, -0.28449672
    %v426 = vmul.f32 %v356, %v422
    %v427 = vmul.f32 %v371, %v423
    %v428 = vmul.f32 %v386, %v424
    %v429 = vmul.f32 %v401, %v425
    %v430 = vadd.f32 %v426, 0.2548296
    %v431 = vadd.f32 %v427, 0.2548296
    %v432 = vadd.f32 %v428, 0.2548296
    %v433 = vadd.f32 %v429, 0.2548296
    %v434 = vmul.f32 %v356, %v430
    %v435 = vmul.f32 %v371, %v431
    %v436 = vmul.f32 %v386, %v432
    %v437 = vmul.f32 %v401, %v433
    %v438 = vmul.f32 %v330, %v330
    %v439 = vmul.f32 %v331, %v331
    %v440 = vmul.f32 %v332, %v332
    %v441 = vmul.f32 %v333, %v333
    %v442 = vsub.f32 0.0, %v438
    %v443 = vsub.f32 0.0, %v439
    %v444 = vsub.f32 0.0, %v440
    %v445 = vsub.f32 0.0, %v441
    %v446 = vmul.f32 %v442, 1.442695
    %v447 = vpow.pop %v446
    %v448 = vmul.f32 %v443, 1.442695
    %v449 = vpow.pop %v448
    %v450 = vmul.f32 %v444, 1.442695
    %v451 = vpow.pop %v450
    %v452 = vmul.f32 %v445, 1.442695
    %v453 = vpow.pop %v452
    %v454 = vmul.f32 %v434, %v447
    %v455 = vmul.f32 %v435, %v449
    %v456 = vmul.f32 %v436, %v451
    %v457 = vmul.f32 %v437, %v453
    %v458 = vsub.f32 1.0, %v454
    %v459 = vsub.f32 1.0, %v455
    %v460 = vsub.f32 1.0, %v456
    %v461 = vsub.f32 1.0, %v457
    %vm462 = vcmp.ge.f32.partialorder %v326, 0.0
    %vm463 = vcmp.ge.f32.partialorder %v327, 0.0
    %vm464 = vcmp.ge.f32.partialorder %v328, 0.0
    %vm465 = vcmp.ge.f32.partialorder %v329, 0.0
    %v466 = vsub.f32 0.0, %v458
    %v467 = vsub.f32 0.0, %v459
    %v468 = vsub.f32 0.0, %v460
    %v469 = vsub.f32 0.0, %v461
    %v470 = vsel %vm462, %v458, %v466
    %v471 = vsel %vm463, %v459, %v467
    %v472 = vsel %vm464, %v460, %v468
    %v473 = vsel %vm465, %v461, %v469
    %v474 = vadd.f32 %v470, 1.0
    %v475 = vadd.f32 %v471, 1.0
    %v476 = vadd.f32 %v472, 1.0
    %v477 = vadd.f32 %v473, 1.0
    %v478 = vmul.f32 %v322, %v474
    %v479 = vmul.f32 %v323, %v475
    %v480 = vmul.f32 %v324, %v476
    %v481 = vmul.f32 %v325, %v477
    %vm486 = vcmask 1040384
    %v487 = vrot.slane %v478, 7
    %v488 = vrot.slane %v479, 7
    %v489 = vsel %vm486, %v487, %v488
    %v490 = vrot.slane %v480, 7
    %v491 = vrot.slane %v481, 7
    %v492 = vsel %vm486, %v490, %v491
    %v499 = vsel %vm486, 0.0, %v487
    %v500 = vsel %vm486, 0.0, %v490
    %v501 = vsel %vm486, %v488, 0.0
    %v502 = vsel %vm486, %v491, 0.0
    %vm507 = vcmask 1046528
    %v508 = vrot.slane %v499, 1
    %v509 = vrot.slane %v489, 1
    %v510 = vsel %vm507, %v508, %v509
    %v511 = vrot.slane %v501, 1
    %v512 = vsel %vm507, %v509, %v511
    %v513 = vrot.slane %v500, 1
    %v514 = vrot.slane %v492, 1
    %v515 = vsel %vm507, %v513, %v514
    %v516 = vrot.slane %v502, 1
    %v517 = vsel %vm507, %v514, %v516
    %518 = vrot.lane.b32.xlu0 %v510, 32
    %v519 = vpop.permute.xlu0 %518
    %520 = vrot.lane.b32.xlu0 %v512, 32
    %v521 = vpop.permute.xlu0 %520
    %522 = vrot.lane.b32.xlu0 %v515, 32
    %v523 = vpop.permute.xlu0 %522
    %524 = vrot.lane.b32.xlu0 %v517, 32
    %v525 = vpop.permute.xlu0 %524
    %vm530 = vcmask 1045504
    %v531 = vrot.slane %v499, 2
    %v532 = vrot.slane %v489, 2
    %v533 = vsel %vm530, %v531, %v532
    %v534 = vrot.slane %v501, 2
    %v535 = vsel %vm530, %v532, %v534
    %v536 = vrot.slane %v500, 2
    %v537 = vrot.slane %v492, 2
    %v538 = vsel %vm530, %v536, %v537
    %v539 = vrot.slane %v502, 2
    %v540 = vsel %vm530, %v537, %v539
    %541 = vrot.lane.b32.xlu0 %v533, 64
    %v542 = vpop.permute.xlu0 %541
    %543 = vrot.lane.b32.xlu0 %v535, 64
    %v544 = vpop.permute.xlu0 %543
    %545 = vrot.lane.b32.xlu0 %v538, 64
    %v546 = vpop.permute.xlu0 %545
    %547 = vrot.lane.b32.xlu0 %v540, 64
    %v548 = vpop.permute.xlu0 %547
    %vm553 = vcmask 261120
    %v554 = vsel %vm553, %v499, %v519
    %v555 = vsel %vm553, %v489, %v521
    %v556 = vsel %vm553, %v500, %v523
    %v557 = vsel %vm553, %v492, %v525
    %vm558 = vcmask 523264
    %v559 = vsel %vm558, %v554, %v542
    %v560 = vsel %vm558, %v555, %v544
    %v561 = vsel %vm558, %v556, %v546
    %v562 = vsel %vm558, %v557, %v548
    %v563 = vld [vmem:[%s3] sm:$0xff]
    %v564 = vld [vmem:[%s3 + $0x8] sm:$0xff]
    %v565 = vld [vmem:[%s3 + $0x10] sm:$0xff]
    %v566 = vld [vmem:[%s3 + $0x18] sm:$0xff]
    %v567 = vld [vmem:[%s3 + $0x20] sm:$0xff]
    %v568 = vld [vmem:[%s3 + $0x28] sm:$0xff]
    %v569 = vld [vmem:[%s3 + $0x30] sm:$0xff]
    %v570 = vld [vmem:[%s3 + $0x38] sm:$0xff]
    %v571 = vld [vmem:[%s3 + $0x40] sm:$0xff]
    %v572 = vld [vmem:[%s3 + $0x48] sm:$0xff]
    %v573 = vld [vmem:[%s3 + $0x50] sm:$0xff]
    %v574 = vld [vmem:[%s3 + $0x58] sm:$0xff]
    %v575 = vld [vmem:[%s4] sm:$0x1]
    %v577 = vperm.slane %v575, 0
    %vm579 = vcmask 785408
    %v581 = vsel %vm579, %v559, 0
    %v584 = vsel %vm579, %v560, 0
    %v587 = vsel %vm579, %v561, 0
    %v590 = vsel %vm579, %v562, 0
    %592 = vmatpush.msra.mxu0 0.0
    %593 = vmatpush.msra.mxu0 0.0
    %594 = vmatpush.msra.mxu0 0.0
    %595 = vmatpush.msra.mxu0 0.0
    %v596 = vand.u32 %v574, 4294901760
    %597 = vmatpush.msra.mxu0 %v596
    %v598 = vand.u32 %v573, 4294901760
    %599 = vmatpush.msra.mxu0 %v598
    %v600 = vand.u32 %v572, 4294901760
    %601 = vmatpush.msra.mxu0 %v600
    %v602 = vand.u32 %v571, 4294901760
    %603 = vmatpush.msra.mxu0 %v602
    %v604 = vand.u32 %v570, 4294901760
    %605 = vmatpush.msra.mxu0 %v604
    %v606 = vand.u32 %v569, 4294901760
    %607 = vmatpush.msra.mxu0 %v606
    %v608 = vand.u32 %v568, 4294901760
    %609 = vmatpush.msra.mxu0 %v608
    %v610 = vand.u32 %v567, 4294901760
    %611 = vmatpush.msra.mxu0 %v610
    %v612 = vand.u32 %v566, 4294901760
    %613 = vmatpush.msra.mxu0 %v612
    %v614 = vand.u32 %v565, 4294901760
    %615 = vmatpush.msra.mxu0 %v614
    %v616 = vand.u32 %v564, 4294901760
    %617 = vmatpush.msra.mxu0 %v616
    %v618 = vand.u32 %v563, 4294901760
    %619 = vmatpush.msra.mxu0 %v618
    %v620 = vand.u32 %v581, 4294901760
    %v621 = vsub.f32 %v581, %v620
    %v622 = vand.u32 %v621, 4294901760
    %v623 = vsub.f32 %v621, %v622
    %v624 = vand.u32 %v623, 4294901760
    %625 = vmatmul.f32.gmra.mxu0 %v624
    %v626 = vpop.f32.mrf.mxu0
    %v627 = vadd.f32 %v577, %v626
    %v628 = vand.u32 %v584, 4294901760
    %v629 = vsub.f32 %v584, %v628
    %v630 = vand.u32 %v629, 4294901760
    %v631 = vsub.f32 %v629, %v630
    %v632 = vand.u32 %v631, 4294901760
    %633 = vmatmul.f32.gmra.mxu0 %v632
    %v634 = vpop.f32.mrf.mxu0
    %v635 = vadd.f32 %v577, %v634
    %v636 = vand.u32 %v587, 4294901760
    %v637 = vsub.f32 %v587, %v636
    %v638 = vand.u32 %v637, 4294901760
    %v639 = vsub.f32 %v637, %v638
    %v640 = vand.u32 %v639, 4294901760
    %641 = vmatmul.f32.gmra.mxu0 %v640
    %v642 = vpop.f32.mrf.mxu0
    %v643 = vadd.f32 %v577, %v642
    %v644 = vand.u32 %v590, 4294901760
    %v645 = vsub.f32 %v590, %v644
    %v646 = vand.u32 %v645, 4294901760
    %v647 = vsub.f32 %v645, %v646
    %v648 = vand.u32 %v647, 4294901760
    %649 = vmatmul.f32.gmra.mxu0 %v648
    %v650 = vpop.f32.mrf.mxu0
    %v651 = vadd.f32 %v577, %v650
    %652 = vdwg.mxu0
    %653 = vmatpush.msra.mxu0 0.0
    %654 = vmatpush.msra.mxu0 0.0
    %655 = vmatpush.msra.mxu0 0.0
    %656 = vmatpush.msra.mxu0 0.0
    %v657 = vand.u32 %v574, 4294901760
    %v658 = vsub.f32 %v574, %v657
    %v659 = vand.u32 %v658, 4294901760
    %v660 = vsub.f32 %v658, %v659
    %v661 = vand.u32 %v660, 4294901760
    %662 = vmatpush.msra.mxu0 %v661
    %v663 = vand.u32 %v573, 4294901760
    %v664 = vsub.f32 %v573, %v663
    %v665 = vand.u32 %v664, 4294901760
    %v666 = vsub.f32 %v664, %v665
    %v667 = vand.u32 %v666, 4294901760
    %668 = vmatpush.msra.mxu0 %v667
    %v669 = vand.u32 %v572, 4294901760
    %v670 = vsub.f32 %v572, %v669
    %v671 = vand.u32 %v670, 4294901760
    %v672 = vsub.f32 %v670, %v671
    %v673 = vand.u32 %v672, 4294901760
    %674 = vmatpush.msra.mxu0 %v673
    %v675 = vand.u32 %v571, 4294901760
    %v676 = vsub.f32 %v571, %v675
    %v677 = vand.u32 %v676, 4294901760
    %v678 = vsub.f32 %v676, %v677
    %v679 = vand.u32 %v678, 4294901760
    %680 = vmatpush.msra.mxu0 %v679
    %v681 = vand.u32 %v570, 4294901760
    %v682 = vsub.f32 %v570, %v681
    %v683 = vand.u32 %v682, 4294901760
    %v684 = vsub.f32 %v682, %v683
    %v685 = vand.u32 %v684, 4294901760
    %686 = vmatpush.msra.mxu0 %v685
    %v687 = vand.u32 %v569, 4294901760
    %v688 = vsub.f32 %v569, %v687
    %v689 = vand.u32 %v688, 4294901760
    %v690 = vsub.f32 %v688, %v689
    %v691 = vand.u32 %v690, 4294901760
    %692 = vmatpush.msra.mxu0 %v691
    %v693 = vand.u32 %v568, 4294901760
    %v694 = vsub.f32 %v568, %v693
    %v695 = vand.u32 %v694, 4294901760
    %v696 = vsub.f32 %v694, %v695
    %v697 = vand.u32 %v696, 4294901760
    %698 = vmatpush.msra.mxu0 %v697
    %v699 = vand.u32 %v567, 4294901760
    %v700 = vsub.f32 %v567, %v699
    %v701 = vand.u32 %v700, 4294901760
    %v702 = vsub.f32 %v700, %v701
    %v703 = vand.u32 %v702, 4294901760
    %704 = vmatpush.msra.mxu0 %v703
    %v705 = vand.u32 %v566, 4294901760
    %v706 = vsub.f32 %v566, %v705
    %v707 = vand.u32 %v706, 4294901760
    %v708 = vsub.f32 %v706, %v707
    %v709 = vand.u32 %v708, 4294901760
    %710 = vmatpush.msra.mxu0 %v709
    %v711 = vand.u32 %v565, 4294901760
    %v712 = vsub.f32 %v565, %v711
    %v713 = vand.u32 %v712, 4294901760
    %v714 = vsub.f32 %v712, %v713
    %v715 = vand.u32 %v714, 4294901760
    %716 = vmatpush.msra.mxu0 %v715
    %v717 = vand.u32 %v564, 4294901760
    %v718 = vsub.f32 %v564, %v717
    %v719 = vand.u32 %v718, 4294901760
    %v720 = vsub.f32 %v718, %v719
    %v721 = vand.u32 %v720, 4294901760
    %722 = vmatpush.msra.mxu0 %v721
    %v723 = vand.u32 %v563, 4294901760
    %v724 = vsub.f32 %v563, %v723
    %v725 = vand.u32 %v724, 4294901760
    %v726 = vsub.f32 %v724, %v725
    %v727 = vand.u32 %v726, 4294901760
    %728 = vmatpush.msra.mxu0 %v727
    %v729 = vand.u32 %v581, 4294901760
    %730 = vmatmul.f32.gmra.mxu0 %v729
    %v731 = vpop.f32.mrf.mxu0
    %v732 = vadd.f32 %v627, %v731
    %v733 = vand.u32 %v584, 4294901760
    %734 = vmatmul.f32.gmra.mxu0 %v733
    %v735 = vpop.f32.mrf.mxu0
    %v736 = vadd.f32 %v635, %v735
    %v737 = vand.u32 %v587, 4294901760
    %738 = vmatmul.f32.gmra.mxu0 %v737
    %v739 = vpop.f32.mrf.mxu0
    %v740 = vadd.f32 %v643, %v739
    %v741 = vand.u32 %v590, 4294901760
    %742 = vmatmul.f32.gmra.mxu0 %v741
    %v743 = vpop.f32.mrf.mxu0
    %v744 = vadd.f32 %v651, %v743
    %745 = vdwg.mxu0
    %746 = vmatpush.msra.mxu0 0.0
    %747 = vmatpush.msra.mxu0 0.0
    %748 = vmatpush.msra.mxu0 0.0
    %749 = vmatpush.msra.mxu0 0.0
    %v750 = vand.u32 %v574, 4294901760
    %v751 = vsub.f32 %v574, %v750
    %752 = vmatpush.msra.mxu0 %v751
    %v753 = vand.u32 %v573, 4294901760
    %v754 = vsub.f32 %v573, %v753
    %755 = vmatpush.msra.mxu0 %v754
    %v756 = vand.u32 %v572, 4294901760
    %v757 = vsub.f32 %v572, %v756
    %758 = vmatpush.msra.mxu0 %v757
    %v759 = vand.u32 %v571, 4294901760
    %v760 = vsub.f32 %v571, %v759
    %761 = vmatpush.msra.mxu0 %v760
    %v762 = vand.u32 %v570, 4294901760
    %v763 = vsub.f32 %v570, %v762
    %764 = vmatpush.msra.mxu0 %v763
    %v765 = vand.u32 %v569, 4294901760
    %v766 = vsub.f32 %v569, %v765
    %767 = vmatpush.msra.mxu0 %v766
    %v768 = vand.u32 %v568, 4294901760
    %v769 = vsub.f32 %v568, %v768
    %770 = vmatpush.msra.mxu0 %v769
    %v771 = vand.u32 %v567, 4294901760
    %v772 = vsub.f32 %v567, %v771
    %773 = vmatpush.msra.mxu0 %v772
    %v774 = vand.u32 %v566, 4294901760
    %v775 = vsub.f32 %v566, %v774
    %776 = vmatpush.msra.mxu0 %v775
    %v777 = vand.u32 %v565, 4294901760
    %v778 = vsub.f32 %v565, %v777
    %779 = vmatpush.msra.mxu0 %v778
    %v780 = vand.u32 %v564, 4294901760
    %v781 = vsub.f32 %v564, %v780
    %782 = vmatpush.msra.mxu0 %v781
    %v783 = vand.u32 %v563, 4294901760
    %v784 = vsub.f32 %v563, %v783
    %785 = vmatpush.msra.mxu0 %v784
    %v786 = vand.u32 %v581, 4294901760
    %v787 = vsub.f32 %v581, %v786
    %788 = vmatmul.f32.gmra.mxu0 %v787
    %v789 = vpop.f32.mrf.mxu0
    %v790 = vadd.f32 %v732, %v789
    %v791 = vand.u32 %v584, 4294901760
    %v792 = vsub.f32 %v584, %v791
    %793 = vmatmul.f32.gmra.mxu0 %v792
    %v794 = vpop.f32.mrf.mxu0
    %v795 = vadd.f32 %v736, %v794
    %v796 = vand.u32 %v587, 4294901760
    %v797 = vsub.f32 %v587, %v796
    %798 = vmatmul.f32.gmra.mxu0 %v797
    %v799 = vpop.f32.mrf.mxu0
    %v800 = vadd.f32 %v740, %v799
    %v801 = vand.u32 %v590, 4294901760
    %v802 = vsub.f32 %v590, %v801
    %803 = vmatmul.f32.gmra.mxu0 %v802
    %v804 = vpop.f32.mrf.mxu0
    %v805 = vadd.f32 %v744, %v804
    %806 = vdwg.mxu0
    %807 = vmatpush.msra.mxu0 0.0
    %808 = vmatpush.msra.mxu0 0.0
    %809 = vmatpush.msra.mxu0 0.0
    %810 = vmatpush.msra.mxu0 0.0
    %v811 = vand.u32 %v574, 4294901760
    %812 = vmatpush.msra.mxu0 %v811
    %v813 = vand.u32 %v573, 4294901760
    %814 = vmatpush.msra.mxu0 %v813
    %v815 = vand.u32 %v572, 4294901760
    %816 = vmatpush.msra.mxu0 %v815
    %v817 = vand.u32 %v571, 4294901760
    %818 = vmatpush.msra.mxu0 %v817
    %v819 = vand.u32 %v570, 4294901760
    %820 = vmatpush.msra.mxu0 %v819
    %v821 = vand.u32 %v569, 4294901760
    %822 = vmatpush.msra.mxu0 %v821
    %v823 = vand.u32 %v568, 4294901760
    %824 = vmatpush.msra.mxu0 %v823
    %v825 = vand.u32 %v567, 4294901760
    %826 = vmatpush.msra.mxu0 %v825
    %v827 = vand.u32 %v566, 4294901760
    %828 = vmatpush.msra.mxu0 %v827
    %v829 = vand.u32 %v565, 4294901760
    %830 = vmatpush.msra.mxu0 %v829
    %v831 = vand.u32 %v564, 4294901760
    %832 = vmatpush.msra.mxu0 %v831
    %v833 = vand.u32 %v563, 4294901760
    %834 = vmatpush.msra.mxu0 %v833
    %v835 = vand.u32 %v581, 4294901760
    %v836 = vsub.f32 %v581, %v835
    %v837 = vand.u32 %v836, 4294901760
    %838 = vmatmul.f32.gmra.mxu0 %v837
    %v839 = vpop.f32.mrf.mxu0
    %v840 = vadd.f32 %v790, %v839
    %v841 = vand.u32 %v584, 4294901760
    %v842 = vsub.f32 %v584, %v841
    %v843 = vand.u32 %v842, 4294901760
    %844 = vmatmul.f32.gmra.mxu0 %v843
    %v845 = vpop.f32.mrf.mxu0
    %v846 = vadd.f32 %v795, %v845
    %v847 = vand.u32 %v587, 4294901760
    %v848 = vsub.f32 %v587, %v847
    %v849 = vand.u32 %v848, 4294901760
    %850 = vmatmul.f32.gmra.mxu0 %v849
    %v851 = vpop.f32.mrf.mxu0
    %v852 = vadd.f32 %v800, %v851
    %v853 = vand.u32 %v590, 4294901760
    %v854 = vsub.f32 %v590, %v853
    %v855 = vand.u32 %v854, 4294901760
    %856 = vmatmul.f32.gmra.mxu0 %v855
    %v857 = vpop.f32.mrf.mxu0
    %v858 = vadd.f32 %v805, %v857
    %859 = vdwg.mxu0
    %860 = vmatpush.msra.mxu0 0.0
    %861 = vmatpush.msra.mxu0 0.0
    %862 = vmatpush.msra.mxu0 0.0
    %863 = vmatpush.msra.mxu0 0.0
    %v864 = vand.u32 %v574, 4294901760
    %v865 = vsub.f32 %v574, %v864
    %v866 = vand.u32 %v865, 4294901760
    %867 = vmatpush.msra.mxu0 %v866
    %v868 = vand.u32 %v573, 4294901760
    %v869 = vsub.f32 %v573, %v868
    %v870 = vand.u32 %v869, 4294901760
    %871 = vmatpush.msra.mxu0 %v870
    %v872 = vand.u32 %v572, 4294901760
    %v873 = vsub.f32 %v572, %v872
    %v874 = vand.u32 %v873, 4294901760
    %875 = vmatpush.msra.mxu0 %v874
    %v876 = vand.u32 %v571, 4294901760
    %v877 = vsub.f32 %v571, %v876
    %v878 = vand.u32 %v877, 4294901760
    %879 = vmatpush.msra.mxu0 %v878
    %v880 = vand.u32 %v570, 4294901760
    %v881 = vsub.f32 %v570, %v880
    %v882 = vand.u32 %v881, 4294901760
    %883 = vmatpush.msra.mxu0 %v882
    %v884 = vand.u32 %v569, 4294901760
    %v885 = vsub.f32 %v569, %v884
    %v886 = vand.u32 %v885, 4294901760
    %887 = vmatpush.msra.mxu0 %v886
    %v888 = vand.u32 %v568, 4294901760
    %v889 = vsub.f32 %v568, %v888
    %v890 = vand.u32 %v889, 4294901760
    %891 = vmatpush.msra.mxu0 %v890
    %v892 = vand.u32 %v567, 4294901760
    %v893 = vsub.f32 %v567, %v892
    %v894 = vand.u32 %v893, 4294901760
    %895 = vmatpush.msra.mxu0 %v894
    %v896 = vand.u32 %v566, 4294901760
    %v897 = vsub.f32 %v566, %v896
    %v898 = vand.u32 %v897, 4294901760
    %899 = vmatpush.msra.mxu0 %v898
    %v900 = vand.u32 %v565, 4294901760
    %v901 = vsub.f32 %v565, %v900
    %v902 = vand.u32 %v901, 4294901760
    %903 = vmatpush.msra.mxu0 %v902
    %v904 = vand.u32 %v564, 4294901760
    %v905 = vsub.f32 %v564, %v904
    %v906 = vand.u32 %v905, 4294901760
    %907 = vmatpush.msra.mxu0 %v906
    %v908 = vand.u32 %v563, 4294901760
    %v909 = vsub.f32 %v563, %v908
    %v910 = vand.u32 %v909, 4294901760
    %911 = vmatpush.msra.mxu0 %v910
    %v912 = vand.u32 %v581, 4294901760
    %913 = vmatmul.f32.gmra.mxu0 %v912
    %v914 = vpop.f32.mrf.mxu0
    %v915 = vadd.f32 %v840, %v914
    %v916 = vand.u32 %v584, 4294901760
    %917 = vmatmul.f32.gmra.mxu0 %v916
    %v918 = vpop.f32.mrf.mxu0
    %v919 = vadd.f32 %v846, %v918
    %v920 = vand.u32 %v587, 4294901760
    %921 = vmatmul.f32.gmra.mxu0 %v920
    %v922 = vpop.f32.mrf.mxu0
    %v923 = vadd.f32 %v852, %v922
    %v924 = vand.u32 %v590, 4294901760
    %925 = vmatmul.f32.gmra.mxu0 %v924
    %v926 = vpop.f32.mrf.mxu0
    %v927 = vadd.f32 %v858, %v926
    %928 = vdwg.mxu0
    %929 = vmatpush.msra.mxu0 0.0
    %930 = vmatpush.msra.mxu0 0.0
    %931 = vmatpush.msra.mxu0 0.0
    %932 = vmatpush.msra.mxu0 0.0
    %v933 = vand.u32 %v574, 4294901760
    %934 = vmatpush.msra.mxu0 %v933
    %v935 = vand.u32 %v573, 4294901760
    %936 = vmatpush.msra.mxu0 %v935
    %v937 = vand.u32 %v572, 4294901760
    %938 = vmatpush.msra.mxu0 %v937
    %v939 = vand.u32 %v571, 4294901760
    %940 = vmatpush.msra.mxu0 %v939
    %v941 = vand.u32 %v570, 4294901760
    %942 = vmatpush.msra.mxu0 %v941
    %v943 = vand.u32 %v569, 4294901760
    %944 = vmatpush.msra.mxu0 %v943
    %v945 = vand.u32 %v568, 4294901760
    %946 = vmatpush.msra.mxu0 %v945
    %v947 = vand.u32 %v567, 4294901760
    %948 = vmatpush.msra.mxu0 %v947
    %v949 = vand.u32 %v566, 4294901760
    %950 = vmatpush.msra.mxu0 %v949
    %v951 = vand.u32 %v565, 4294901760
    %952 = vmatpush.msra.mxu0 %v951
    %v953 = vand.u32 %v564, 4294901760
    %954 = vmatpush.msra.mxu0 %v953
    %v955 = vand.u32 %v563, 4294901760
    %956 = vmatpush.msra.mxu0 %v955
    %v957 = vand.u32 %v581, 4294901760
    %958 = vmatmul.f32.gmra.mxu0 %v957
    %v959 = vpop.f32.mrf.mxu0
    %v960 = vadd.f32 %v915, %v959
    %v961 = vand.u32 %v584, 4294901760
    %962 = vmatmul.f32.gmra.mxu0 %v961
    %v963 = vpop.f32.mrf.mxu0
    %v964 = vadd.f32 %v919, %v963
    %v965 = vand.u32 %v587, 4294901760
    %966 = vmatmul.f32.gmra.mxu0 %v965
    %v967 = vpop.f32.mrf.mxu0
    %v968 = vadd.f32 %v923, %v967
    %v969 = vand.u32 %v590, 4294901760
    %970 = vmatmul.f32.gmra.mxu0 %v969
    %v971 = vpop.f32.mrf.mxu0
    %v972 = vadd.f32 %v927, %v971
    %973 = vdwg.mxu0
    %v974 = vmul.f32 %v960, 0.5
    %v975 = vmul.f32 %v964, 0.5
    %v976 = vmul.f32 %v968, 0.5
    %v977 = vmul.f32 %v972, 0.5
    %v978 = vmul.f32 %v960, 0.70710677
    %v979 = vmul.f32 %v964, 0.70710677
    %v980 = vmul.f32 %v968, 0.70710677
    %v981 = vmul.f32 %v972, 0.70710677
    %v982 = vand.u32 2147483647, %v978
    %v983 = vand.u32 2147483647, %v979
    %v984 = vand.u32 2147483647, %v980
    %v985 = vand.u32 2147483647, %v981
    %v986 = vmul.f32 %v982, 0.3275911
    %v987 = vmul.f32 %v983, 0.3275911
    %v988 = vmul.f32 %v984, 0.3275911
    %v989 = vmul.f32 %v985, 0.3275911
    %v990 = vadd.f32 %v986, 1.0
    %v991 = vadd.f32 %v987, 1.0
    %v992 = vadd.f32 %v988, 1.0
    %v993 = vadd.f32 %v989, 1.0
    %v994 = vrcp.pop %v990
    %v995 = vmul.f32 %v990, %v994
    %v996 = vsub.f32 1.0, %v995
    %v997 = vmul.f32 %v994, %v996
    %v998 = vadd.f32 %v994, %v997
    %vm999 = vweird.f32 %v990
    %vm1000 = vweird.f32 %v994
    %vm1001 = vmor %vm999, %vm1000
    %v1002 = vsel %vm1001, %v994, %v998
    %v1003 = vand.u32 2147483647, %v990
    %vm1004 = vcmp.eq.f32.partialorder %v1003, 8.507059e+37
    %v1005 = vand.u32 %v990, 2147483648
    %v1006 = vor.u32 1.1754944e-38, %v1005
    %v1007 = vsel %vm1004, %v1006, %v1002
    %v1008 = vmul.f32 1.0, %v1007
    %v1009 = vrcp.pop %v991
    %v1010 = vmul.f32 %v991, %v1009
    %v1011 = vsub.f32 1.0, %v1010
    %v1012 = vmul.f32 %v1009, %v1011
    %v1013 = vadd.f32 %v1009, %v1012
    %vm1014 = vweird.f32 %v991
    %vm1015 = vweird.f32 %v1009
    %vm1016 = vmor %vm1014, %vm1015
    %v1017 = vsel %vm1016, %v1009, %v1013
    %v1018 = vand.u32 2147483647, %v991
    %vm1019 = vcmp.eq.f32.partialorder %v1018, 8.507059e+37
    %v1020 = vand.u32 %v991, 2147483648
    %v1021 = vor.u32 1.1754944e-38, %v1020
    %v1022 = vsel %vm1019, %v1021, %v1017
    %v1023 = vmul.f32 1.0, %v1022
    %v1024 = vrcp.pop %v992
    %v1025 = vmul.f32 %v992, %v1024
    %v1026 = vsub.f32 1.0, %v1025
    %v1027 = vmul.f32 %v1024, %v1026
    %v1028 = vadd.f32 %v1024, %v1027
    %vm1029 = vweird.f32 %v992
    %vm1030 = vweird.f32 %v1024
    %vm1031 = vmor %vm1029, %vm1030
    %v1032 = vsel %vm1031, %v1024, %v1028
    %v1033 = vand.u32 2147483647, %v992
    %vm1034 = vcmp.eq.f32.partialorder %v1033, 8.507059e+37
    %v1035 = vand.u32 %v992, 2147483648
    %v1036 = vor.u32 1.1754944e-38, %v1035
    %v1037 = vsel %vm1034, %v1036, %v1032
    %v1038 = vmul.f32 1.0, %v1037
    %v1039 = vrcp.pop %v993
    %v1040 = vmul.f32 %v993, %v1039
    %v1041 = vsub.f32 1.0, %v1040
    %v1042 = vmul.f32 %v1039, %v1041
    %v1043 = vadd.f32 %v1039, %v1042
    %vm1044 = vweird.f32 %v993
    %vm1045 = vweird.f32 %v1039
    %vm1046 = vmor %vm1044, %vm1045
    %v1047 = vsel %vm1046, %v1039, %v1043
    %v1048 = vand.u32 2147483647, %v993
    %vm1049 = vcmp.eq.f32.partialorder %v1048, 8.507059e+37
    %v1050 = vand.u32 %v993, 2147483648
    %v1051 = vor.u32 1.1754944e-38, %v1050
    %v1052 = vsel %vm1049, %v1051, %v1047
    %v1053 = vmul.f32 1.0, %v1052
    %v1054 = vmul.f32 %v1008, 1.0614054
    %v1055 = vmul.f32 %v1023, 1.0614054
    %v1056 = vmul.f32 %v1038, 1.0614054
    %v1057 = vmul.f32 %v1053, 1.0614054
    %v1058 = vadd.f32 %v1054, -1.4531521
    %v1059 = vadd.f32 %v1055, -1.4531521
    %v1060 = vadd.f32 %v1056, -1.4531521
    %v1061 = vadd.f32 %v1057, -1.4531521
    %v1062 = vmul.f32 %v1008, %v1058
    %v1063 = vmul.f32 %v1023, %v1059
    %v1064 = vmul.f32 %v1038, %v1060
    %v1065 = vmul.f32 %v1053, %v1061
    %v1066 = vadd.f32 %v1062, 1.4214138
    %v1067 = vadd.f32 %v1063, 1.4214138
    %v1068 = vadd.f32 %v1064, 1.4214138
    %v1069 = vadd.f32 %v1065, 1.4214138
    %v1070 = vmul.f32 %v1008, %v1066
    %v1071 = vmul.f32 %v1023, %v1067
    %v1072 = vmul.f32 %v1038, %v1068
    %v1073 = vmul.f32 %v1053, %v1069
    %v1074 = vadd.f32 %v1070, -0.28449672
    %v1075 = vadd.f32 %v1071, -0.28449672
    %v1076 = vadd.f32 %v1072, -0.28449672
    %v1077 = vadd.f32 %v1073, -0.28449672
    %v1078 = vmul.f32 %v1008, %v1074
    %v1079 = vmul.f32 %v1023, %v1075
    %v1080 = vmul.f32 %v1038, %v1076
    %v1081 = vmul.f32 %v1053, %v1077
    %v1082 = vadd.f32 %v1078, 0.2548296
    %v1083 = vadd.f32 %v1079, 0.2548296
    %v1084 = vadd.f32 %v1080, 0.2548296
    %v1085 = vadd.f32 %v1081, 0.2548296
    %v1086 = vmul.f32 %v1008, %v1082
    %v1087 = vmul.f32 %v1023, %v1083
    %v1088 = vmul.f32 %v1038, %v1084
    %v1089 = vmul.f32 %v1053, %v1085
    %v1090 = vmul.f32 %v982, %v982
    %v1091 = vmul.f32 %v983, %v983
    %v1092 = vmul.f32 %v984, %v984
    %v1093 = vmul.f32 %v985, %v985
    %v1094 = vsub.f32 0.0, %v1090
    %v1095 = vsub.f32 0.0, %v1091
    %v1096 = vsub.f32 0.0, %v1092
    %v1097 = vsub.f32 0.0, %v1093
    %v1098 = vmul.f32 %v1094, 1.442695
    %v1099 = vpow.pop %v1098
    %v1100 = vmul.f32 %v1095, 1.442695
    %v1101 = vpow.pop %v1100
    %v1102 = vmul.f32 %v1096, 1.442695
    %v1103 = vpow.pop %v1102
    %v1104 = vmul.f32 %v1097, 1.442695
    %v1105 = vpow.pop %v1104
    %v1106 = vmul.f32 %v1086, %v1099
    %v1107 = vmul.f32 %v1087, %v1101
    %v1108 = vmul.f32 %v1088, %v1103
    %v1109 = vmul.f32 %v1089, %v1105
    %v1110 = vsub.f32 1.0, %v1106
    %v1111 = vsub.f32 1.0, %v1107
    %v1112 = vsub.f32 1.0, %v1108
    %v1113 = vsub.f32 1.0, %v1109
    %vm1114 = vcmp.ge.f32.partialorder %v978, 0.0
    %vm1115 = vcmp.ge.f32.partialorder %v979, 0.0
    %vm1116 = vcmp.ge.f32.partialorder %v980, 0.0
    %vm1117 = vcmp.ge.f32.partialorder %v981, 0.0
    %v1118 = vsub.f32 0.0, %v1110
    %v1119 = vsub.f32 0.0, %v1111
    %v1120 = vsub.f32 0.0, %v1112
    %v1121 = vsub.f32 0.0, %v1113
    %v1122 = vsel %vm1114, %v1110, %v1118
    %v1123 = vsel %vm1115, %v1111, %v1119
    %v1124 = vsel %vm1116, %v1112, %v1120
    %v1125 = vsel %vm1117, %v1113, %v1121
    %v1126 = vadd.f32 %v1122, 1.0
    %v1127 = vadd.f32 %v1123, 1.0
    %v1128 = vadd.f32 %v1124, 1.0
    %v1129 = vadd.f32 %v1125, 1.0
    %v1130 = vmul.f32 %v974, %v1126
    %v1131 = vmul.f32 %v975, %v1127
    %v1132 = vmul.f32 %v976, %v1128
    %v1133 = vmul.f32 %v977, %v1129
    %v1138 = vrot.slane %v1130, 7
    %v1139 = vrot.slane %v1131, 7
    %v1140 = vsel %vm486, %v1138, %v1139
    %v1141 = vrot.slane %v1132, 7
    %v1142 = vrot.slane %v1133, 7
    %v1143 = vsel %vm486, %v1141, %v1142
    %v1150 = vsel %vm486, 0.0, %v1138
    %v1151 = vsel %vm486, 0.0, %v1141
    %v1152 = vsel %vm486, %v1139, 0.0
    %v1153 = vsel %vm486, %v1142, 0.0
    %v1158 = vrot.slane %v1150, 1
    %v1159 = vrot.slane %v1140, 1
    %v1160 = vsel %vm507, %v1158, %v1159
    %v1161 = vrot.slane %v1152, 1
    %v1162 = vsel %vm507, %v1159, %v1161
    %v1163 = vrot.slane %v1151, 1
    %v1164 = vrot.slane %v1143, 1
    %v1165 = vsel %vm507, %v1163, %v1164
    %v1166 = vrot.slane %v1153, 1
    %v1167 = vsel %vm507, %v1164, %v1166
    %1168 = vrot.lane.b32.xlu0 %v1160, 32
    %v1169 = vpop.permute.xlu0 %1168
    %1170 = vrot.lane.b32.xlu0 %v1162, 32
    %v1171 = vpop.permute.xlu0 %1170
    %1172 = vrot.lane.b32.xlu0 %v1165, 32
    %v1173 = vpop.permute.xlu0 %1172
    %1174 = vrot.lane.b32.xlu0 %v1167, 32
    %v1175 = vpop.permute.xlu0 %1174
    %v1180 = vrot.slane %v1150, 2
    %v1181 = vrot.slane %v1140, 2
    %v1182 = vsel %vm530, %v1180, %v1181
    %v1183 = vrot.slane %v1152, 2
    %v1184 = vsel %vm530, %v1181, %v1183
    %v1185 = vrot.slane %v1151, 2
    %v1186 = vrot.slane %v1143, 2
    %v1187 = vsel %vm530, %v1185, %v1186
    %v1188 = vrot.slane %v1153, 2
    %v1189 = vsel %vm530, %v1186, %v1188
    %1190 = vrot.lane.b32.xlu0 %v1182, 64
    %v1191 = vpop.permute.xlu0 %1190
    %1192 = vrot.lane.b32.xlu0 %v1184, 64
    %v1193 = vpop.permute.xlu0 %1192
    %1194 = vrot.lane.b32.xlu0 %v1187, 64
    %v1195 = vpop.permute.xlu0 %1194
    %1196 = vrot.lane.b32.xlu0 %v1189, 64
    %v1197 = vpop.permute.xlu0 %1196
    %v1202 = vsel %vm553, %v1150, %v1169
    %v1203 = vsel %vm553, %v1140, %v1171
    %v1204 = vsel %vm553, %v1151, %v1173
    %v1205 = vsel %vm553, %v1143, %v1175
    %v1206 = vsel %vm558, %v1202, %v1191
    %v1207 = vsel %vm558, %v1203, %v1193
    %v1208 = vsel %vm558, %v1204, %v1195
    %v1209 = vsel %vm558, %v1205, %v1197
    %v1210 = vld [vmem:[%s5] sm:$0xff]
    %v1211 = vld [vmem:[%s5 + $0x8] sm:$0xff]
    %v1212 = vld [vmem:[%s5 + $0x10] sm:$0xff]
    %v1213 = vld [vmem:[%s5 + $0x18] sm:$0xff]
    %v1214 = vld [vmem:[%s5 + $0x20] sm:$0xff]
    %v1215 = vld [vmem:[%s5 + $0x28] sm:$0xff]
    %v1216 = vld [vmem:[%s5 + $0x30] sm:$0xff]
    %v1217 = vld [vmem:[%s5 + $0x38] sm:$0xff]
    %v1218 = vld [vmem:[%s5 + $0x40] sm:$0xff]
    %v1219 = vld [vmem:[%s5 + $0x48] sm:$0xff]
    %v1220 = vld [vmem:[%s5 + $0x50] sm:$0xff]
    %v1221 = vld [vmem:[%s5 + $0x58] sm:$0xff]
    %v1222 = vld [vmem:[%s6] sm:$0x1]
    %v1224 = vperm.slane %v1222, 0
    %v1227 = vsel %vm579, %v1206, 0
    %v1230 = vsel %vm579, %v1207, 0
    %v1233 = vsel %vm579, %v1208, 0
    %v1236 = vsel %vm579, %v1209, 0
    %1238 = vmatpush.msra.mxu0 0.0
    %1239 = vmatpush.msra.mxu0 0.0
    %1240 = vmatpush.msra.mxu0 0.0
    %1241 = vmatpush.msra.mxu0 0.0
    %v1242 = vand.u32 %v1221, 4294901760
    %1243 = vmatpush.msra.mxu0 %v1242
    %v1244 = vand.u32 %v1220, 4294901760
    %1245 = vmatpush.msra.mxu0 %v1244
    %v1246 = vand.u32 %v1219, 4294901760
    %1247 = vmatpush.msra.mxu0 %v1246
    %v1248 = vand.u32 %v1218, 4294901760
    %1249 = vmatpush.msra.mxu0 %v1248
    %v1250 = vand.u32 %v1217, 4294901760
    %1251 = vmatpush.msra.mxu0 %v1250
    %v1252 = vand.u32 %v1216, 4294901760
    %1253 = vmatpush.msra.mxu0 %v1252
    %v1254 = vand.u32 %v1215, 4294901760
    %1255 = vmatpush.msra.mxu0 %v1254
    %v1256 = vand.u32 %v1214, 4294901760
    %1257 = vmatpush.msra.mxu0 %v1256
    %v1258 = vand.u32 %v1213, 4294901760
    %1259 = vmatpush.msra.mxu0 %v1258
    %v1260 = vand.u32 %v1212, 4294901760
    %1261 = vmatpush.msra.mxu0 %v1260
    %v1262 = vand.u32 %v1211, 4294901760
    %1263 = vmatpush.msra.mxu0 %v1262
    %v1264 = vand.u32 %v1210, 4294901760
    %1265 = vmatpush.msra.mxu0 %v1264
    %v1266 = vand.u32 %v1227, 4294901760
    %v1267 = vsub.f32 %v1227, %v1266
    %v1268 = vand.u32 %v1267, 4294901760
    %v1269 = vsub.f32 %v1267, %v1268
    %v1270 = vand.u32 %v1269, 4294901760
    %1271 = vmatmul.f32.gmra.mxu0 %v1270
    %v1272 = vpop.f32.mrf.mxu0
    %v1273 = vadd.f32 %v1224, %v1272
    %v1274 = vand.u32 %v1230, 4294901760
    %v1275 = vsub.f32 %v1230, %v1274
    %v1276 = vand.u32 %v1275, 4294901760
    %v1277 = vsub.f32 %v1275, %v1276
    %v1278 = vand.u32 %v1277, 4294901760
    %1279 = vmatmul.f32.gmra.mxu0 %v1278
    %v1280 = vpop.f32.mrf.mxu0
    %v1281 = vadd.f32 %v1224, %v1280
    %v1282 = vand.u32 %v1233, 4294901760
    %v1283 = vsub.f32 %v1233, %v1282
    %v1284 = vand.u32 %v1283, 4294901760
    %v1285 = vsub.f32 %v1283, %v1284
    %v1286 = vand.u32 %v1285, 4294901760
    %1287 = vmatmul.f32.gmra.mxu0 %v1286
    %v1288 = vpop.f32.mrf.mxu0
    %v1289 = vadd.f32 %v1224, %v1288
    %v1290 = vand.u32 %v1236, 4294901760
    %v1291 = vsub.f32 %v1236, %v1290
    %v1292 = vand.u32 %v1291, 4294901760
    %v1293 = vsub.f32 %v1291, %v1292
    %v1294 = vand.u32 %v1293, 4294901760
    %1295 = vmatmul.f32.gmra.mxu0 %v1294
    %v1296 = vpop.f32.mrf.mxu0
    %v1297 = vadd.f32 %v1224, %v1296
    %1298 = vdwg.mxu0
    %1299 = vmatpush.msra.mxu0 0.0
    %1300 = vmatpush.msra.mxu0 0.0
    %1301 = vmatpush.msra.mxu0 0.0
    %1302 = vmatpush.msra.mxu0 0.0
    %v1303 = vand.u32 %v1221, 4294901760
    %v1304 = vsub.f32 %v1221, %v1303
    %v1305 = vand.u32 %v1304, 4294901760
    %v1306 = vsub.f32 %v1304, %v1305
    %v1307 = vand.u32 %v1306, 4294901760
    %1308 = vmatpush.msra.mxu0 %v1307
    %v1309 = vand.u32 %v1220, 4294901760
    %v1310 = vsub.f32 %v1220, %v1309
    %v1311 = vand.u32 %v1310, 4294901760
    %v1312 = vsub.f32 %v1310, %v1311
    %v1313 = vand.u32 %v1312, 4294901760
    %1314 = vmatpush.msra.mxu0 %v1313
    %v1315 = vand.u32 %v1219, 4294901760
    %v1316 = vsub.f32 %v1219, %v1315
    %v1317 = vand.u32 %v1316, 4294901760
    %v1318 = vsub.f32 %v1316, %v1317
    %v1319 = vand.u32 %v1318, 4294901760
    %1320 = vmatpush.msra.mxu0 %v1319
    %v1321 = vand.u32 %v1218, 4294901760
    %v1322 = vsub.f32 %v1218, %v1321
    %v1323 = vand.u32 %v1322, 4294901760
    %v1324 = vsub.f32 %v1322, %v1323
    %v1325 = vand.u32 %v1324, 4294901760
    %1326 = vmatpush.msra.mxu0 %v1325
    %v1327 = vand.u32 %v1217, 4294901760
    %v1328 = vsub.f32 %v1217, %v1327
    %v1329 = vand.u32 %v1328, 4294901760
    %v1330 = vsub.f32 %v1328, %v1329
    %v1331 = vand.u32 %v1330, 4294901760
    %1332 = vmatpush.msra.mxu0 %v1331
    %v1333 = vand.u32 %v1216, 4294901760
    %v1334 = vsub.f32 %v1216, %v1333
    %v1335 = vand.u32 %v1334, 4294901760
    %v1336 = vsub.f32 %v1334, %v1335
    %v1337 = vand.u32 %v1336, 4294901760
    %1338 = vmatpush.msra.mxu0 %v1337
    %v1339 = vand.u32 %v1215, 4294901760
    %v1340 = vsub.f32 %v1215, %v1339
    %v1341 = vand.u32 %v1340, 4294901760
    %v1342 = vsub.f32 %v1340, %v1341
    %v1343 = vand.u32 %v1342, 4294901760
    %1344 = vmatpush.msra.mxu0 %v1343
    %v1345 = vand.u32 %v1214, 4294901760
    %v1346 = vsub.f32 %v1214, %v1345
    %v1347 = vand.u32 %v1346, 4294901760
    %v1348 = vsub.f32 %v1346, %v1347
    %v1349 = vand.u32 %v1348, 4294901760
    %1350 = vmatpush.msra.mxu0 %v1349
    %v1351 = vand.u32 %v1213, 4294901760
    %v1352 = vsub.f32 %v1213, %v1351
    %v1353 = vand.u32 %v1352, 4294901760
    %v1354 = vsub.f32 %v1352, %v1353
    %v1355 = vand.u32 %v1354, 4294901760
    %1356 = vmatpush.msra.mxu0 %v1355
    %v1357 = vand.u32 %v1212, 4294901760
    %v1358 = vsub.f32 %v1212, %v1357
    %v1359 = vand.u32 %v1358, 4294901760
    %v1360 = vsub.f32 %v1358, %v1359
    %v1361 = vand.u32 %v1360, 4294901760
    %1362 = vmatpush.msra.mxu0 %v1361
    %v1363 = vand.u32 %v1211, 4294901760
    %v1364 = vsub.f32 %v1211, %v1363
    %v1365 = vand.u32 %v1364, 4294901760
    %v1366 = vsub.f32 %v1364, %v1365
    %v1367 = vand.u32 %v1366, 4294901760
    %1368 = vmatpush.msra.mxu0 %v1367
    %v1369 = vand.u32 %v1210, 4294901760
    %v1370 = vsub.f32 %v1210, %v1369
    %v1371 = vand.u32 %v1370, 4294901760
    %v1372 = vsub.f32 %v1370, %v1371
    %v1373 = vand.u32 %v1372, 4294901760
    %1374 = vmatpush.msra.mxu0 %v1373
    %v1375 = vand.u32 %v1227, 4294901760
    %1376 = vmatmul.f32.gmra.mxu0 %v1375
    %v1377 = vpop.f32.mrf.mxu0
    %v1378 = vadd.f32 %v1273, %v1377
    %v1379 = vand.u32 %v1230, 4294901760
    %1380 = vmatmul.f32.gmra.mxu0 %v1379
    %v1381 = vpop.f32.mrf.mxu0
    %v1382 = vadd.f32 %v1281, %v1381
    %v1383 = vand.u32 %v1233, 4294901760
    %1384 = vmatmul.f32.gmra.mxu0 %v1383
    %v1385 = vpop.f32.mrf.mxu0
    %v1386 = vadd.f32 %v1289, %v1385
    %v1387 = vand.u32 %v1236, 4294901760
    %1388 = vmatmul.f32.gmra.mxu0 %v1387
    %v1389 = vpop.f32.mrf.mxu0
    %v1390 = vadd.f32 %v1297, %v1389
    %1391 = vdwg.mxu0
    %1392 = vmatpush.msra.mxu0 0.0
    %1393 = vmatpush.msra.mxu0 0.0
    %1394 = vmatpush.msra.mxu0 0.0
    %1395 = vmatpush.msra.mxu0 0.0
    %v1396 = vand.u32 %v1221, 4294901760
    %v1397 = vsub.f32 %v1221, %v1396
    %1398 = vmatpush.msra.mxu0 %v1397
    %v1399 = vand.u32 %v1220, 4294901760
    %v1400 = vsub.f32 %v1220, %v1399
    %1401 = vmatpush.msra.mxu0 %v1400
    %v1402 = vand.u32 %v1219, 4294901760
    %v1403 = vsub.f32 %v1219, %v1402
    %1404 = vmatpush.msra.mxu0 %v1403
    %v1405 = vand.u32 %v1218, 4294901760
    %v1406 = vsub.f32 %v1218, %v1405
    %1407 = vmatpush.msra.mxu0 %v1406
    %v1408 = vand.u32 %v1217, 4294901760
    %v1409 = vsub.f32 %v1217, %v1408
    %1410 = vmatpush.msra.mxu0 %v1409
    %v1411 = vand.u32 %v1216, 4294901760
    %v1412 = vsub.f32 %v1216, %v1411
    %1413 = vmatpush.msra.mxu0 %v1412
    %v1414 = vand.u32 %v1215, 4294901760
    %v1415 = vsub.f32 %v1215, %v1414
    %1416 = vmatpush.msra.mxu0 %v1415
    %v1417 = vand.u32 %v1214, 4294901760
    %v1418 = vsub.f32 %v1214, %v1417
    %1419 = vmatpush.msra.mxu0 %v1418
    %v1420 = vand.u32 %v1213, 4294901760
    %v1421 = vsub.f32 %v1213, %v1420
    %1422 = vmatpush.msra.mxu0 %v1421
    %v1423 = vand.u32 %v1212, 4294901760
    %v1424 = vsub.f32 %v1212, %v1423
    %1425 = vmatpush.msra.mxu0 %v1424
    %v1426 = vand.u32 %v1211, 4294901760
    %v1427 = vsub.f32 %v1211, %v1426
    %1428 = vmatpush.msra.mxu0 %v1427
    %v1429 = vand.u32 %v1210, 4294901760
    %v1430 = vsub.f32 %v1210, %v1429
    %1431 = vmatpush.msra.mxu0 %v1430
    %v1432 = vand.u32 %v1227, 4294901760
    %v1433 = vsub.f32 %v1227, %v1432
    %1434 = vmatmul.f32.gmra.mxu0 %v1433
    %v1435 = vpop.f32.mrf.mxu0
    %v1436 = vadd.f32 %v1378, %v1435
    %v1437 = vand.u32 %v1230, 4294901760
    %v1438 = vsub.f32 %v1230, %v1437
    %1439 = vmatmul.f32.gmra.mxu0 %v1438
    %v1440 = vpop.f32.mrf.mxu0
    %v1441 = vadd.f32 %v1382, %v1440
    %v1442 = vand.u32 %v1233, 4294901760
    %v1443 = vsub.f32 %v1233, %v1442
    %1444 = vmatmul.f32.gmra.mxu0 %v1443
    %v1445 = vpop.f32.mrf.mxu0
    %v1446 = vadd.f32 %v1386, %v1445
    %v1447 = vand.u32 %v1236, 4294901760
    %v1448 = vsub.f32 %v1236, %v1447
    %1449 = vmatmul.f32.gmra.mxu0 %v1448
    %v1450 = vpop.f32.mrf.mxu0
    %v1451 = vadd.f32 %v1390, %v1450
    %1452 = vdwg.mxu0
    %1453 = vmatpush.msra.mxu0 0.0
    %1454 = vmatpush.msra.mxu0 0.0
    %1455 = vmatpush.msra.mxu0 0.0
    %1456 = vmatpush.msra.mxu0 0.0
    %v1457 = vand.u32 %v1221, 4294901760
    %1458 = vmatpush.msra.mxu0 %v1457
    %v1459 = vand.u32 %v1220, 4294901760
    %1460 = vmatpush.msra.mxu0 %v1459
    %v1461 = vand.u32 %v1219, 4294901760
    %1462 = vmatpush.msra.mxu0 %v1461
    %v1463 = vand.u32 %v1218, 4294901760
    %1464 = vmatpush.msra.mxu0 %v1463
    %v1465 = vand.u32 %v1217, 4294901760
    %1466 = vmatpush.msra.mxu0 %v1465
    %v1467 = vand.u32 %v1216, 4294901760
    %1468 = vmatpush.msra.mxu0 %v1467
    %v1469 = vand.u32 %v1215, 4294901760
    %1470 = vmatpush.msra.mxu0 %v1469
    %v1471 = vand.u32 %v1214, 4294901760
    %1472 = vmatpush.msra.mxu0 %v1471
    %v1473 = vand.u32 %v1213, 4294901760
    %1474 = vmatpush.msra.mxu0 %v1473
    %v1475 = vand.u32 %v1212, 4294901760
    %1476 = vmatpush.msra.mxu0 %v1475
    %v1477 = vand.u32 %v1211, 4294901760
    %1478 = vmatpush.msra.mxu0 %v1477
    %v1479 = vand.u32 %v1210, 4294901760
    %1480 = vmatpush.msra.mxu0 %v1479
    %v1481 = vand.u32 %v1227, 4294901760
    %v1482 = vsub.f32 %v1227, %v1481
    %v1483 = vand.u32 %v1482, 4294901760
    %1484 = vmatmul.f32.gmra.mxu0 %v1483
    %v1485 = vpop.f32.mrf.mxu0
    %v1486 = vadd.f32 %v1436, %v1485
    %v1487 = vand.u32 %v1230, 4294901760
    %v1488 = vsub.f32 %v1230, %v1487
    %v1489 = vand.u32 %v1488, 4294901760
    %1490 = vmatmul.f32.gmra.mxu0 %v1489
    %v1491 = vpop.f32.mrf.mxu0
    %v1492 = vadd.f32 %v1441, %v1491
    %v1493 = vand.u32 %v1233, 4294901760
    %v1494 = vsub.f32 %v1233, %v1493
    %v1495 = vand.u32 %v1494, 4294901760
    %1496 = vmatmul.f32.gmra.mxu0 %v1495
    %v1497 = vpop.f32.mrf.mxu0
    %v1498 = vadd.f32 %v1446, %v1497
    %v1499 = vand.u32 %v1236, 4294901760
    %v1500 = vsub.f32 %v1236, %v1499
    %v1501 = vand.u32 %v1500, 4294901760
    %1502 = vmatmul.f32.gmra.mxu0 %v1501
    %v1503 = vpop.f32.mrf.mxu0
    %v1504 = vadd.f32 %v1451, %v1503
    %1505 = vdwg.mxu0
    %1506 = vmatpush.msra.mxu0 0.0
    %1507 = vmatpush.msra.mxu0 0.0
    %1508 = vmatpush.msra.mxu0 0.0
    %1509 = vmatpush.msra.mxu0 0.0
    %v1510 = vand.u32 %v1221, 4294901760
    %v1511 = vsub.f32 %v1221, %v1510
    %v1512 = vand.u32 %v1511, 4294901760
    %1513 = vmatpush.msra.mxu0 %v1512
    %v1514 = vand.u32 %v1220, 4294901760
    %v1515 = vsub.f32 %v1220, %v1514
    %v1516 = vand.u32 %v1515, 4294901760
    %1517 = vmatpush.msra.mxu0 %v1516
    %v1518 = vand.u32 %v1219, 4294901760
    %v1519 = vsub.f32 %v1219, %v1518
    %v1520 = vand.u32 %v1519, 4294901760
    %1521 = vmatpush.msra.mxu0 %v1520
    %v1522 = vand.u32 %v1218, 4294901760
    %v1523 = vsub.f32 %v1218, %v1522
    %v1524 = vand.u32 %v1523, 4294901760
    %1525 = vmatpush.msra.mxu0 %v1524
    %v1526 = vand.u32 %v1217, 4294901760
    %v1527 = vsub.f32 %v1217, %v1526
    %v1528 = vand.u32 %v1527, 4294901760
    %1529 = vmatpush.msra.mxu0 %v1528
    %v1530 = vand.u32 %v1216, 4294901760
    %v1531 = vsub.f32 %v1216, %v1530
    %v1532 = vand.u32 %v1531, 4294901760
    %1533 = vmatpush.msra.mxu0 %v1532
    %v1534 = vand.u32 %v1215, 4294901760
    %v1535 = vsub.f32 %v1215, %v1534
    %v1536 = vand.u32 %v1535, 4294901760
    %1537 = vmatpush.msra.mxu0 %v1536
    %v1538 = vand.u32 %v1214, 4294901760
    %v1539 = vsub.f32 %v1214, %v1538
    %v1540 = vand.u32 %v1539, 4294901760
    %1541 = vmatpush.msra.mxu0 %v1540
    %v1542 = vand.u32 %v1213, 4294901760
    %v1543 = vsub.f32 %v1213, %v1542
    %v1544 = vand.u32 %v1543, 4294901760
    %1545 = vmatpush.msra.mxu0 %v1544
    %v1546 = vand.u32 %v1212, 4294901760
    %v1547 = vsub.f32 %v1212, %v1546
    %v1548 = vand.u32 %v1547, 4294901760
    %1549 = vmatpush.msra.mxu0 %v1548
    %v1550 = vand.u32 %v1211, 4294901760
    %v1551 = vsub.f32 %v1211, %v1550
    %v1552 = vand.u32 %v1551, 4294901760
    %1553 = vmatpush.msra.mxu0 %v1552
    %v1554 = vand.u32 %v1210, 4294901760
    %v1555 = vsub.f32 %v1210, %v1554
    %v1556 = vand.u32 %v1555, 4294901760
    %1557 = vmatpush.msra.mxu0 %v1556
    %v1558 = vand.u32 %v1227, 4294901760
    %1559 = vmatmul.f32.gmra.mxu0 %v1558
    %v1560 = vpop.f32.mrf.mxu0
    %v1561 = vadd.f32 %v1486, %v1560
    %v1562 = vand.u32 %v1230, 4294901760
    %1563 = vmatmul.f32.gmra.mxu0 %v1562
    %v1564 = vpop.f32.mrf.mxu0
    %v1565 = vadd.f32 %v1492, %v1564
    %v1566 = vand.u32 %v1233, 4294901760
    %1567 = vmatmul.f32.gmra.mxu0 %v1566
    %v1568 = vpop.f32.mrf.mxu0
    %v1569 = vadd.f32 %v1498, %v1568
    %v1570 = vand.u32 %v1236, 4294901760
    %1571 = vmatmul.f32.gmra.mxu0 %v1570
    %v1572 = vpop.f32.mrf.mxu0
    %v1573 = vadd.f32 %v1504, %v1572
    %1574 = vdwg.mxu0
    %1575 = vmatpush.msra.mxu0 0.0
    %1576 = vmatpush.msra.mxu0 0.0
    %1577 = vmatpush.msra.mxu0 0.0
    %1578 = vmatpush.msra.mxu0 0.0
    %v1579 = vand.u32 %v1221, 4294901760
    %1580 = vmatpush.msra.mxu0 %v1579
    %v1581 = vand.u32 %v1220, 4294901760
    %1582 = vmatpush.msra.mxu0 %v1581
    %v1583 = vand.u32 %v1219, 4294901760
    %1584 = vmatpush.msra.mxu0 %v1583
    %v1585 = vand.u32 %v1218, 4294901760
    %1586 = vmatpush.msra.mxu0 %v1585
    %v1587 = vand.u32 %v1217, 4294901760
    %1588 = vmatpush.msra.mxu0 %v1587
    %v1589 = vand.u32 %v1216, 4294901760
    %1590 = vmatpush.msra.mxu0 %v1589
    %v1591 = vand.u32 %v1215, 4294901760
    %1592 = vmatpush.msra.mxu0 %v1591
    %v1593 = vand.u32 %v1214, 4294901760
    %1594 = vmatpush.msra.mxu0 %v1593
    %v1595 = vand.u32 %v1213, 4294901760
    %1596 = vmatpush.msra.mxu0 %v1595
    %v1597 = vand.u32 %v1212, 4294901760
    %1598 = vmatpush.msra.mxu0 %v1597
    %v1599 = vand.u32 %v1211, 4294901760
    %1600 = vmatpush.msra.mxu0 %v1599
    %v1601 = vand.u32 %v1210, 4294901760
    %1602 = vmatpush.msra.mxu0 %v1601
    %v1603 = vand.u32 %v1227, 4294901760
    %1604 = vmatmul.f32.gmra.mxu0 %v1603
    %v1605 = vpop.f32.mrf.mxu0
    %v1606 = vadd.f32 %v1561, %v1605
    %v1607 = vand.u32 %v1230, 4294901760
    %1608 = vmatmul.f32.gmra.mxu0 %v1607
    %v1609 = vpop.f32.mrf.mxu0
    %v1610 = vadd.f32 %v1565, %v1609
    %v1611 = vand.u32 %v1233, 4294901760
    %1612 = vmatmul.f32.gmra.mxu0 %v1611
    %v1613 = vpop.f32.mrf.mxu0
    %v1614 = vadd.f32 %v1569, %v1613
    %v1615 = vand.u32 %v1236, 4294901760
    %1616 = vmatmul.f32.gmra.mxu0 %v1615
    %v1617 = vpop.f32.mrf.mxu0
    %v1618 = vadd.f32 %v1573, %v1617
    %1619 = vdwg.mxu0
    %v1620 = vadd.f32 %v1606, %v308
    %v1621 = vadd.f32 %v1610, %v312
    %v1622 = vadd.f32 %v1614, %v316
    %v1623 = vadd.f32 %v1618, %v320
    %v1624 = vmul.f32 %v1620, 0.5
    %v1625 = vmul.f32 %v1621, 0.5
    %v1626 = vmul.f32 %v1622, 0.5
    %v1627 = vmul.f32 %v1623, 0.5
    %v1628 = vmul.f32 %v1620, 0.70710677
    %v1629 = vmul.f32 %v1621, 0.70710677
    %v1630 = vmul.f32 %v1622, 0.70710677
    %v1631 = vmul.f32 %v1623, 0.70710677
    %v1632 = vand.u32 2147483647, %v1628
    %v1633 = vand.u32 2147483647, %v1629
    %v1634 = vand.u32 2147483647, %v1630
    %v1635 = vand.u32 2147483647, %v1631
    %v1636 = vmul.f32 %v1632, 0.3275911
    %v1637 = vmul.f32 %v1633, 0.3275911
    %v1638 = vmul.f32 %v1634, 0.3275911
    %v1639 = vmul.f32 %v1635, 0.3275911
    %v1640 = vadd.f32 %v1636, 1.0
    %v1641 = vadd.f32 %v1637, 1.0
    %v1642 = vadd.f32 %v1638, 1.0
    %v1643 = vadd.f32 %v1639, 1.0
    %v1644 = vrcp.pop %v1640
    %v1645 = vmul.f32 %v1640, %v1644
    %v1646 = vsub.f32 1.0, %v1645
    %v1647 = vmul.f32 %v1644, %v1646
    %v1648 = vadd.f32 %v1644, %v1647
    %vm1649 = vweird.f32 %v1640
    %vm1650 = vweird.f32 %v1644
    %vm1651 = vmor %vm1649, %vm1650
    %v1652 = vsel %vm1651, %v1644, %v1648
    %v1653 = vand.u32 2147483647, %v1640
    %vm1654 = vcmp.eq.f32.partialorder %v1653, 8.507059e+37
    %v1655 = vand.u32 %v1640, 2147483648
    %v1656 = vor.u32 1.1754944e-38, %v1655
    %v1657 = vsel %vm1654, %v1656, %v1652
    %v1658 = vmul.f32 1.0, %v1657
    %v1659 = vrcp.pop %v1641
    %v1660 = vmul.f32 %v1641, %v1659
    %v1661 = vsub.f32 1.0, %v1660
    %v1662 = vmul.f32 %v1659, %v1661
    %v1663 = vadd.f32 %v1659, %v1662
    %vm1664 = vweird.f32 %v1641
    %vm1665 = vweird.f32 %v1659
    %vm1666 = vmor %vm1664, %vm1665
    %v1667 = vsel %vm1666, %v1659, %v1663
    %v1668 = vand.u32 2147483647, %v1641
    %vm1669 = vcmp.eq.f32.partialorder %v1668, 8.507059e+37
    %v1670 = vand.u32 %v1641, 2147483648
    %v1671 = vor.u32 1.1754944e-38, %v1670
    %v1672 = vsel %vm1669, %v1671, %v1667
    %v1673 = vmul.f32 1.0, %v1672
    %v1674 = vrcp.pop %v1642
    %v1675 = vmul.f32 %v1642, %v1674
    %v1676 = vsub.f32 1.0, %v1675
    %v1677 = vmul.f32 %v1674, %v1676
    %v1678 = vadd.f32 %v1674, %v1677
    %vm1679 = vweird.f32 %v1642
    %vm1680 = vweird.f32 %v1674
    %vm1681 = vmor %vm1679, %vm1680
    %v1682 = vsel %vm1681, %v1674, %v1678
    %v1683 = vand.u32 2147483647, %v1642
    %vm1684 = vcmp.eq.f32.partialorder %v1683, 8.507059e+37
    %v1685 = vand.u32 %v1642, 2147483648
    %v1686 = vor.u32 1.1754944e-38, %v1685
    %v1687 = vsel %vm1684, %v1686, %v1682
    %v1688 = vmul.f32 1.0, %v1687
    %v1689 = vrcp.pop %v1643
    %v1690 = vmul.f32 %v1643, %v1689
    %v1691 = vsub.f32 1.0, %v1690
    %v1692 = vmul.f32 %v1689, %v1691
    %v1693 = vadd.f32 %v1689, %v1692
    %vm1694 = vweird.f32 %v1643
    %vm1695 = vweird.f32 %v1689
    %vm1696 = vmor %vm1694, %vm1695
    %v1697 = vsel %vm1696, %v1689, %v1693
    %v1698 = vand.u32 2147483647, %v1643
    %vm1699 = vcmp.eq.f32.partialorder %v1698, 8.507059e+37
    %v1700 = vand.u32 %v1643, 2147483648
    %v1701 = vor.u32 1.1754944e-38, %v1700
    %v1702 = vsel %vm1699, %v1701, %v1697
    %v1703 = vmul.f32 1.0, %v1702
    %v1704 = vmul.f32 %v1658, 1.0614054
    %v1705 = vmul.f32 %v1673, 1.0614054
    %v1706 = vmul.f32 %v1688, 1.0614054
    %v1707 = vmul.f32 %v1703, 1.0614054
    %v1708 = vadd.f32 %v1704, -1.4531521
    %v1709 = vadd.f32 %v1705, -1.4531521
    %v1710 = vadd.f32 %v1706, -1.4531521
    %v1711 = vadd.f32 %v1707, -1.4531521
    %v1712 = vmul.f32 %v1658, %v1708
    %v1713 = vmul.f32 %v1673, %v1709
    %v1714 = vmul.f32 %v1688, %v1710
    %v1715 = vmul.f32 %v1703, %v1711
    %v1716 = vadd.f32 %v1712, 1.4214138
    %v1717 = vadd.f32 %v1713, 1.4214138
    %v1718 = vadd.f32 %v1714, 1.4214138
    %v1719 = vadd.f32 %v1715, 1.4214138
    %v1720 = vmul.f32 %v1658, %v1716
    %v1721 = vmul.f32 %v1673, %v1717
    %v1722 = vmul.f32 %v1688, %v1718
    %v1723 = vmul.f32 %v1703, %v1719
    %v1724 = vadd.f32 %v1720, -0.28449672
    %v1725 = vadd.f32 %v1721, -0.28449672
    %v1726 = vadd.f32 %v1722, -0.28449672
    %v1727 = vadd.f32 %v1723, -0.28449672
    %v1728 = vmul.f32 %v1658, %v1724
    %v1729 = vmul.f32 %v1673, %v1725
    %v1730 = vmul.f32 %v1688, %v1726
    %v1731 = vmul.f32 %v1703, %v1727
    %v1732 = vadd.f32 %v1728, 0.2548296
    %v1733 = vadd.f32 %v1729, 0.2548296
    %v1734 = vadd.f32 %v1730, 0.2548296
    %v1735 = vadd.f32 %v1731, 0.2548296
    %v1736 = vmul.f32 %v1658, %v1732
    %v1737 = vmul.f32 %v1673, %v1733
    %v1738 = vmul.f32 %v1688, %v1734
    %v1739 = vmul.f32 %v1703, %v1735
    %v1740 = vmul.f32 %v1632, %v1632
    %v1741 = vmul.f32 %v1633, %v1633
    %v1742 = vmul.f32 %v1634, %v1634
    %v1743 = vmul.f32 %v1635, %v1635
    %v1744 = vsub.f32 0.0, %v1740
    %v1745 = vsub.f32 0.0, %v1741
    %v1746 = vsub.f32 0.0, %v1742
    %v1747 = vsub.f32 0.0, %v1743
    %v1748 = vmul.f32 %v1744, 1.442695
    %v1749 = vpow.pop %v1748
    %v1750 = vmul.f32 %v1745, 1.442695
    %v1751 = vpow.pop %v1750
    %v1752 = vmul.f32 %v1746, 1.442695
    %v1753 = vpow.pop %v1752
    %v1754 = vmul.f32 %v1747, 1.442695
    %v1755 = vpow.pop %v1754
    %v1756 = vmul.f32 %v1736, %v1749
    %v1757 = vmul.f32 %v1737, %v1751
    %v1758 = vmul.f32 %v1738, %v1753
    %v1759 = vmul.f32 %v1739, %v1755
    %v1760 = vsub.f32 1.0, %v1756
    %v1761 = vsub.f32 1.0, %v1757
    %v1762 = vsub.f32 1.0, %v1758
    %v1763 = vsub.f32 1.0, %v1759
    %vm1764 = vcmp.ge.f32.partialorder %v1628, 0.0
    %vm1765 = vcmp.ge.f32.partialorder %v1629, 0.0
    %vm1766 = vcmp.ge.f32.partialorder %v1630, 0.0
    %vm1767 = vcmp.ge.f32.partialorder %v1631, 0.0
    %v1768 = vsub.f32 0.0, %v1760
    %v1769 = vsub.f32 0.0, %v1761
    %v1770 = vsub.f32 0.0, %v1762
    %v1771 = vsub.f32 0.0, %v1763
    %v1772 = vsel %vm1764, %v1760, %v1768
    %v1773 = vsel %vm1765, %v1761, %v1769
    %v1774 = vsel %vm1766, %v1762, %v1770
    %v1775 = vsel %vm1767, %v1763, %v1771
    %v1776 = vadd.f32 %v1772, 1.0
    %v1777 = vadd.f32 %v1773, 1.0
    %v1778 = vadd.f32 %v1774, 1.0
    %v1779 = vadd.f32 %v1775, 1.0
    %v1780 = vmul.f32 %v1624, %v1776
    %v1781 = vmul.f32 %v1625, %v1777
    %v1782 = vmul.f32 %v1626, %v1778
    %v1783 = vmul.f32 %v1627, %v1779
    %vm1788 = vcmask 1041408
    %v1789 = vrot.slane %v1780, 6
    %v1790 = vrot.slane %v1781, 6
    %v1791 = vsel %vm1788, %v1789, %v1790
    %v1792 = vrot.slane %v1782, 6
    %v1793 = vrot.slane %v1783, 6
    %v1794 = vsel %vm1788, %v1792, %v1793
    %v1801 = vsel %vm1788, 0.0, %v1789
    %v1802 = vsel %vm1788, 0.0, %v1792
    %v1803 = vsel %vm1788, %v1790, 0.0
    %v1804 = vsel %vm1788, %v1793, 0.0
    %v1809 = vrot.slane %v1801, 2
    %v1810 = vrot.slane %v1791, 2
    %v1811 = vsel %vm530, %v1809, %v1810
    %v1812 = vrot.slane %v1803, 2
    %v1813 = vsel %vm530, %v1810, %v1812
    %v1814 = vrot.slane %v1802, 2
    %v1815 = vrot.slane %v1794, 2
    %v1816 = vsel %vm530, %v1814, %v1815
    %v1817 = vrot.slane %v1804, 2
    %v1818 = vsel %vm530, %v1815, %v1817
    %1819 = vrot.lane.b32.xlu0 %v1811, 32
    %v1820 = vpop.permute.xlu0 %1819
    %1821 = vrot.lane.b32.xlu0 %v1813, 32
    %v1822 = vpop.permute.xlu0 %1821
    %1823 = vrot.lane.b32.xlu0 %v1816, 32
    %v1824 = vpop.permute.xlu0 %1823
    %1825 = vrot.lane.b32.xlu0 %v1818, 32
    %v1826 = vpop.permute.xlu0 %1825
    %v1831 = vrot.slane %v1801, 4
    %v1832 = vrot.slane %v1791, 4
    %v1833 = vsel %vm79, %v1831, %v1832
    %v1834 = vrot.slane %v1803, 4
    %v1835 = vsel %vm79, %v1832, %v1834
    %v1836 = vrot.slane %v1802, 4
    %v1837 = vrot.slane %v1794, 4
    %v1838 = vsel %vm79, %v1836, %v1837
    %v1839 = vrot.slane %v1804, 4
    %v1840 = vsel %vm79, %v1837, %v1839
    %1841 = vrot.lane.b32.xlu0 %v1833, 64
    %v1842 = vpop.permute.xlu0 %1841
    %1843 = vrot.lane.b32.xlu0 %v1835, 64
    %v1844 = vpop.permute.xlu0 %1843
    %1845 = vrot.lane.b32.xlu0 %v1838, 64
    %v1846 = vpop.permute.xlu0 %1845
    %1847 = vrot.lane.b32.xlu0 %v1840, 64
    %v1848 = vpop.permute.xlu0 %1847
    %v1853 = vsel %vm553, %v1801, %v1820
    %v1854 = vsel %vm553, %v1791, %v1822
    %v1855 = vsel %vm553, %v1802, %v1824
    %v1856 = vsel %vm553, %v1794, %v1826
    %v1857 = vsel %vm558, %v1853, %v1842
    %v1858 = vsel %vm558, %v1854, %v1844
    %v1859 = vsel %vm558, %v1855, %v1846
    %v1860 = vsel %vm558, %v1856, %v1848
    %v1861 = vld [vmem:[%s7] sm:$0xff]
    %v1862 = vld [vmem:[%s7 + $0x8] sm:$0xff]
    %v1863 = vld [vmem:[%s7 + $0x10] sm:$0xff]
    %v1864 = vld [vmem:[%s7 + $0x18] sm:$0xff]
    %v1865 = vld [vmem:[%s7 + $0x20] sm:$0xff]
    %v1866 = vld [vmem:[%s7 + $0x28] sm:$0xff]
    %v1867 = vld [vmem:[%s7 + $0x30] sm:$0xff]
    %v1868 = vld [vmem:[%s7 + $0x38] sm:$0xff]
    %v1869 = vld [vmem:[%s7 + $0x40] sm:$0xff]
    %v1870 = vld [vmem:[%s7 + $0x48] sm:$0xff]
    %v1871 = vld [vmem:[%s7 + $0x50] sm:$0xff]
    %v1872 = vld [vmem:[%s7 + $0x58] sm:$0xff]
    %v1873 = vld [vmem:[%s8] sm:$0x1]
    %v1875 = vperm.slane %v1873, 0
    %v1878 = vsel %vm579, %v1857, 0
    %v1881 = vsel %vm579, %v1858, 0
    %v1884 = vsel %vm579, %v1859, 0
    %v1887 = vsel %vm579, %v1860, 0
    %1889 = vmatpush.msra.mxu0 0.0
    %1890 = vmatpush.msra.mxu0 0.0
    %1891 = vmatpush.msra.mxu0 0.0
    %1892 = vmatpush.msra.mxu0 0.0
    %v1893 = vand.u32 %v1872, 4294901760
    %1894 = vmatpush.msra.mxu0 %v1893
    %v1895 = vand.u32 %v1871, 4294901760
    %1896 = vmatpush.msra.mxu0 %v1895
    %v1897 = vand.u32 %v1870, 4294901760
    %1898 = vmatpush.msra.mxu0 %v1897
    %v1899 = vand.u32 %v1869, 4294901760
    %1900 = vmatpush.msra.mxu0 %v1899
    %v1901 = vand.u32 %v1868, 4294901760
    %1902 = vmatpush.msra.mxu0 %v1901
    %v1903 = vand.u32 %v1867, 4294901760
    %1904 = vmatpush.msra.mxu0 %v1903
    %v1905 = vand.u32 %v1866, 4294901760
    %1906 = vmatpush.msra.mxu0 %v1905
    %v1907 = vand.u32 %v1865, 4294901760
    %1908 = vmatpush.msra.mxu0 %v1907
    %v1909 = vand.u32 %v1864, 4294901760
    %1910 = vmatpush.msra.mxu0 %v1909
    %v1911 = vand.u32 %v1863, 4294901760
    %1912 = vmatpush.msra.mxu0 %v1911
    %v1913 = vand.u32 %v1862, 4294901760
    %1914 = vmatpush.msra.mxu0 %v1913
    %v1915 = vand.u32 %v1861, 4294901760
    %1916 = vmatpush.msra.mxu0 %v1915
    %v1917 = vand.u32 %v1878, 4294901760
    %v1918 = vsub.f32 %v1878, %v1917
    %v1919 = vand.u32 %v1918, 4294901760
    %v1920 = vsub.f32 %v1918, %v1919
    %v1921 = vand.u32 %v1920, 4294901760
    %1922 = vmatmul.f32.gmra.mxu0 %v1921
    %v1923 = vpop.f32.mrf.mxu0
    %v1924 = vadd.f32 %v1875, %v1923
    %v1925 = vand.u32 %v1881, 4294901760
    %v1926 = vsub.f32 %v1881, %v1925
    %v1927 = vand.u32 %v1926, 4294901760
    %v1928 = vsub.f32 %v1926, %v1927
    %v1929 = vand.u32 %v1928, 4294901760
    %1930 = vmatmul.f32.gmra.mxu0 %v1929
    %v1931 = vpop.f32.mrf.mxu0
    %v1932 = vadd.f32 %v1875, %v1931
    %v1933 = vand.u32 %v1884, 4294901760
    %v1934 = vsub.f32 %v1884, %v1933
    %v1935 = vand.u32 %v1934, 4294901760
    %v1936 = vsub.f32 %v1934, %v1935
    %v1937 = vand.u32 %v1936, 4294901760
    %1938 = vmatmul.f32.gmra.mxu0 %v1937
    %v1939 = vpop.f32.mrf.mxu0
    %v1940 = vadd.f32 %v1875, %v1939
    %v1941 = vand.u32 %v1887, 4294901760
    %v1942 = vsub.f32 %v1887, %v1941
    %v1943 = vand.u32 %v1942, 4294901760
    %v1944 = vsub.f32 %v1942, %v1943
    %v1945 = vand.u32 %v1944, 4294901760
    %1946 = vmatmul.f32.gmra.mxu0 %v1945
    %v1947 = vpop.f32.mrf.mxu0
    %v1948 = vadd.f32 %v1875, %v1947
    %1949 = vdwg.mxu0
    %1950 = vmatpush.msra.mxu0 0.0
    %1951 = vmatpush.msra.mxu0 0.0
    %1952 = vmatpush.msra.mxu0 0.0
    %1953 = vmatpush.msra.mxu0 0.0
    %v1954 = vand.u32 %v1872, 4294901760
    %v1955 = vsub.f32 %v1872, %v1954
    %v1956 = vand.u32 %v1955, 4294901760
    %v1957 = vsub.f32 %v1955, %v1956
    %v1958 = vand.u32 %v1957, 4294901760
    %1959 = vmatpush.msra.mxu0 %v1958
    %v1960 = vand.u32 %v1871, 4294901760
    %v1961 = vsub.f32 %v1871, %v1960
    %v1962 = vand.u32 %v1961, 4294901760
    %v1963 = vsub.f32 %v1961, %v1962
    %v1964 = vand.u32 %v1963, 4294901760
    %1965 = vmatpush.msra.mxu0 %v1964
    %v1966 = vand.u32 %v1870, 4294901760
    %v1967 = vsub.f32 %v1870, %v1966
    %v1968 = vand.u32 %v1967, 4294901760
    %v1969 = vsub.f32 %v1967, %v1968
    %v1970 = vand.u32 %v1969, 4294901760
    %1971 = vmatpush.msra.mxu0 %v1970
    %v1972 = vand.u32 %v1869, 4294901760
    %v1973 = vsub.f32 %v1869, %v1972
    %v1974 = vand.u32 %v1973, 4294901760
    %v1975 = vsub.f32 %v1973, %v1974
    %v1976 = vand.u32 %v1975, 4294901760
    %1977 = vmatpush.msra.mxu0 %v1976
    %v1978 = vand.u32 %v1868, 4294901760
    %v1979 = vsub.f32 %v1868, %v1978
    %v1980 = vand.u32 %v1979, 4294901760
    %v1981 = vsub.f32 %v1979, %v1980
    %v1982 = vand.u32 %v1981, 4294901760
    %1983 = vmatpush.msra.mxu0 %v1982
    %v1984 = vand.u32 %v1867, 4294901760
    %v1985 = vsub.f32 %v1867, %v1984
    %v1986 = vand.u32 %v1985, 4294901760
    %v1987 = vsub.f32 %v1985, %v1986
    %v1988 = vand.u32 %v1987, 4294901760
    %1989 = vmatpush.msra.mxu0 %v1988
    %v1990 = vand.u32 %v1866, 4294901760
    %v1991 = vsub.f32 %v1866, %v1990
    %v1992 = vand.u32 %v1991, 4294901760
    %v1993 = vsub.f32 %v1991, %v1992
    %v1994 = vand.u32 %v1993, 4294901760
    %1995 = vmatpush.msra.mxu0 %v1994
    %v1996 = vand.u32 %v1865, 4294901760
    %v1997 = vsub.f32 %v1865, %v1996
    %v1998 = vand.u32 %v1997, 4294901760
    %v1999 = vsub.f32 %v1997, %v1998
    %v2000 = vand.u32 %v1999, 4294901760
    %2001 = vmatpush.msra.mxu0 %v2000
    %v2002 = vand.u32 %v1864, 4294901760
    %v2003 = vsub.f32 %v1864, %v2002
    %v2004 = vand.u32 %v2003, 4294901760
    %v2005 = vsub.f32 %v2003, %v2004
    %v2006 = vand.u32 %v2005, 4294901760
    %2007 = vmatpush.msra.mxu0 %v2006
    %v2008 = vand.u32 %v1863, 4294901760
    %v2009 = vsub.f32 %v1863, %v2008
    %v2010 = vand.u32 %v2009, 4294901760
    %v2011 = vsub.f32 %v2009, %v2010
    %v2012 = vand.u32 %v2011, 4294901760
    %2013 = vmatpush.msra.mxu0 %v2012
    %v2014 = vand.u32 %v1862, 4294901760
    %v2015 = vsub.f32 %v1862, %v2014
    %v2016 = vand.u32 %v2015, 4294901760
    %v2017 = vsub.f32 %v2015, %v2016
    %v2018 = vand.u32 %v2017, 4294901760
    %2019 = vmatpush.msra.mxu0 %v2018
    %v2020 = vand.u32 %v1861, 4294901760
    %v2021 = vsub.f32 %v1861, %v2020
    %v2022 = vand.u32 %v2021, 4294901760
    %v2023 = vsub.f32 %v2021, %v2022
    %v2024 = vand.u32 %v2023, 4294901760
    %2025 = vmatpush.msra.mxu0 %v2024
    %v2026 = vand.u32 %v1878, 4294901760
    %2027 = vmatmul.f32.gmra.mxu0 %v2026
    %v2028 = vpop.f32.mrf.mxu0
    %v2029 = vadd.f32 %v1924, %v2028
    %v2030 = vand.u32 %v1881, 4294901760
    %2031 = vmatmul.f32.gmra.mxu0 %v2030
    %v2032 = vpop.f32.mrf.mxu0
    %v2033 = vadd.f32 %v1932, %v2032
    %v2034 = vand.u32 %v1884, 4294901760
    %2035 = vmatmul.f32.gmra.mxu0 %v2034
    %v2036 = vpop.f32.mrf.mxu0
    %v2037 = vadd.f32 %v1940, %v2036
    %v2038 = vand.u32 %v1887, 4294901760
    %2039 = vmatmul.f32.gmra.mxu0 %v2038
    %v2040 = vpop.f32.mrf.mxu0
    %v2041 = vadd.f32 %v1948, %v2040
    %2042 = vdwg.mxu0
    %2043 = vmatpush.msra.mxu0 0.0
    %2044 = vmatpush.msra.mxu0 0.0
    %2045 = vmatpush.msra.mxu0 0.0
    %2046 = vmatpush.msra.mxu0 0.0
    %v2047 = vand.u32 %v1872, 4294901760
    %v2048 = vsub.f32 %v1872, %v2047
    %2049 = vmatpush.msra.mxu0 %v2048
    %v2050 = vand.u32 %v1871, 4294901760
    %v2051 = vsub.f32 %v1871, %v2050
    %2052 = vmatpush.msra.mxu0 %v2051
    %v2053 = vand.u32 %v1870, 4294901760
    %v2054 = vsub.f32 %v1870, %v2053
    %2055 = vmatpush.msra.mxu0 %v2054
    %v2056 = vand.u32 %v1869, 4294901760
    %v2057 = vsub.f32 %v1869, %v2056
    %2058 = vmatpush.msra.mxu0 %v2057
    %v2059 = vand.u32 %v1868, 4294901760
    %v2060 = vsub.f32 %v1868, %v2059
    %2061 = vmatpush.msra.mxu0 %v2060
    %v2062 = vand.u32 %v1867, 4294901760
    %v2063 = vsub.f32 %v1867, %v2062
    %2064 = vmatpush.msra.mxu0 %v2063
    %v2065 = vand.u32 %v1866, 4294901760
    %v2066 = vsub.f32 %v1866, %v2065
    %2067 = vmatpush.msra.mxu0 %v2066
    %v2068 = vand.u32 %v1865, 4294901760
    %v2069 = vsub.f32 %v1865, %v2068
    %2070 = vmatpush.msra.mxu0 %v2069
    %v2071 = vand.u32 %v1864, 4294901760
    %v2072 = vsub.f32 %v1864, %v2071
    %2073 = vmatpush.msra.mxu0 %v2072
    %v2074 = vand.u32 %v1863, 4294901760
    %v2075 = vsub.f32 %v1863, %v2074
    %2076 = vmatpush.msra.mxu0 %v2075
    %v2077 = vand.u32 %v1862, 4294901760
    %v2078 = vsub.f32 %v1862, %v2077
    %2079 = vmatpush.msra.mxu0 %v2078
    %v2080 = vand.u32 %v1861, 4294901760
    %v2081 = vsub.f32 %v1861, %v2080
    %2082 = vmatpush.msra.mxu0 %v2081
    %v2083 = vand.u32 %v1878, 4294901760
    %v2084 = vsub.f32 %v1878, %v2083
    %2085 = vmatmul.f32.gmra.mxu0 %v2084
    %v2086 = vpop.f32.mrf.mxu0
    %v2087 = vadd.f32 %v2029, %v2086
    %v2088 = vand.u32 %v1881, 4294901760
    %v2089 = vsub.f32 %v1881, %v2088
    %2090 = vmatmul.f32.gmra.mxu0 %v2089
    %v2091 = vpop.f32.mrf.mxu0
    %v2092 = vadd.f32 %v2033, %v2091
    %v2093 = vand.u32 %v1884, 4294901760
    %v2094 = vsub.f32 %v1884, %v2093
    %2095 = vmatmul.f32.gmra.mxu0 %v2094
    %v2096 = vpop.f32.mrf.mxu0
    %v2097 = vadd.f32 %v2037, %v2096
    %v2098 = vand.u32 %v1887, 4294901760
    %v2099 = vsub.f32 %v1887, %v2098
    %2100 = vmatmul.f32.gmra.mxu0 %v2099
    %v2101 = vpop.f32.mrf.mxu0
    %v2102 = vadd.f32 %v2041, %v2101
    %2103 = vdwg.mxu0
    %2104 = vmatpush.msra.mxu0 0.0
    %2105 = vmatpush.msra.mxu0 0.0
    %2106 = vmatpush.msra.mxu0 0.0
    %2107 = vmatpush.msra.mxu0 0.0
    %v2108 = vand.u32 %v1872, 4294901760
    %2109 = vmatpush.msra.mxu0 %v2108
    %v2110 = vand.u32 %v1871, 4294901760
    %2111 = vmatpush.msra.mxu0 %v2110
    %v2112 = vand.u32 %v1870, 4294901760
    %2113 = vmatpush.msra.mxu0 %v2112
    %v2114 = vand.u32 %v1869, 4294901760
    %2115 = vmatpush.msra.mxu0 %v2114
    %v2116 = vand.u32 %v1868, 4294901760
    %2117 = vmatpush.msra.mxu0 %v2116
    %v2118 = vand.u32 %v1867, 4294901760
    %2119 = vmatpush.msra.mxu0 %v2118
    %v2120 = vand.u32 %v1866, 4294901760
    %2121 = vmatpush.msra.mxu0 %v2120
    %v2122 = vand.u32 %v1865, 4294901760
    %2123 = vmatpush.msra.mxu0 %v2122
    %v2124 = vand.u32 %v1864, 4294901760
    %2125 = vmatpush.msra.mxu0 %v2124
    %v2126 = vand.u32 %v1863, 4294901760
    %2127 = vmatpush.msra.mxu0 %v2126
    %v2128 = vand.u32 %v1862, 4294901760
    %2129 = vmatpush.msra.mxu0 %v2128
    %v2130 = vand.u32 %v1861, 4294901760
    %2131 = vmatpush.msra.mxu0 %v2130
    %v2132 = vand.u32 %v1878, 4294901760
    %v2133 = vsub.f32 %v1878, %v2132
    %v2134 = vand.u32 %v2133, 4294901760
    %2135 = vmatmul.f32.gmra.mxu0 %v2134
    %v2136 = vpop.f32.mrf.mxu0
    %v2137 = vadd.f32 %v2087, %v2136
    %v2138 = vand.u32 %v1881, 4294901760
    %v2139 = vsub.f32 %v1881, %v2138
    %v2140 = vand.u32 %v2139, 4294901760
    %2141 = vmatmul.f32.gmra.mxu0 %v2140
    %v2142 = vpop.f32.mrf.mxu0
    %v2143 = vadd.f32 %v2092, %v2142
    %v2144 = vand.u32 %v1884, 4294901760
    %v2145 = vsub.f32 %v1884, %v2144
    %v2146 = vand.u32 %v2145, 4294901760
    %2147 = vmatmul.f32.gmra.mxu0 %v2146
    %v2148 = vpop.f32.mrf.mxu0
    %v2149 = vadd.f32 %v2097, %v2148
    %v2150 = vand.u32 %v1887, 4294901760
    %v2151 = vsub.f32 %v1887, %v2150
    %v2152 = vand.u32 %v2151, 4294901760
    %2153 = vmatmul.f32.gmra.mxu0 %v2152
    %v2154 = vpop.f32.mrf.mxu0
    %v2155 = vadd.f32 %v2102, %v2154
    %2156 = vdwg.mxu0
    %2157 = vmatpush.msra.mxu0 0.0
    %2158 = vmatpush.msra.mxu0 0.0
    %2159 = vmatpush.msra.mxu0 0.0
    %2160 = vmatpush.msra.mxu0 0.0
    %v2161 = vand.u32 %v1872, 4294901760
    %v2162 = vsub.f32 %v1872, %v2161
    %v2163 = vand.u32 %v2162, 4294901760
    %2164 = vmatpush.msra.mxu0 %v2163
    %v2165 = vand.u32 %v1871, 4294901760
    %v2166 = vsub.f32 %v1871, %v2165
    %v2167 = vand.u32 %v2166, 4294901760
    %2168 = vmatpush.msra.mxu0 %v2167
    %v2169 = vand.u32 %v1870, 4294901760
    %v2170 = vsub.f32 %v1870, %v2169
    %v2171 = vand.u32 %v2170, 4294901760
    %2172 = vmatpush.msra.mxu0 %v2171
    %v2173 = vand.u32 %v1869, 4294901760
    %v2174 = vsub.f32 %v1869, %v2173
    %v2175 = vand.u32 %v2174, 4294901760
    %2176 = vmatpush.msra.mxu0 %v2175
    %v2177 = vand.u32 %v1868, 4294901760
    %v2178 = vsub.f32 %v1868, %v2177
    %v2179 = vand.u32 %v2178, 4294901760
    %2180 = vmatpush.msra.mxu0 %v2179
    %v2181 = vand.u32 %v1867, 4294901760
    %v2182 = vsub.f32 %v1867, %v2181
    %v2183 = vand.u32 %v2182, 4294901760
    %2184 = vmatpush.msra.mxu0 %v2183
    %v2185 = vand.u32 %v1866, 4294901760
    %v2186 = vsub.f32 %v1866, %v2185
    %v2187 = vand.u32 %v2186, 4294901760
    %2188 = vmatpush.msra.mxu0 %v2187
    %v2189 = vand.u32 %v1865, 4294901760
    %v2190 = vsub.f32 %v1865, %v2189
    %v2191 = vand.u32 %v2190, 4294901760
    %2192 = vmatpush.msra.mxu0 %v2191
    %v2193 = vand.u32 %v1864, 4294901760
    %v2194 = vsub.f32 %v1864, %v2193
    %v2195 = vand.u32 %v2194, 4294901760
    %2196 = vmatpush.msra.mxu0 %v2195
    %v2197 = vand.u32 %v1863, 4294901760
    %v2198 = vsub.f32 %v1863, %v2197
    %v2199 = vand.u32 %v2198, 4294901760
    %2200 = vmatpush.msra.mxu0 %v2199
    %v2201 = vand.u32 %v1862, 4294901760
    %v2202 = vsub.f32 %v1862, %v2201
    %v2203 = vand.u32 %v2202, 4294901760
    %2204 = vmatpush.msra.mxu0 %v2203
    %v2205 = vand.u32 %v1861, 4294901760
    %v2206 = vsub.f32 %v1861, %v2205
    %v2207 = vand.u32 %v2206, 4294901760
    %2208 = vmatpush.msra.mxu0 %v2207
    %v2209 = vand.u32 %v1878, 4294901760
    %2210 = vmatmul.f32.gmra.mxu0 %v2209
    %v2211 = vpop.f32.mrf.mxu0
    %v2212 = vadd.f32 %v2137, %v2211
    %v2213 = vand.u32 %v1881, 4294901760
    %2214 = vmatmul.f32.gmra.mxu0 %v2213
    %v2215 = vpop.f32.mrf.mxu0
    %v2216 = vadd.f32 %v2143, %v2215
    %v2217 = vand.u32 %v1884, 4294901760
    %2218 = vmatmul.f32.gmra.mxu0 %v2217
    %v2219 = vpop.f32.mrf.mxu0
    %v2220 = vadd.f32 %v2149, %v2219
    %v2221 = vand.u32 %v1887, 4294901760
    %2222 = vmatmul.f32.gmra.mxu0 %v2221
    %v2223 = vpop.f32.mrf.mxu0
    %v2224 = vadd.f32 %v2155, %v2223
    %2225 = vdwg.mxu0
    %2226 = vmatpush.msra.mxu0 0.0
    %2227 = vmatpush.msra.mxu0 0.0
    %2228 = vmatpush.msra.mxu0 0.0
    %2229 = vmatpush.msra.mxu0 0.0
    %v2230 = vand.u32 %v1872, 4294901760
    %2231 = vmatpush.msra.mxu0 %v2230
    %v2232 = vand.u32 %v1871, 4294901760
    %2233 = vmatpush.msra.mxu0 %v2232
    %v2234 = vand.u32 %v1870, 4294901760
    %2235 = vmatpush.msra.mxu0 %v2234
    %v2236 = vand.u32 %v1869, 4294901760
    %2237 = vmatpush.msra.mxu0 %v2236
    %v2238 = vand.u32 %v1868, 4294901760
    %2239 = vmatpush.msra.mxu0 %v2238
    %v2240 = vand.u32 %v1867, 4294901760
    %2241 = vmatpush.msra.mxu0 %v2240
    %v2242 = vand.u32 %v1866, 4294901760
    %2243 = vmatpush.msra.mxu0 %v2242
    %v2244 = vand.u32 %v1865, 4294901760
    %2245 = vmatpush.msra.mxu0 %v2244
    %v2246 = vand.u32 %v1864, 4294901760
    %2247 = vmatpush.msra.mxu0 %v2246
    %v2248 = vand.u32 %v1863, 4294901760
    %2249 = vmatpush.msra.mxu0 %v2248
    %v2250 = vand.u32 %v1862, 4294901760
    %2251 = vmatpush.msra.mxu0 %v2250
    %v2252 = vand.u32 %v1861, 4294901760
    %2253 = vmatpush.msra.mxu0 %v2252
    %v2254 = vand.u32 %v1878, 4294901760
    %2255 = vmatmul.f32.gmra.mxu0 %v2254
    %v2256 = vpop.f32.mrf.mxu0
    %v2257 = vadd.f32 %v2212, %v2256
    %v2258 = vand.u32 %v1881, 4294901760
    %2259 = vmatmul.f32.gmra.mxu0 %v2258
    %v2260 = vpop.f32.mrf.mxu0
    %v2261 = vadd.f32 %v2216, %v2260
    %v2262 = vand.u32 %v1884, 4294901760
    %2263 = vmatmul.f32.gmra.mxu0 %v2262
    %v2264 = vpop.f32.mrf.mxu0
    %v2265 = vadd.f32 %v2220, %v2264
    %v2266 = vand.u32 %v1887, 4294901760
    %2267 = vmatmul.f32.gmra.mxu0 %v2266
    %v2268 = vpop.f32.mrf.mxu0
    %v2269 = vadd.f32 %v2224, %v2268
    %2270 = vdwg.mxu0
    %v2271 = vmul.f32 %v2257, 0.5
    %v2272 = vmul.f32 %v2261, 0.5
    %v2273 = vmul.f32 %v2265, 0.5
    %v2274 = vmul.f32 %v2269, 0.5
    %v2275 = vmul.f32 %v2257, 0.70710677
    %v2276 = vmul.f32 %v2261, 0.70710677
    %v2277 = vmul.f32 %v2265, 0.70710677
    %v2278 = vmul.f32 %v2269, 0.70710677
    %v2279 = vand.u32 2147483647, %v2275
    %v2280 = vand.u32 2147483647, %v2276
    %v2281 = vand.u32 2147483647, %v2277
    %v2282 = vand.u32 2147483647, %v2278
    %v2283 = vmul.f32 %v2279, 0.3275911
    %v2284 = vmul.f32 %v2280, 0.3275911
    %v2285 = vmul.f32 %v2281, 0.3275911
    %v2286 = vmul.f32 %v2282, 0.3275911
    %v2287 = vadd.f32 %v2283, 1.0
    %v2288 = vadd.f32 %v2284, 1.0
    %v2289 = vadd.f32 %v2285, 1.0
    %v2290 = vadd.f32 %v2286, 1.0
    %v2291 = vrcp.pop %v2287
    %v2292 = vmul.f32 %v2287, %v2291
    %v2293 = vsub.f32 1.0, %v2292
    %v2294 = vmul.f32 %v2291, %v2293
    %v2295 = vadd.f32 %v2291, %v2294
    %vm2296 = vweird.f32 %v2287
    %vm2297 = vweird.f32 %v2291
    %vm2298 = vmor %vm2296, %vm2297
    %v2299 = vsel %vm2298, %v2291, %v2295
    %v2300 = vand.u32 2147483647, %v2287
    %vm2301 = vcmp.eq.f32.partialorder %v2300, 8.507059e+37
    %v2302 = vand.u32 %v2287, 2147483648
    %v2303 = vor.u32 1.1754944e-38, %v2302
    %v2304 = vsel %vm2301, %v2303, %v2299
    %v2305 = vmul.f32 1.0, %v2304
    %v2306 = vrcp.pop %v2288
    %v2307 = vmul.f32 %v2288, %v2306
    %v2308 = vsub.f32 1.0, %v2307
    %v2309 = vmul.f32 %v2306, %v2308
    %v2310 = vadd.f32 %v2306, %v2309
    %vm2311 = vweird.f32 %v2288
    %vm2312 = vweird.f32 %v2306
    %vm2313 = vmor %vm2311, %vm2312
    %v2314 = vsel %vm2313, %v2306, %v2310
    %v2315 = vand.u32 2147483647, %v2288
    %vm2316 = vcmp.eq.f32.partialorder %v2315, 8.507059e+37
    %v2317 = vand.u32 %v2288, 2147483648
    %v2318 = vor.u32 1.1754944e-38, %v2317
    %v2319 = vsel %vm2316, %v2318, %v2314
    %v2320 = vmul.f32 1.0, %v2319
    %v2321 = vrcp.pop %v2289
    %v2322 = vmul.f32 %v2289, %v2321
    %v2323 = vsub.f32 1.0, %v2322
    %v2324 = vmul.f32 %v2321, %v2323
    %v2325 = vadd.f32 %v2321, %v2324
    %vm2326 = vweird.f32 %v2289
    %vm2327 = vweird.f32 %v2321
    %vm2328 = vmor %vm2326, %vm2327
    %v2329 = vsel %vm2328, %v2321, %v2325
    %v2330 = vand.u32 2147483647, %v2289
    %vm2331 = vcmp.eq.f32.partialorder %v2330, 8.507059e+37
    %v2332 = vand.u32 %v2289, 2147483648
    %v2333 = vor.u32 1.1754944e-38, %v2332
    %v2334 = vsel %vm2331, %v2333, %v2329
    %v2335 = vmul.f32 1.0, %v2334
    %v2336 = vrcp.pop %v2290
    %v2337 = vmul.f32 %v2290, %v2336
    %v2338 = vsub.f32 1.0, %v2337
    %v2339 = vmul.f32 %v2336, %v2338
    %v2340 = vadd.f32 %v2336, %v2339
    %vm2341 = vweird.f32 %v2290
    %vm2342 = vweird.f32 %v2336
    %vm2343 = vmor %vm2341, %vm2342
    %v2344 = vsel %vm2343, %v2336, %v2340
    %v2345 = vand.u32 2147483647, %v2290
    %vm2346 = vcmp.eq.f32.partialorder %v2345, 8.507059e+37
    %v2347 = vand.u32 %v2290, 2147483648
    %v2348 = vor.u32 1.1754944e-38, %v2347
    %v2349 = vsel %vm2346, %v2348, %v2344
    %v2350 = vmul.f32 1.0, %v2349
    %v2351 = vmul.f32 %v2305, 1.0614054
    %v2352 = vmul.f32 %v2320, 1.0614054
    %v2353 = vmul.f32 %v2335, 1.0614054
    %v2354 = vmul.f32 %v2350, 1.0614054
    %v2355 = vadd.f32 %v2351, -1.4531521
    %v2356 = vadd.f32 %v2352, -1.4531521
    %v2357 = vadd.f32 %v2353, -1.4531521
    %v2358 = vadd.f32 %v2354, -1.4531521
    %v2359 = vmul.f32 %v2305, %v2355
    %v2360 = vmul.f32 %v2320, %v2356
    %v2361 = vmul.f32 %v2335, %v2357
    %v2362 = vmul.f32 %v2350, %v2358
    %v2363 = vadd.f32 %v2359, 1.4214138
    %v2364 = vadd.f32 %v2360, 1.4214138
    %v2365 = vadd.f32 %v2361, 1.4214138
    %v2366 = vadd.f32 %v2362, 1.4214138
    %v2367 = vmul.f32 %v2305, %v2363
    %v2368 = vmul.f32 %v2320, %v2364
    %v2369 = vmul.f32 %v2335, %v2365
    %v2370 = vmul.f32 %v2350, %v2366
    %v2371 = vadd.f32 %v2367, -0.28449672
    %v2372 = vadd.f32 %v2368, -0.28449672
    %v2373 = vadd.f32 %v2369, -0.28449672
    %v2374 = vadd.f32 %v2370, -0.28449672
    %v2375 = vmul.f32 %v2305, %v2371
    %v2376 = vmul.f32 %v2320, %v2372
    %v2377 = vmul.f32 %v2335, %v2373
    %v2378 = vmul.f32 %v2350, %v2374
    %v2379 = vadd.f32 %v2375, 0.2548296
    %v2380 = vadd.f32 %v2376, 0.2548296
    %v2381 = vadd.f32 %v2377, 0.2548296
    %v2382 = vadd.f32 %v2378, 0.2548296
    %v2383 = vmul.f32 %v2305, %v2379
    %v2384 = vmul.f32 %v2320, %v2380
    %v2385 = vmul.f32 %v2335, %v2381
    %v2386 = vmul.f32 %v2350, %v2382
    %v2387 = vmul.f32 %v2279, %v2279
    %v2388 = vmul.f32 %v2280, %v2280
    %v2389 = vmul.f32 %v2281, %v2281
    %v2390 = vmul.f32 %v2282, %v2282
    %v2391 = vsub.f32 0.0, %v2387
    %v2392 = vsub.f32 0.0, %v2388
    %v2393 = vsub.f32 0.0, %v2389
    %v2394 = vsub.f32 0.0, %v2390
    %v2395 = vmul.f32 %v2391, 1.442695
    %v2396 = vpow.pop %v2395
    %v2397 = vmul.f32 %v2392, 1.442695
    %v2398 = vpow.pop %v2397
    %v2399 = vmul.f32 %v2393, 1.442695
    %v2400 = vpow.pop %v2399
    %v2401 = vmul.f32 %v2394, 1.442695
    %v2402 = vpow.pop %v2401
    %v2403 = vmul.f32 %v2383, %v2396
    %v2404 = vmul.f32 %v2384, %v2398
    %v2405 = vmul.f32 %v2385, %v2400
    %v2406 = vmul.f32 %v2386, %v2402
    %v2407 = vsub.f32 1.0, %v2403
    %v2408 = vsub.f32 1.0, %v2404
    %v2409 = vsub.f32 1.0, %v2405
    %v2410 = vsub.f32 1.0, %v2406
    %vm2411 = vcmp.ge.f32.partialorder %v2275, 0.0
    %vm2412 = vcmp.ge.f32.partialorder %v2276, 0.0
    %vm2413 = vcmp.ge.f32.partialorder %v2277, 0.0
    %vm2414 = vcmp.ge.f32.partialorder %v2278, 0.0
    %v2415 = vsub.f32 0.0, %v2407
    %v2416 = vsub.f32 0.0, %v2408
    %v2417 = vsub.f32 0.0, %v2409
    %v2418 = vsub.f32 0.0, %v2410
    %v2419 = vsel %vm2411, %v2407, %v2415
    %v2420 = vsel %vm2412, %v2408, %v2416
    %v2421 = vsel %vm2413, %v2409, %v2417
    %v2422 = vsel %vm2414, %v2410, %v2418
    %v2423 = vadd.f32 %v2419, 1.0
    %v2424 = vadd.f32 %v2420, 1.0
    %v2425 = vadd.f32 %v2421, 1.0
    %v2426 = vadd.f32 %v2422, 1.0
    %v2427 = vmul.f32 %v2271, %v2423
    %v2428 = vmul.f32 %v2272, %v2424
    %v2429 = vmul.f32 %v2273, %v2425
    %v2430 = vmul.f32 %v2274, %v2426
    %v2435 = vrot.slane %v2427, 6
    %v2436 = vrot.slane %v2428, 6
    %v2437 = vsel %vm1788, %v2435, %v2436
    %v2438 = vrot.slane %v2429, 6
    %v2439 = vrot.slane %v2430, 6
    %v2440 = vsel %vm1788, %v2438, %v2439
    %v2447 = vsel %vm1788, 0.0, %v2435
    %v2448 = vsel %vm1788, 0.0, %v2438
    %v2449 = vsel %vm1788, %v2436, 0.0
    %v2450 = vsel %vm1788, %v2439, 0.0
    %v2455 = vrot.slane %v2447, 2
    %v2456 = vrot.slane %v2437, 2
    %v2457 = vsel %vm530, %v2455, %v2456
    %v2458 = vrot.slane %v2449, 2
    %v2459 = vsel %vm530, %v2456, %v2458
    %v2460 = vrot.slane %v2448, 2
    %v2461 = vrot.slane %v2440, 2
    %v2462 = vsel %vm530, %v2460, %v2461
    %v2463 = vrot.slane %v2450, 2
    %v2464 = vsel %vm530, %v2461, %v2463
    %2465 = vrot.lane.b32.xlu0 %v2457, 32
    %v2466 = vpop.permute.xlu0 %2465
    %2467 = vrot.lane.b32.xlu0 %v2459, 32
    %v2468 = vpop.permute.xlu0 %2467
    %2469 = vrot.lane.b32.xlu0 %v2462, 32
    %v2470 = vpop.permute.xlu0 %2469
    %2471 = vrot.lane.b32.xlu0 %v2464, 32
    %v2472 = vpop.permute.xlu0 %2471
    %v2477 = vrot.slane %v2447, 4
    %v2478 = vrot.slane %v2437, 4
    %v2479 = vsel %vm79, %v2477, %v2478
    %v2480 = vrot.slane %v2449, 4
    %v2481 = vsel %vm79, %v2478, %v2480
    %v2482 = vrot.slane %v2448, 4
    %v2483 = vrot.slane %v2440, 4
    %v2484 = vsel %vm79, %v2482, %v2483
    %v2485 = vrot.slane %v2450, 4
    %v2486 = vsel %vm79, %v2483, %v2485
    %2487 = vrot.lane.b32.xlu0 %v2479, 64
    %v2488 = vpop.permute.xlu0 %2487
    %2489 = vrot.lane.b32.xlu0 %v2481, 64
    %v2490 = vpop.permute.xlu0 %2489
    %2491 = vrot.lane.b32.xlu0 %v2484, 64
    %v2492 = vpop.permute.xlu0 %2491
    %2493 = vrot.lane.b32.xlu0 %v2486, 64
    %v2494 = vpop.permute.xlu0 %2493
    %v2499 = vsel %vm553, %v2447, %v2466
    %v2500 = vsel %vm553, %v2437, %v2468
    %v2501 = vsel %vm553, %v2448, %v2470
    %v2502 = vsel %vm553, %v2440, %v2472
    %v2503 = vsel %vm558, %v2499, %v2488
    %v2504 = vsel %vm558, %v2500, %v2490
    %v2505 = vsel %vm558, %v2501, %v2492
    %v2506 = vsel %vm558, %v2502, %v2494
    %v2507 = vld [vmem:[%s9] sm:$0xff]
    %v2508 = vld [vmem:[%s9 + $0x8] sm:$0xff]
    %v2509 = vld [vmem:[%s9 + $0x10] sm:$0xff]
    %v2510 = vld [vmem:[%s9 + $0x18] sm:$0xff]
    %v2511 = vld [vmem:[%s9 + $0x20] sm:$0xff]
    %v2512 = vld [vmem:[%s9 + $0x28] sm:$0xff]
    %v2513 = vld [vmem:[%s9 + $0x30] sm:$0xff]
    %v2514 = vld [vmem:[%s9 + $0x38] sm:$0xff]
    %v2515 = vld [vmem:[%s9 + $0x40] sm:$0xff]
    %v2516 = vld [vmem:[%s9 + $0x48] sm:$0xff]
    %v2517 = vld [vmem:[%s9 + $0x50] sm:$0xff]
    %v2518 = vld [vmem:[%s9 + $0x58] sm:$0xff]
    %v2519 = vld [vmem:[%s10] sm:$0x1]
    %v2521 = vperm.slane %v2519, 0
    %v2524 = vsel %vm579, %v2503, 0
    %v2527 = vsel %vm579, %v2504, 0
    %v2530 = vsel %vm579, %v2505, 0
    %v2533 = vsel %vm579, %v2506, 0
    %2535 = vmatpush.msra.mxu0 0.0
    %2536 = vmatpush.msra.mxu0 0.0
    %2537 = vmatpush.msra.mxu0 0.0
    %2538 = vmatpush.msra.mxu0 0.0
    %v2539 = vand.u32 %v2518, 4294901760
    %2540 = vmatpush.msra.mxu0 %v2539
    %v2541 = vand.u32 %v2517, 4294901760
    %2542 = vmatpush.msra.mxu0 %v2541
    %v2543 = vand.u32 %v2516, 4294901760
    %2544 = vmatpush.msra.mxu0 %v2543
    %v2545 = vand.u32 %v2515, 4294901760
    %2546 = vmatpush.msra.mxu0 %v2545
    %v2547 = vand.u32 %v2514, 4294901760
    %2548 = vmatpush.msra.mxu0 %v2547
    %v2549 = vand.u32 %v2513, 4294901760
    %2550 = vmatpush.msra.mxu0 %v2549
    %v2551 = vand.u32 %v2512, 4294901760
    %2552 = vmatpush.msra.mxu0 %v2551
    %v2553 = vand.u32 %v2511, 4294901760
    %2554 = vmatpush.msra.mxu0 %v2553
    %v2555 = vand.u32 %v2510, 4294901760
    %2556 = vmatpush.msra.mxu0 %v2555
    %v2557 = vand.u32 %v2509, 4294901760
    %2558 = vmatpush.msra.mxu0 %v2557
    %v2559 = vand.u32 %v2508, 4294901760
    %2560 = vmatpush.msra.mxu0 %v2559
    %v2561 = vand.u32 %v2507, 4294901760
    %2562 = vmatpush.msra.mxu0 %v2561
    %v2563 = vand.u32 %v2524, 4294901760
    %v2564 = vsub.f32 %v2524, %v2563
    %v2565 = vand.u32 %v2564, 4294901760
    %v2566 = vsub.f32 %v2564, %v2565
    %v2567 = vand.u32 %v2566, 4294901760
    %2568 = vmatmul.f32.gmra.mxu0 %v2567
    %v2569 = vpop.f32.mrf.mxu0
    %v2570 = vadd.f32 %v2521, %v2569
    %v2571 = vand.u32 %v2527, 4294901760
    %v2572 = vsub.f32 %v2527, %v2571
    %v2573 = vand.u32 %v2572, 4294901760
    %v2574 = vsub.f32 %v2572, %v2573
    %v2575 = vand.u32 %v2574, 4294901760
    %2576 = vmatmul.f32.gmra.mxu0 %v2575
    %v2577 = vpop.f32.mrf.mxu0
    %v2578 = vadd.f32 %v2521, %v2577
    %v2579 = vand.u32 %v2530, 4294901760
    %v2580 = vsub.f32 %v2530, %v2579
    %v2581 = vand.u32 %v2580, 4294901760
    %v2582 = vsub.f32 %v2580, %v2581
    %v2583 = vand.u32 %v2582, 4294901760
    %2584 = vmatmul.f32.gmra.mxu0 %v2583
    %v2585 = vpop.f32.mrf.mxu0
    %v2586 = vadd.f32 %v2521, %v2585
    %v2587 = vand.u32 %v2533, 4294901760
    %v2588 = vsub.f32 %v2533, %v2587
    %v2589 = vand.u32 %v2588, 4294901760
    %v2590 = vsub.f32 %v2588, %v2589
    %v2591 = vand.u32 %v2590, 4294901760
    %2592 = vmatmul.f32.gmra.mxu0 %v2591
    %v2593 = vpop.f32.mrf.mxu0
    %v2594 = vadd.f32 %v2521, %v2593
    %2595 = vdwg.mxu0
    %2596 = vmatpush.msra.mxu0 0.0
    %2597 = vmatpush.msra.mxu0 0.0
    %2598 = vmatpush.msra.mxu0 0.0
    %2599 = vmatpush.msra.mxu0 0.0
    %v2600 = vand.u32 %v2518, 4294901760
    %v2601 = vsub.f32 %v2518, %v2600
    %v2602 = vand.u32 %v2601, 4294901760
    %v2603 = vsub.f32 %v2601, %v2602
    %v2604 = vand.u32 %v2603, 4294901760
    %2605 = vmatpush.msra.mxu0 %v2604
    %v2606 = vand.u32 %v2517, 4294901760
    %v2607 = vsub.f32 %v2517, %v2606
    %v2608 = vand.u32 %v2607, 4294901760
    %v2609 = vsub.f32 %v2607, %v2608
    %v2610 = vand.u32 %v2609, 4294901760
    %2611 = vmatpush.msra.mxu0 %v2610
    %v2612 = vand.u32 %v2516, 4294901760
    %v2613 = vsub.f32 %v2516, %v2612
    %v2614 = vand.u32 %v2613, 4294901760
    %v2615 = vsub.f32 %v2613, %v2614
    %v2616 = vand.u32 %v2615, 4294901760
    %2617 = vmatpush.msra.mxu0 %v2616
    %v2618 = vand.u32 %v2515, 4294901760
    %v2619 = vsub.f32 %v2515, %v2618
    %v2620 = vand.u32 %v2619, 4294901760
    %v2621 = vsub.f32 %v2619, %v2620
    %v2622 = vand.u32 %v2621, 4294901760
    %2623 = vmatpush.msra.mxu0 %v2622
    %v2624 = vand.u32 %v2514, 4294901760
    %v2625 = vsub.f32 %v2514, %v2624
    %v2626 = vand.u32 %v2625, 4294901760
    %v2627 = vsub.f32 %v2625, %v2626
    %v2628 = vand.u32 %v2627, 4294901760
    %2629 = vmatpush.msra.mxu0 %v2628
    %v2630 = vand.u32 %v2513, 4294901760
    %v2631 = vsub.f32 %v2513, %v2630
    %v2632 = vand.u32 %v2631, 4294901760
    %v2633 = vsub.f32 %v2631, %v2632
    %v2634 = vand.u32 %v2633, 4294901760
    %2635 = vmatpush.msra.mxu0 %v2634
    %v2636 = vand.u32 %v2512, 4294901760
    %v2637 = vsub.f32 %v2512, %v2636
    %v2638 = vand.u32 %v2637, 4294901760
    %v2639 = vsub.f32 %v2637, %v2638
    %v2640 = vand.u32 %v2639, 4294901760
    %2641 = vmatpush.msra.mxu0 %v2640
    %v2642 = vand.u32 %v2511, 4294901760
    %v2643 = vsub.f32 %v2511, %v2642
    %v2644 = vand.u32 %v2643, 4294901760
    %v2645 = vsub.f32 %v2643, %v2644
    %v2646 = vand.u32 %v2645, 4294901760
    %2647 = vmatpush.msra.mxu0 %v2646
    %v2648 = vand.u32 %v2510, 4294901760
    %v2649 = vsub.f32 %v2510, %v2648
    %v2650 = vand.u32 %v2649, 4294901760
    %v2651 = vsub.f32 %v2649, %v2650
    %v2652 = vand.u32 %v2651, 4294901760
    %2653 = vmatpush.msra.mxu0 %v2652
    %v2654 = vand.u32 %v2509, 4294901760
    %v2655 = vsub.f32 %v2509, %v2654
    %v2656 = vand.u32 %v2655, 4294901760
    %v2657 = vsub.f32 %v2655, %v2656
    %v2658 = vand.u32 %v2657, 4294901760
    %2659 = vmatpush.msra.mxu0 %v2658
    %v2660 = vand.u32 %v2508, 4294901760
    %v2661 = vsub.f32 %v2508, %v2660
    %v2662 = vand.u32 %v2661, 4294901760
    %v2663 = vsub.f32 %v2661, %v2662
    %v2664 = vand.u32 %v2663, 4294901760
    %2665 = vmatpush.msra.mxu0 %v2664
    %v2666 = vand.u32 %v2507, 4294901760
    %v2667 = vsub.f32 %v2507, %v2666
    %v2668 = vand.u32 %v2667, 4294901760
    %v2669 = vsub.f32 %v2667, %v2668
    %v2670 = vand.u32 %v2669, 4294901760
    %2671 = vmatpush.msra.mxu0 %v2670
    %v2672 = vand.u32 %v2524, 4294901760
    %2673 = vmatmul.f32.gmra.mxu0 %v2672
    %v2674 = vpop.f32.mrf.mxu0
    %v2675 = vadd.f32 %v2570, %v2674
    %v2676 = vand.u32 %v2527, 4294901760
    %2677 = vmatmul.f32.gmra.mxu0 %v2676
    %v2678 = vpop.f32.mrf.mxu0
    %v2679 = vadd.f32 %v2578, %v2678
    %v2680 = vand.u32 %v2530, 4294901760
    %2681 = vmatmul.f32.gmra.mxu0 %v2680
    %v2682 = vpop.f32.mrf.mxu0
    %v2683 = vadd.f32 %v2586, %v2682
    %v2684 = vand.u32 %v2533, 4294901760
    %2685 = vmatmul.f32.gmra.mxu0 %v2684
    %v2686 = vpop.f32.mrf.mxu0
    %v2687 = vadd.f32 %v2594, %v2686
    %2688 = vdwg.mxu0
    %2689 = vmatpush.msra.mxu0 0.0
    %2690 = vmatpush.msra.mxu0 0.0
    %2691 = vmatpush.msra.mxu0 0.0
    %2692 = vmatpush.msra.mxu0 0.0
    %v2693 = vand.u32 %v2518, 4294901760
    %v2694 = vsub.f32 %v2518, %v2693
    %2695 = vmatpush.msra.mxu0 %v2694
    %v2696 = vand.u32 %v2517, 4294901760
    %v2697 = vsub.f32 %v2517, %v2696
    %2698 = vmatpush.msra.mxu0 %v2697
    %v2699 = vand.u32 %v2516, 4294901760
    %v2700 = vsub.f32 %v2516, %v2699
    %2701 = vmatpush.msra.mxu0 %v2700
    %v2702 = vand.u32 %v2515, 4294901760
    %v2703 = vsub.f32 %v2515, %v2702
    %2704 = vmatpush.msra.mxu0 %v2703
    %v2705 = vand.u32 %v2514, 4294901760
    %v2706 = vsub.f32 %v2514, %v2705
    %2707 = vmatpush.msra.mxu0 %v2706
    %v2708 = vand.u32 %v2513, 4294901760
    %v2709 = vsub.f32 %v2513, %v2708
    %2710 = vmatpush.msra.mxu0 %v2709
    %v2711 = vand.u32 %v2512, 4294901760
    %v2712 = vsub.f32 %v2512, %v2711
    %2713 = vmatpush.msra.mxu0 %v2712
    %v2714 = vand.u32 %v2511, 4294901760
    %v2715 = vsub.f32 %v2511, %v2714
    %2716 = vmatpush.msra.mxu0 %v2715
    %v2717 = vand.u32 %v2510, 4294901760
    %v2718 = vsub.f32 %v2510, %v2717
    %2719 = vmatpush.msra.mxu0 %v2718
    %v2720 = vand.u32 %v2509, 4294901760
    %v2721 = vsub.f32 %v2509, %v2720
    %2722 = vmatpush.msra.mxu0 %v2721
    %v2723 = vand.u32 %v2508, 4294901760
    %v2724 = vsub.f32 %v2508, %v2723
    %2725 = vmatpush.msra.mxu0 %v2724
    %v2726 = vand.u32 %v2507, 4294901760
    %v2727 = vsub.f32 %v2507, %v2726
    %2728 = vmatpush.msra.mxu0 %v2727
    %v2729 = vand.u32 %v2524, 4294901760
    %v2730 = vsub.f32 %v2524, %v2729
    %2731 = vmatmul.f32.gmra.mxu0 %v2730
    %v2732 = vpop.f32.mrf.mxu0
    %v2733 = vadd.f32 %v2675, %v2732
    %v2734 = vand.u32 %v2527, 4294901760
    %v2735 = vsub.f32 %v2527, %v2734
    %2736 = vmatmul.f32.gmra.mxu0 %v2735
    %v2737 = vpop.f32.mrf.mxu0
    %v2738 = vadd.f32 %v2679, %v2737
    %v2739 = vand.u32 %v2530, 4294901760
    %v2740 = vsub.f32 %v2530, %v2739
    %2741 = vmatmul.f32.gmra.mxu0 %v2740
    %v2742 = vpop.f32.mrf.mxu0
    %v2743 = vadd.f32 %v2683, %v2742
    %v2744 = vand.u32 %v2533, 4294901760
    %v2745 = vsub.f32 %v2533, %v2744
    %2746 = vmatmul.f32.gmra.mxu0 %v2745
    %v2747 = vpop.f32.mrf.mxu0
    %v2748 = vadd.f32 %v2687, %v2747
    %2749 = vdwg.mxu0
    %2750 = vmatpush.msra.mxu0 0.0
    %2751 = vmatpush.msra.mxu0 0.0
    %2752 = vmatpush.msra.mxu0 0.0
    %2753 = vmatpush.msra.mxu0 0.0
    %v2754 = vand.u32 %v2518, 4294901760
    %2755 = vmatpush.msra.mxu0 %v2754
    %v2756 = vand.u32 %v2517, 4294901760
    %2757 = vmatpush.msra.mxu0 %v2756
    %v2758 = vand.u32 %v2516, 4294901760
    %2759 = vmatpush.msra.mxu0 %v2758
    %v2760 = vand.u32 %v2515, 4294901760
    %2761 = vmatpush.msra.mxu0 %v2760
    %v2762 = vand.u32 %v2514, 4294901760
    %2763 = vmatpush.msra.mxu0 %v2762
    %v2764 = vand.u32 %v2513, 4294901760
    %2765 = vmatpush.msra.mxu0 %v2764
    %v2766 = vand.u32 %v2512, 4294901760
    %2767 = vmatpush.msra.mxu0 %v2766
    %v2768 = vand.u32 %v2511, 4294901760
    %2769 = vmatpush.msra.mxu0 %v2768
    %v2770 = vand.u32 %v2510, 4294901760
    %2771 = vmatpush.msra.mxu0 %v2770
    %v2772 = vand.u32 %v2509, 4294901760
    %2773 = vmatpush.msra.mxu0 %v2772
    %v2774 = vand.u32 %v2508, 4294901760
    %2775 = vmatpush.msra.mxu0 %v2774
    %v2776 = vand.u32 %v2507, 4294901760
    %2777 = vmatpush.msra.mxu0 %v2776
    %v2778 = vand.u32 %v2524, 4294901760
    %v2779 = vsub.f32 %v2524, %v2778
    %v2780 = vand.u32 %v2779, 4294901760
    %2781 = vmatmul.f32.gmra.mxu0 %v2780
    %v2782 = vpop.f32.mrf.mxu0
    %v2783 = vadd.f32 %v2733, %v2782
    %v2784 = vand.u32 %v2527, 4294901760
    %v2785 = vsub.f32 %v2527, %v2784
    %v2786 = vand.u32 %v2785, 4294901760
    %2787 = vmatmul.f32.gmra.mxu0 %v2786
    %v2788 = vpop.f32.mrf.mxu0
    %v2789 = vadd.f32 %v2738, %v2788
    %v2790 = vand.u32 %v2530, 4294901760
    %v2791 = vsub.f32 %v2530, %v2790
    %v2792 = vand.u32 %v2791, 4294901760
    %2793 = vmatmul.f32.gmra.mxu0 %v2792
    %v2794 = vpop.f32.mrf.mxu0
    %v2795 = vadd.f32 %v2743, %v2794
    %v2796 = vand.u32 %v2533, 4294901760
    %v2797 = vsub.f32 %v2533, %v2796
    %v2798 = vand.u32 %v2797, 4294901760
    %2799 = vmatmul.f32.gmra.mxu0 %v2798
    %v2800 = vpop.f32.mrf.mxu0
    %v2801 = vadd.f32 %v2748, %v2800
    %2802 = vdwg.mxu0
    %2803 = vmatpush.msra.mxu0 0.0
    %2804 = vmatpush.msra.mxu0 0.0
    %2805 = vmatpush.msra.mxu0 0.0
    %2806 = vmatpush.msra.mxu0 0.0
    %v2807 = vand.u32 %v2518, 4294901760
    %v2808 = vsub.f32 %v2518, %v2807
    %v2809 = vand.u32 %v2808, 4294901760
    %2810 = vmatpush.msra.mxu0 %v2809
    %v2811 = vand.u32 %v2517, 4294901760
    %v2812 = vsub.f32 %v2517, %v2811
    %v2813 = vand.u32 %v2812, 4294901760
    %2814 = vmatpush.msra.mxu0 %v2813
    %v2815 = vand.u32 %v2516, 4294901760
    %v2816 = vsub.f32 %v2516, %v2815
    %v2817 = vand.u32 %v2816, 4294901760
    %2818 = vmatpush.msra.mxu0 %v2817
    %v2819 = vand.u32 %v2515, 4294901760
    %v2820 = vsub.f32 %v2515, %v2819
    %v2821 = vand.u32 %v2820, 4294901760
    %2822 = vmatpush.msra.mxu0 %v2821
    %v2823 = vand.u32 %v2514, 4294901760
    %v2824 = vsub.f32 %v2514, %v2823
    %v2825 = vand.u32 %v2824, 4294901760
    %2826 = vmatpush.msra.mxu0 %v2825
    %v2827 = vand.u32 %v2513, 4294901760
    %v2828 = vsub.f32 %v2513, %v2827
    %v2829 = vand.u32 %v2828, 4294901760
    %2830 = vmatpush.msra.mxu0 %v2829
    %v2831 = vand.u32 %v2512, 4294901760
    %v2832 = vsub.f32 %v2512, %v2831
    %v2833 = vand.u32 %v2832, 4294901760
    %2834 = vmatpush.msra.mxu0 %v2833
    %v2835 = vand.u32 %v2511, 4294901760
    %v2836 = vsub.f32 %v2511, %v2835
    %v2837 = vand.u32 %v2836, 4294901760
    %2838 = vmatpush.msra.mxu0 %v2837
    %v2839 = vand.u32 %v2510, 4294901760
    %v2840 = vsub.f32 %v2510, %v2839
    %v2841 = vand.u32 %v2840, 4294901760
    %2842 = vmatpush.msra.mxu0 %v2841
    %v2843 = vand.u32 %v2509, 4294901760
    %v2844 = vsub.f32 %v2509, %v2843
    %v2845 = vand.u32 %v2844, 4294901760
    %2846 = vmatpush.msra.mxu0 %v2845
    %v2847 = vand.u32 %v2508, 4294901760
    %v2848 = vsub.f32 %v2508, %v2847
    %v2849 = vand.u32 %v2848, 4294901760
    %2850 = vmatpush.msra.mxu0 %v2849
    %v2851 = vand.u32 %v2507, 4294901760
    %v2852 = vsub.f32 %v2507, %v2851
    %v2853 = vand.u32 %v2852, 4294901760
    %2854 = vmatpush.msra.mxu0 %v2853
    %v2855 = vand.u32 %v2524, 4294901760
    %2856 = vmatmul.f32.gmra.mxu0 %v2855
    %v2857 = vpop.f32.mrf.mxu0
    %v2858 = vadd.f32 %v2783, %v2857
    %v2859 = vand.u32 %v2527, 4294901760
    %2860 = vmatmul.f32.gmra.mxu0 %v2859
    %v2861 = vpop.f32.mrf.mxu0
    %v2862 = vadd.f32 %v2789, %v2861
    %v2863 = vand.u32 %v2530, 4294901760
    %2864 = vmatmul.f32.gmra.mxu0 %v2863
    %v2865 = vpop.f32.mrf.mxu0
    %v2866 = vadd.f32 %v2795, %v2865
    %v2867 = vand.u32 %v2533, 4294901760
    %2868 = vmatmul.f32.gmra.mxu0 %v2867
    %v2869 = vpop.f32.mrf.mxu0
    %v2870 = vadd.f32 %v2801, %v2869
    %2871 = vdwg.mxu0
    %2872 = vmatpush.msra.mxu0 0.0
    %2873 = vmatpush.msra.mxu0 0.0
    %2874 = vmatpush.msra.mxu0 0.0
    %2875 = vmatpush.msra.mxu0 0.0
    %v2876 = vand.u32 %v2518, 4294901760
    %2877 = vmatpush.msra.mxu0 %v2876
    %v2878 = vand.u32 %v2517, 4294901760
    %2879 = vmatpush.msra.mxu0 %v2878
    %v2880 = vand.u32 %v2516, 4294901760
    %2881 = vmatpush.msra.mxu0 %v2880
    %v2882 = vand.u32 %v2515, 4294901760
    %2883 = vmatpush.msra.mxu0 %v2882
    %v2884 = vand.u32 %v2514, 4294901760
    %2885 = vmatpush.msra.mxu0 %v2884
    %v2886 = vand.u32 %v2513, 4294901760
    %2887 = vmatpush.msra.mxu0 %v2886
    %v2888 = vand.u32 %v2512, 4294901760
    %2889 = vmatpush.msra.mxu0 %v2888
    %v2890 = vand.u32 %v2511, 4294901760
    %2891 = vmatpush.msra.mxu0 %v2890
    %v2892 = vand.u32 %v2510, 4294901760
    %2893 = vmatpush.msra.mxu0 %v2892
    %v2894 = vand.u32 %v2509, 4294901760
    %2895 = vmatpush.msra.mxu0 %v2894
    %v2896 = vand.u32 %v2508, 4294901760
    %2897 = vmatpush.msra.mxu0 %v2896
    %v2898 = vand.u32 %v2507, 4294901760
    %2899 = vmatpush.msra.mxu0 %v2898
    %v2900 = vand.u32 %v2524, 4294901760
    %2901 = vmatmul.f32.gmra.mxu0 %v2900
    %v2902 = vpop.f32.mrf.mxu0
    %v2903 = vadd.f32 %v2858, %v2902
    %v2904 = vand.u32 %v2527, 4294901760
    %2905 = vmatmul.f32.gmra.mxu0 %v2904
    %v2906 = vpop.f32.mrf.mxu0
    %v2907 = vadd.f32 %v2862, %v2906
    %v2908 = vand.u32 %v2530, 4294901760
    %2909 = vmatmul.f32.gmra.mxu0 %v2908
    %v2910 = vpop.f32.mrf.mxu0
    %v2911 = vadd.f32 %v2866, %v2910
    %v2912 = vand.u32 %v2533, 4294901760
    %2913 = vmatmul.f32.gmra.mxu0 %v2912
    %v2914 = vpop.f32.mrf.mxu0
    %v2915 = vadd.f32 %v2870, %v2914
    %2916 = vdwg.mxu0
    %v2917 = vadd.f32 %v2903, %v1620
    %v2918 = vadd.f32 %v2907, %v1621
    %v2919 = vadd.f32 %v2911, %v1622
    %v2920 = vadd.f32 %v2915, %v1623
    %v2921 = vld [vmem:[%s11] sm:$0xff]
    %v2922 = vld [vmem:[%s11 + $0x8] sm:$0xff]
    %v2923 = vld [vmem:[%s11 + $0x10] sm:$0xff]
    %v2924 = vld [vmem:[%s11 + $0x18] sm:$0xff]
    %v2925 = vld [vmem:[%s12] sm:$0x1]
    %v2927 = vperm.slane %v2925, 0
    %v2930 = vsel %vm553, %v2917, 0
    %v2933 = vsel %vm553, %v2918, 0
    %v2936 = vsel %vm553, %v2919, 0
    %v2939 = vsel %vm553, %v2920, 0
    %2941 = vmatpush.msra.mxu0 0.0
    %2942 = vmatpush.msra.mxu0 0.0
    %2943 = vmatpush.msra.mxu0 0.0
    %2944 = vmatpush.msra.mxu0 0.0
    %2945 = vmatpush.msra.mxu0 0.0
    %2946 = vmatpush.msra.mxu0 0.0
    %2947 = vmatpush.msra.mxu0 0.0
    %2948 = vmatpush.msra.mxu0 0.0
    %2949 = vmatpush.msra.mxu0 0.0
    %2950 = vmatpush.msra.mxu0 0.0
    %2951 = vmatpush.msra.mxu0 0.0
    %2952 = vmatpush.msra.mxu0 0.0
    %v2953 = vand.u32 %v2924, 4294901760
    %2954 = vmatpush.msra.mxu0 %v2953
    %v2955 = vand.u32 %v2923, 4294901760
    %2956 = vmatpush.msra.mxu0 %v2955
    %v2957 = vand.u32 %v2922, 4294901760
    %2958 = vmatpush.msra.mxu0 %v2957
    %v2959 = vand.u32 %v2921, 4294901760
    %2960 = vmatpush.msra.mxu0 %v2959
    %v2961 = vand.u32 %v2930, 4294901760
    %v2962 = vsub.f32 %v2930, %v2961
    %v2963 = vand.u32 %v2962, 4294901760
    %v2964 = vsub.f32 %v2962, %v2963
    %v2965 = vand.u32 %v2964, 4294901760
    %2966 = vmatmul.f32.gmra.mxu0 %v2965
    %v2967 = vpop.f32.mrf.mxu0
    %v2968 = vand.u32 %v2933, 4294901760
    %v2969 = vsub.f32 %v2933, %v2968
    %v2970 = vand.u32 %v2969, 4294901760
    %v2971 = vsub.f32 %v2969, %v2970
    %v2972 = vand.u32 %v2971, 4294901760
    %2973 = vmatmul.f32.gmra.mxu0 %v2972
    %v2974 = vpop.f32.mrf.mxu0
    %v2975 = vadd.f32 %v2927, %v2974
    %v2976 = vand.u32 %v2936, 4294901760
    %v2977 = vsub.f32 %v2936, %v2976
    %v2978 = vand.u32 %v2977, 4294901760
    %v2979 = vsub.f32 %v2977, %v2978
    %v2980 = vand.u32 %v2979, 4294901760
    %2981 = vmatmul.f32.gmra.mxu0 %v2980
    %v2982 = vpop.f32.mrf.mxu0
    %v2983 = vand.u32 %v2939, 4294901760
    %v2984 = vsub.f32 %v2939, %v2983
    %v2985 = vand.u32 %v2984, 4294901760
    %v2986 = vsub.f32 %v2984, %v2985
    %v2987 = vand.u32 %v2986, 4294901760
    %2988 = vmatmul.f32.gmra.mxu0 %v2987
    %v2989 = vpop.f32.mrf.mxu0
    %v2990 = vadd.f32 %v2927, %v2989
    %2991 = vdwg.mxu0
    %2992 = vmatpush.msra.mxu0 0.0
    %2993 = vmatpush.msra.mxu0 0.0
    %2994 = vmatpush.msra.mxu0 0.0
    %2995 = vmatpush.msra.mxu0 0.0
    %2996 = vmatpush.msra.mxu0 0.0
    %2997 = vmatpush.msra.mxu0 0.0
    %2998 = vmatpush.msra.mxu0 0.0
    %2999 = vmatpush.msra.mxu0 0.0
    %3000 = vmatpush.msra.mxu0 0.0
    %3001 = vmatpush.msra.mxu0 0.0
    %3002 = vmatpush.msra.mxu0 0.0
    %3003 = vmatpush.msra.mxu0 0.0
    %v3004 = vand.u32 %v2924, 4294901760
    %v3005 = vsub.f32 %v2924, %v3004
    %v3006 = vand.u32 %v3005, 4294901760
    %v3007 = vsub.f32 %v3005, %v3006
    %v3008 = vand.u32 %v3007, 4294901760
    %3009 = vmatpush.msra.mxu0 %v3008
    %v3010 = vand.u32 %v2923, 4294901760
    %v3011 = vsub.f32 %v2923, %v3010
    %v3012 = vand.u32 %v3011, 4294901760
    %v3013 = vsub.f32 %v3011, %v3012
    %v3014 = vand.u32 %v3013, 4294901760
    %3015 = vmatpush.msra.mxu0 %v3014
    %v3016 = vand.u32 %v2922, 4294901760
    %v3017 = vsub.f32 %v2922, %v3016
    %v3018 = vand.u32 %v3017, 4294901760
    %v3019 = vsub.f32 %v3017, %v3018
    %v3020 = vand.u32 %v3019, 4294901760
    %3021 = vmatpush.msra.mxu0 %v3020
    %v3022 = vand.u32 %v2921, 4294901760
    %v3023 = vsub.f32 %v2921, %v3022
    %v3024 = vand.u32 %v3023, 4294901760
    %v3025 = vsub.f32 %v3023, %v3024
    %v3026 = vand.u32 %v3025, 4294901760
    %3027 = vmatpush.msra.mxu0 %v3026
    %v3028 = vand.u32 %v2930, 4294901760
    %3029 = vmatmul.f32.gmra.mxu0 %v3028
    %v3030 = vpop.f32.mrf.mxu0
    %v3031 = vand.u32 %v2933, 4294901760
    %3032 = vmatmul.f32.gmra.mxu0 %v3031
    %v3033 = vpop.f32.mrf.mxu0
    %v3034 = vadd.f32 %v2975, %v3033
    %v3035 = vand.u32 %v2936, 4294901760
    %3036 = vmatmul.f32.gmra.mxu0 %v3035
    %v3037 = vpop.f32.mrf.mxu0
    %v3038 = vand.u32 %v2939, 4294901760
    %3039 = vmatmul.f32.gmra.mxu0 %v3038
    %v3040 = vpop.f32.mrf.mxu0
    %v3041 = vadd.f32 %v2990, %v3040
    %3042 = vdwg.mxu0
    %3043 = vmatpush.msra.mxu0 0.0
    %3044 = vmatpush.msra.mxu0 0.0
    %3045 = vmatpush.msra.mxu0 0.0
    %3046 = vmatpush.msra.mxu0 0.0
    %3047 = vmatpush.msra.mxu0 0.0
    %3048 = vmatpush.msra.mxu0 0.0
    %3049 = vmatpush.msra.mxu0 0.0
    %3050 = vmatpush.msra.mxu0 0.0
    %3051 = vmatpush.msra.mxu0 0.0
    %3052 = vmatpush.msra.mxu0 0.0
    %3053 = vmatpush.msra.mxu0 0.0
    %3054 = vmatpush.msra.mxu0 0.0
    %v3055 = vand.u32 %v2924, 4294901760
    %v3056 = vsub.f32 %v2924, %v3055
    %3057 = vmatpush.msra.mxu0 %v3056
    %v3058 = vand.u32 %v2923, 4294901760
    %v3059 = vsub.f32 %v2923, %v3058
    %3060 = vmatpush.msra.mxu0 %v3059
    %v3061 = vand.u32 %v2922, 4294901760
    %v3062 = vsub.f32 %v2922, %v3061
    %3063 = vmatpush.msra.mxu0 %v3062
    %v3064 = vand.u32 %v2921, 4294901760
    %v3065 = vsub.f32 %v2921, %v3064
    %3066 = vmatpush.msra.mxu0 %v3065
    %v3067 = vand.u32 %v2930, 4294901760
    %v3068 = vsub.f32 %v2930, %v3067
    %3069 = vmatmul.f32.gmra.mxu0 %v3068
    %v3070 = vpop.f32.mrf.mxu0
    %v3071 = vand.u32 %v2933, 4294901760
    %v3072 = vsub.f32 %v2933, %v3071
    %3073 = vmatmul.f32.gmra.mxu0 %v3072
    %v3074 = vpop.f32.mrf.mxu0
    %v3075 = vadd.f32 %v3034, %v3074
    %v3076 = vand.u32 %v2936, 4294901760
    %v3077 = vsub.f32 %v2936, %v3076
    %3078 = vmatmul.f32.gmra.mxu0 %v3077
    %v3079 = vpop.f32.mrf.mxu0
    %v3080 = vand.u32 %v2939, 4294901760
    %v3081 = vsub.f32 %v2939, %v3080
    %3082 = vmatmul.f32.gmra.mxu0 %v3081
    %v3083 = vpop.f32.mrf.mxu0
    %v3084 = vadd.f32 %v3041, %v3083
    %3085 = vdwg.mxu0
    %3086 = vmatpush.msra.mxu0 0.0
    %3087 = vmatpush.msra.mxu0 0.0
    %3088 = vmatpush.msra.mxu0 0.0
    %3089 = vmatpush.msra.mxu0 0.0
    %3090 = vmatpush.msra.mxu0 0.0
    %3091 = vmatpush.msra.mxu0 0.0
    %3092 = vmatpush.msra.mxu0 0.0
    %3093 = vmatpush.msra.mxu0 0.0
    %3094 = vmatpush.msra.mxu0 0.0
    %3095 = vmatpush.msra.mxu0 0.0
    %3096 = vmatpush.msra.mxu0 0.0
    %3097 = vmatpush.msra.mxu0 0.0
    %v3098 = vand.u32 %v2924, 4294901760
    %3099 = vmatpush.msra.mxu0 %v3098
    %v3100 = vand.u32 %v2923, 4294901760
    %3101 = vmatpush.msra.mxu0 %v3100
    %v3102 = vand.u32 %v2922, 4294901760
    %3103 = vmatpush.msra.mxu0 %v3102
    %v3104 = vand.u32 %v2921, 4294901760
    %3105 = vmatpush.msra.mxu0 %v3104
    %v3106 = vand.u32 %v2930, 4294901760
    %v3107 = vsub.f32 %v2930, %v3106
    %v3108 = vand.u32 %v3107, 4294901760
    %3109 = vmatmul.f32.gmra.mxu0 %v3108
    %v3110 = vpop.f32.mrf.mxu0
    %v3111 = vand.u32 %v2933, 4294901760
    %v3112 = vsub.f32 %v2933, %v3111
    %v3113 = vand.u32 %v3112, 4294901760
    %3114 = vmatmul.f32.gmra.mxu0 %v3113
    %v3115 = vpop.f32.mrf.mxu0
    %v3116 = vadd.f32 %v3075, %v3115
    %v3117 = vand.u32 %v2936, 4294901760
    %v3118 = vsub.f32 %v2936, %v3117
    %v3119 = vand.u32 %v3118, 4294901760
    %3120 = vmatmul.f32.gmra.mxu0 %v3119
    %v3121 = vpop.f32.mrf.mxu0
    %v3122 = vand.u32 %v2939, 4294901760
    %v3123 = vsub.f32 %v2939, %v3122
    %v3124 = vand.u32 %v3123, 4294901760
    %3125 = vmatmul.f32.gmra.mxu0 %v3124
    %v3126 = vpop.f32.mrf.mxu0
    %v3127 = vadd.f32 %v3084, %v3126
    %3128 = vdwg.mxu0
    %3129 = vmatpush.msra.mxu0 0.0
    %3130 = vmatpush.msra.mxu0 0.0
    %3131 = vmatpush.msra.mxu0 0.0
    %3132 = vmatpush.msra.mxu0 0.0
    %3133 = vmatpush.msra.mxu0 0.0
    %3134 = vmatpush.msra.mxu0 0.0
    %3135 = vmatpush.msra.mxu0 0.0
    %3136 = vmatpush.msra.mxu0 0.0
    %3137 = vmatpush.msra.mxu0 0.0
    %3138 = vmatpush.msra.mxu0 0.0
    %3139 = vmatpush.msra.mxu0 0.0
    %3140 = vmatpush.msra.mxu0 0.0
    %v3141 = vand.u32 %v2924, 4294901760
    %v3142 = vsub.f32 %v2924, %v3141
    %v3143 = vand.u32 %v3142, 4294901760
    %3144 = vmatpush.msra.mxu0 %v3143
    %v3145 = vand.u32 %v2923, 4294901760
    %v3146 = vsub.f32 %v2923, %v3145
    %v3147 = vand.u32 %v3146, 4294901760
    %3148 = vmatpush.msra.mxu0 %v3147
    %v3149 = vand.u32 %v2922, 4294901760
    %v3150 = vsub.f32 %v2922, %v3149
    %v3151 = vand.u32 %v3150, 4294901760
    %3152 = vmatpush.msra.mxu0 %v3151
    %v3153 = vand.u32 %v2921, 4294901760
    %v3154 = vsub.f32 %v2921, %v3153
    %v3155 = vand.u32 %v3154, 4294901760
    %3156 = vmatpush.msra.mxu0 %v3155
    %v3157 = vand.u32 %v2930, 4294901760
    %3158 = vmatmul.f32.gmra.mxu0 %v3157
    %v3159 = vpop.f32.mrf.mxu0
    %v3160 = vand.u32 %v2933, 4294901760
    %3161 = vmatmul.f32.gmra.mxu0 %v3160
    %v3162 = vpop.f32.mrf.mxu0
    %v3163 = vadd.f32 %v3116, %v3162
    %v3164 = vand.u32 %v2936, 4294901760
    %3165 = vmatmul.f32.gmra.mxu0 %v3164
    %v3166 = vpop.f32.mrf.mxu0
    %v3167 = vand.u32 %v2939, 4294901760
    %3168 = vmatmul.f32.gmra.mxu0 %v3167
    %v3169 = vpop.f32.mrf.mxu0
    %v3170 = vadd.f32 %v3127, %v3169
    %3171 = vdwg.mxu0
    %3172 = vmatpush.msra.mxu0 0.0
    %3173 = vmatpush.msra.mxu0 0.0
    %3174 = vmatpush.msra.mxu0 0.0
    %3175 = vmatpush.msra.mxu0 0.0
    %3176 = vmatpush.msra.mxu0 0.0
    %3177 = vmatpush.msra.mxu0 0.0
    %3178 = vmatpush.msra.mxu0 0.0
    %3179 = vmatpush.msra.mxu0 0.0
    %3180 = vmatpush.msra.mxu0 0.0
    %3181 = vmatpush.msra.mxu0 0.0
    %3182 = vmatpush.msra.mxu0 0.0
    %3183 = vmatpush.msra.mxu0 0.0
    %v3184 = vand.u32 %v2924, 4294901760
    %3185 = vmatpush.msra.mxu0 %v3184
    %v3186 = vand.u32 %v2923, 4294901760
    %3187 = vmatpush.msra.mxu0 %v3186
    %v3188 = vand.u32 %v2922, 4294901760
    %3189 = vmatpush.msra.mxu0 %v3188
    %v3190 = vand.u32 %v2921, 4294901760
    %3191 = vmatpush.msra.mxu0 %v3190
    %v3192 = vand.u32 %v2930, 4294901760
    %3193 = vmatmul.f32.gmra.mxu0 %v3192
    %v3194 = vpop.f32.mrf.mxu0
    %v3195 = vand.u32 %v2933, 4294901760
    %3196 = vmatmul.f32.gmra.mxu0 %v3195
    %v3197 = vpop.f32.mrf.mxu0
    %v3198 = vadd.f32 %v3163, %v3197
    %v3199 = vand.u32 %v2936, 4294901760
    %3200 = vmatmul.f32.gmra.mxu0 %v3199
    %v3201 = vpop.f32.mrf.mxu0
    %v3202 = vand.u32 %v2939, 4294901760
    %3203 = vmatmul.f32.gmra.mxu0 %v3202
    %v3204 = vpop.f32.mrf.mxu0
    %v3205 = vadd.f32 %v3170, %v3204
    %3206 = vdwg.mxu0
    %v3207 = vmul.f32 %v2917, 0.5
    %v3208 = vmul.f32 %v2918, 0.5
    %v3209 = vmul.f32 %v2919, 0.5
    %v3210 = vmul.f32 %v2920, 0.5
    %v3211 = vmul.f32 %v2917, 0.70710677
    %v3212 = vmul.f32 %v2918, 0.70710677
    %v3213 = vmul.f32 %v2919, 0.70710677
    %v3214 = vmul.f32 %v2920, 0.70710677
    %v3215 = vand.u32 2147483647, %v3211
    %v3216 = vand.u32 2147483647, %v3212
    %v3217 = vand.u32 2147483647, %v3213
    %v3218 = vand.u32 2147483647, %v3214
    %v3219 = vmul.f32 %v3215, 0.3275911
    %v3220 = vmul.f32 %v3216, 0.3275911
    %v3221 = vmul.f32 %v3217, 0.3275911
    %v3222 = vmul.f32 %v3218, 0.3275911
    %v3223 = vadd.f32 %v3219, 1.0
    %v3224 = vadd.f32 %v3220, 1.0
    %v3225 = vadd.f32 %v3221, 1.0
    %v3226 = vadd.f32 %v3222, 1.0
    %v3227 = vrcp.pop %v3223
    %v3228 = vmul.f32 %v3223, %v3227
    %v3229 = vsub.f32 1.0, %v3228
    %v3230 = vmul.f32 %v3227, %v3229
    %v3231 = vadd.f32 %v3227, %v3230
    %vm3232 = vweird.f32 %v3223
    %vm3233 = vweird.f32 %v3227
    %vm3234 = vmor %vm3232, %vm3233
    %v3235 = vsel %vm3234, %v3227, %v3231
    %v3236 = vand.u32 2147483647, %v3223
    %vm3237 = vcmp.eq.f32.partialorder %v3236, 8.507059e+37
    %v3238 = vand.u32 %v3223, 2147483648
    %v3239 = vor.u32 1.1754944e-38, %v3238
    %v3240 = vsel %vm3237, %v3239, %v3235
    %v3241 = vmul.f32 1.0, %v3240
    %v3242 = vrcp.pop %v3224
    %v3243 = vmul.f32 %v3224, %v3242
    %v3244 = vsub.f32 1.0, %v3243
    %v3245 = vmul.f32 %v3242, %v3244
    %v3246 = vadd.f32 %v3242, %v3245
    %vm3247 = vweird.f32 %v3224
    %vm3248 = vweird.f32 %v3242
    %vm3249 = vmor %vm3247, %vm3248
    %v3250 = vsel %vm3249, %v3242, %v3246
    %v3251 = vand.u32 2147483647, %v3224
    %vm3252 = vcmp.eq.f32.partialorder %v3251, 8.507059e+37
    %v3253 = vand.u32 %v3224, 2147483648
    %v3254 = vor.u32 1.1754944e-38, %v3253
    %v3255 = vsel %vm3252, %v3254, %v3250
    %v3256 = vmul.f32 1.0, %v3255
    %v3257 = vrcp.pop %v3225
    %v3258 = vmul.f32 %v3225, %v3257
    %v3259 = vsub.f32 1.0, %v3258
    %v3260 = vmul.f32 %v3257, %v3259
    %v3261 = vadd.f32 %v3257, %v3260
    %vm3262 = vweird.f32 %v3225
    %vm3263 = vweird.f32 %v3257
    %vm3264 = vmor %vm3262, %vm3263
    %v3265 = vsel %vm3264, %v3257, %v3261
    %v3266 = vand.u32 2147483647, %v3225
    %vm3267 = vcmp.eq.f32.partialorder %v3266, 8.507059e+37
    %v3268 = vand.u32 %v3225, 2147483648
    %v3269 = vor.u32 1.1754944e-38, %v3268
    %v3270 = vsel %vm3267, %v3269, %v3265
    %v3271 = vmul.f32 1.0, %v3270
    %v3272 = vrcp.pop %v3226
    %v3273 = vmul.f32 %v3226, %v3272
    %v3274 = vsub.f32 1.0, %v3273
    %v3275 = vmul.f32 %v3272, %v3274
    %v3276 = vadd.f32 %v3272, %v3275
    %vm3277 = vweird.f32 %v3226
    %vm3278 = vweird.f32 %v3272
    %vm3279 = vmor %vm3277, %vm3278
    %v3280 = vsel %vm3279, %v3272, %v3276
    %v3281 = vand.u32 2147483647, %v3226
    %vm3282 = vcmp.eq.f32.partialorder %v3281, 8.507059e+37
    %v3283 = vand.u32 %v3226, 2147483648
    %v3284 = vor.u32 1.1754944e-38, %v3283
    %v3285 = vsel %vm3282, %v3284, %v3280
    %v3286 = vmul.f32 1.0, %v3285
    %v3287 = vmul.f32 %v3241, 1.0614054
    %v3288 = vmul.f32 %v3256, 1.0614054
    %v3289 = vmul.f32 %v3271, 1.0614054
    %v3290 = vmul.f32 %v3286, 1.0614054
    %v3291 = vadd.f32 %v3287, -1.4531521
    %v3292 = vadd.f32 %v3288, -1.4531521
    %v3293 = vadd.f32 %v3289, -1.4531521
    %v3294 = vadd.f32 %v3290, -1.4531521
    %v3295 = vmul.f32 %v3241, %v3291
    %v3296 = vmul.f32 %v3256, %v3292
    %v3297 = vmul.f32 %v3271, %v3293
    %v3298 = vmul.f32 %v3286, %v3294
    %v3299 = vadd.f32 %v3295, 1.4214138
    %v3300 = vadd.f32 %v3296, 1.4214138
    %v3301 = vadd.f32 %v3297, 1.4214138
    %v3302 = vadd.f32 %v3298, 1.4214138
    %v3303 = vmul.f32 %v3241, %v3299
    %v3304 = vmul.f32 %v3256, %v3300
    %v3305 = vmul.f32 %v3271, %v3301
    %v3306 = vmul.f32 %v3286, %v3302
    %v3307 = vadd.f32 %v3303, -0.28449672
    %v3308 = vadd.f32 %v3304, -0.28449672
    %v3309 = vadd.f32 %v3305, -0.28449672
    %v3310 = vadd.f32 %v3306, -0.28449672
    %v3311 = vmul.f32 %v3241, %v3307
    %v3312 = vmul.f32 %v3256, %v3308
    %v3313 = vmul.f32 %v3271, %v3309
    %v3314 = vmul.f32 %v3286, %v3310
    %v3315 = vadd.f32 %v3311, 0.2548296
    %v3316 = vadd.f32 %v3312, 0.2548296
    %v3317 = vadd.f32 %v3313, 0.2548296
    %v3318 = vadd.f32 %v3314, 0.2548296
    %v3319 = vmul.f32 %v3241, %v3315
    %v3320 = vmul.f32 %v3256, %v3316
    %v3321 = vmul.f32 %v3271, %v3317
    %v3322 = vmul.f32 %v3286, %v3318
    %v3323 = vmul.f32 %v3215, %v3215
    %v3324 = vmul.f32 %v3216, %v3216
    %v3325 = vmul.f32 %v3217, %v3217
    %v3326 = vmul.f32 %v3218, %v3218
    %v3327 = vsub.f32 0.0, %v3323
    %v3328 = vsub.f32 0.0, %v3324
    %v3329 = vsub.f32 0.0, %v3325
    %v3330 = vsub.f32 0.0, %v3326
    %v3331 = vmul.f32 %v3327, 1.442695
    %v3332 = vpow.pop %v3331
    %v3333 = vmul.f32 %v3328, 1.442695
    %v3334 = vpow.pop %v3333
    %v3335 = vmul.f32 %v3329, 1.442695
    %v3336 = vpow.pop %v3335
    %v3337 = vmul.f32 %v3330, 1.442695
    %v3338 = vpow.pop %v3337
    %v3339 = vmul.f32 %v3319, %v3332
    %v3340 = vmul.f32 %v3320, %v3334
    %v3341 = vmul.f32 %v3321, %v3336
    %v3342 = vmul.f32 %v3322, %v3338
    %v3343 = vsub.f32 1.0, %v3339
    %v3344 = vsub.f32 1.0, %v3340
    %v3345 = vsub.f32 1.0, %v3341
    %v3346 = vsub.f32 1.0, %v3342
    %vm3347 = vcmp.ge.f32.partialorder %v3211, 0.0
    %vm3348 = vcmp.ge.f32.partialorder %v3212, 0.0
    %vm3349 = vcmp.ge.f32.partialorder %v3213, 0.0
    %vm3350 = vcmp.ge.f32.partialorder %v3214, 0.0
    %v3351 = vsub.f32 0.0, %v3343
    %v3352 = vsub.f32 0.0, %v3344
    %v3353 = vsub.f32 0.0, %v3345
    %v3354 = vsub.f32 0.0, %v3346
    %v3355 = vsel %vm3347, %v3343, %v3351
    %v3356 = vsel %vm3348, %v3344, %v3352
    %v3357 = vsel %vm3349, %v3345, %v3353
    %v3358 = vsel %vm3350, %v3346, %v3354
    %v3359 = vadd.f32 %v3355, 1.0
    %v3360 = vadd.f32 %v3356, 1.0
    %v3361 = vadd.f32 %v3357, 1.0
    %v3362 = vadd.f32 %v3358, 1.0
    %v3363 = vmul.f32 %v3207, %v3359
    %v3364 = vmul.f32 %v3208, %v3360
    %v3365 = vmul.f32 %v3209, %v3361
    %v3366 = vmul.f32 %v3210, %v3362
    %v3371 = vrot.slane %v3363, 4
    %v3372 = vrot.slane %v3364, 4
    %v3373 = vsel %vm79, %v3371, %v3372
    %v3374 = vrot.slane %v3365, 4
    %v3375 = vrot.slane %v3366, 4
    %v3376 = vsel %vm79, %v3374, %v3375
    %v3383 = vsel %vm79, 0.0, %v3371
    %v3384 = vsel %vm79, 0.0, %v3374
    %v3385 = vsel %vm79, %v3372, 0.0
    %v3386 = vsel %vm79, %v3375, 0.0
    %v3391 = vrot.slane %v3383, 4
    %v3392 = vrot.slane %v3373, 4
    %v3393 = vsel %vm79, %v3391, %v3392
    %v3394 = vrot.slane %v3385, 4
    %v3395 = vsel %vm79, %v3392, %v3394
    %v3396 = vrot.slane %v3384, 4
    %v3397 = vrot.slane %v3376, 4
    %v3398 = vsel %vm79, %v3396, %v3397
    %v3399 = vrot.slane %v3386, 4
    %v3400 = vsel %vm79, %v3397, %v3399
    %3401 = vrot.lane.b32.xlu0 %v3393, 32
    %v3402 = vpop.permute.xlu0 %3401
    %3403 = vrot.lane.b32.xlu0 %v3395, 32
    %v3404 = vpop.permute.xlu0 %3403
    %3405 = vrot.lane.b32.xlu0 %v3398, 32
    %v3406 = vpop.permute.xlu0 %3405
    %3407 = vrot.lane.b32.xlu0 %v3400, 32
    %v3408 = vpop.permute.xlu0 %3407
    %3413 = vrot.lane.b32.xlu0 %v3373, 64
    %v3414 = vpop.permute.xlu0 %3413
    %3415 = vrot.lane.b32.xlu0 %v3385, 64
    %v3416 = vpop.permute.xlu0 %3415
    %3417 = vrot.lane.b32.xlu0 %v3376, 64
    %v3418 = vpop.permute.xlu0 %3417
    %3419 = vrot.lane.b32.xlu0 %v3386, 64
    %v3420 = vpop.permute.xlu0 %3419
    %v3425 = vsel %vm553, %v3383, %v3402
    %v3426 = vsel %vm553, %v3373, %v3404
    %v3427 = vsel %vm553, %v3384, %v3406
    %v3428 = vsel %vm553, %v3376, %v3408
    %v3429 = vsel %vm558, %v3425, %v3414
    %v3430 = vsel %vm558, %v3426, %v3416
    %v3431 = vsel %vm558, %v3427, %v3418
    %v3432 = vsel %vm558, %v3428, %v3420
    %v3433 = vld [vmem:[%s13] sm:$0xff]
    %v3434 = vld [vmem:[%s13 + $0x8] sm:$0xff]
    %v3435 = vld [vmem:[%s13 + $0x10] sm:$0xff]
    %v3436 = vld [vmem:[%s13 + $0x18] sm:$0xff]
    %v3437 = vld [vmem:[%s13 + $0x20] sm:$0xff]
    %v3438 = vld [vmem:[%s13 + $0x28] sm:$0xff]
    %v3439 = vld [vmem:[%s13 + $0x30] sm:$0xff]
    %v3440 = vld [vmem:[%s13 + $0x38] sm:$0xff]
    %v3441 = vld [vmem:[%s13 + $0x40] sm:$0xff]
    %v3442 = vld [vmem:[%s13 + $0x48] sm:$0xff]
    %v3443 = vld [vmem:[%s13 + $0x50] sm:$0xff]
    %v3444 = vld [vmem:[%s13 + $0x58] sm:$0xff]
    %v3445 = vld [vmem:[%s14] sm:$0x1]
    %v3447 = vperm.slane %v3445, 0
    %v3450 = vsel %vm579, %v3429, 0
    %v3453 = vsel %vm579, %v3430, 0
    %v3456 = vsel %vm579, %v3431, 0
    %v3459 = vsel %vm579, %v3432, 0
    %3461 = vmatpush.msra.mxu0 0.0
    %3462 = vmatpush.msra.mxu0 0.0
    %3463 = vmatpush.msra.mxu0 0.0
    %3464 = vmatpush.msra.mxu0 0.0
    %v3465 = vand.u32 %v3444, 4294901760
    %3466 = vmatpush.msra.mxu0 %v3465
    %v3467 = vand.u32 %v3443, 4294901760
    %3468 = vmatpush.msra.mxu0 %v3467
    %v3469 = vand.u32 %v3442, 4294901760
    %3470 = vmatpush.msra.mxu0 %v3469
    %v3471 = vand.u32 %v3441, 4294901760
    %3472 = vmatpush.msra.mxu0 %v3471
    %v3473 = vand.u32 %v3440, 4294901760
    %3474 = vmatpush.msra.mxu0 %v3473
    %v3475 = vand.u32 %v3439, 4294901760
    %3476 = vmatpush.msra.mxu0 %v3475
    %v3477 = vand.u32 %v3438, 4294901760
    %3478 = vmatpush.msra.mxu0 %v3477
    %v3479 = vand.u32 %v3437, 4294901760
    %3480 = vmatpush.msra.mxu0 %v3479
    %v3481 = vand.u32 %v3436, 4294901760
    %3482 = vmatpush.msra.mxu0 %v3481
    %v3483 = vand.u32 %v3435, 4294901760
    %3484 = vmatpush.msra.mxu0 %v3483
    %v3485 = vand.u32 %v3434, 4294901760
    %3486 = vmatpush.msra.mxu0 %v3485
    %v3487 = vand.u32 %v3433, 4294901760
    %3488 = vmatpush.msra.mxu0 %v3487
    %v3489 = vand.u32 %v3450, 4294901760
    %v3490 = vsub.f32 %v3450, %v3489
    %v3491 = vand.u32 %v3490, 4294901760
    %v3492 = vsub.f32 %v3490, %v3491
    %v3493 = vand.u32 %v3492, 4294901760
    %3494 = vmatmul.f32.gmra.mxu0 %v3493
    %v3495 = vpop.f32.mrf.mxu0
    %v3496 = vadd.f32 %v3447, %v3495
    %v3497 = vand.u32 %v3453, 4294901760
    %v3498 = vsub.f32 %v3453, %v3497
    %v3499 = vand.u32 %v3498, 4294901760
    %v3500 = vsub.f32 %v3498, %v3499
    %v3501 = vand.u32 %v3500, 4294901760
    %3502 = vmatmul.f32.gmra.mxu0 %v3501
    %v3503 = vpop.f32.mrf.mxu0
    %v3504 = vadd.f32 %v3447, %v3503
    %v3505 = vand.u32 %v3456, 4294901760
    %v3506 = vsub.f32 %v3456, %v3505
    %v3507 = vand.u32 %v3506, 4294901760
    %v3508 = vsub.f32 %v3506, %v3507
    %v3509 = vand.u32 %v3508, 4294901760
    %3510 = vmatmul.f32.gmra.mxu0 %v3509
    %v3511 = vpop.f32.mrf.mxu0
    %v3512 = vadd.f32 %v3447, %v3511
    %v3513 = vand.u32 %v3459, 4294901760
    %v3514 = vsub.f32 %v3459, %v3513
    %v3515 = vand.u32 %v3514, 4294901760
    %v3516 = vsub.f32 %v3514, %v3515
    %v3517 = vand.u32 %v3516, 4294901760
    %3518 = vmatmul.f32.gmra.mxu0 %v3517
    %v3519 = vpop.f32.mrf.mxu0
    %v3520 = vadd.f32 %v3447, %v3519
    %3521 = vdwg.mxu0
    %3522 = vmatpush.msra.mxu0 0.0
    %3523 = vmatpush.msra.mxu0 0.0
    %3524 = vmatpush.msra.mxu0 0.0
    %3525 = vmatpush.msra.mxu0 0.0
    %v3526 = vand.u32 %v3444, 4294901760
    %v3527 = vsub.f32 %v3444, %v3526
    %v3528 = vand.u32 %v3527, 4294901760
    %v3529 = vsub.f32 %v3527, %v3528
    %v3530 = vand.u32 %v3529, 4294901760
    %3531 = vmatpush.msra.mxu0 %v3530
    %v3532 = vand.u32 %v3443, 4294901760
    %v3533 = vsub.f32 %v3443, %v3532
    %v3534 = vand.u32 %v3533, 4294901760
    %v3535 = vsub.f32 %v3533, %v3534
    %v3536 = vand.u32 %v3535, 4294901760
    %3537 = vmatpush.msra.mxu0 %v3536
    %v3538 = vand.u32 %v3442, 4294901760
    %v3539 = vsub.f32 %v3442, %v3538
    %v3540 = vand.u32 %v3539, 4294901760
    %v3541 = vsub.f32 %v3539, %v3540
    %v3542 = vand.u32 %v3541, 4294901760
    %3543 = vmatpush.msra.mxu0 %v3542
    %v3544 = vand.u32 %v3441, 4294901760
    %v3545 = vsub.f32 %v3441, %v3544
    %v3546 = vand.u32 %v3545, 4294901760
    %v3547 = vsub.f32 %v3545, %v3546
    %v3548 = vand.u32 %v3547, 4294901760
    %3549 = vmatpush.msra.mxu0 %v3548
    %v3550 = vand.u32 %v3440, 4294901760
    %v3551 = vsub.f32 %v3440, %v3550
    %v3552 = vand.u32 %v3551, 4294901760
    %v3553 = vsub.f32 %v3551, %v3552
    %v3554 = vand.u32 %v3553, 4294901760
    %3555 = vmatpush.msra.mxu0 %v3554
    %v3556 = vand.u32 %v3439, 4294901760
    %v3557 = vsub.f32 %v3439, %v3556
    %v3558 = vand.u32 %v3557, 4294901760
    %v3559 = vsub.f32 %v3557, %v3558
    %v3560 = vand.u32 %v3559, 4294901760
    %3561 = vmatpush.msra.mxu0 %v3560
    %v3562 = vand.u32 %v3438, 4294901760
    %v3563 = vsub.f32 %v3438, %v3562
    %v3564 = vand.u32 %v3563, 4294901760
    %v3565 = vsub.f32 %v3563, %v3564
    %v3566 = vand.u32 %v3565, 4294901760
    %3567 = vmatpush.msra.mxu0 %v3566
    %v3568 = vand.u32 %v3437, 4294901760
    %v3569 = vsub.f32 %v3437, %v3568
    %v3570 = vand.u32 %v3569, 4294901760
    %v3571 = vsub.f32 %v3569, %v3570
    %v3572 = vand.u32 %v3571, 4294901760
    %3573 = vmatpush.msra.mxu0 %v3572
    %v3574 = vand.u32 %v3436, 4294901760
    %v3575 = vsub.f32 %v3436, %v3574
    %v3576 = vand.u32 %v3575, 4294901760
    %v3577 = vsub.f32 %v3575, %v3576
    %v3578 = vand.u32 %v3577, 4294901760
    %3579 = vmatpush.msra.mxu0 %v3578
    %v3580 = vand.u32 %v3435, 4294901760
    %v3581 = vsub.f32 %v3435, %v3580
    %v3582 = vand.u32 %v3581, 4294901760
    %v3583 = vsub.f32 %v3581, %v3582
    %v3584 = vand.u32 %v3583, 4294901760
    %3585 = vmatpush.msra.mxu0 %v3584
    %v3586 = vand.u32 %v3434, 4294901760
    %v3587 = vsub.f32 %v3434, %v3586
    %v3588 = vand.u32 %v3587, 4294901760
    %v3589 = vsub.f32 %v3587, %v3588
    %v3590 = vand.u32 %v3589, 4294901760
    %3591 = vmatpush.msra.mxu0 %v3590
    %v3592 = vand.u32 %v3433, 4294901760
    %v3593 = vsub.f32 %v3433, %v3592
    %v3594 = vand.u32 %v3593, 4294901760
    %v3595 = vsub.f32 %v3593, %v3594
    %v3596 = vand.u32 %v3595, 4294901760
    %3597 = vmatpush.msra.mxu0 %v3596
    %v3598 = vand.u32 %v3450, 4294901760
    %3599 = vmatmul.f32.gmra.mxu0 %v3598
    %v3600 = vpop.f32.mrf.mxu0
    %v3601 = vadd.f32 %v3496, %v3600
    %v3602 = vand.u32 %v3453, 4294901760
    %3603 = vmatmul.f32.gmra.mxu0 %v3602
    %v3604 = vpop.f32.mrf.mxu0
    %v3605 = vadd.f32 %v3504, %v3604
    %v3606 = vand.u32 %v3456, 4294901760
    %3607 = vmatmul.f32.gmra.mxu0 %v3606
    %v3608 = vpop.f32.mrf.mxu0
    %v3609 = vadd.f32 %v3512, %v3608
    %v3610 = vand.u32 %v3459, 4294901760
    %3611 = vmatmul.f32.gmra.mxu0 %v3610
    %v3612 = vpop.f32.mrf.mxu0
    %v3613 = vadd.f32 %v3520, %v3612
    %3614 = vdwg.mxu0
    %3615 = vmatpush.msra.mxu0 0.0
    %3616 = vmatpush.msra.mxu0 0.0
    %3617 = vmatpush.msra.mxu0 0.0
    %3618 = vmatpush.msra.mxu0 0.0
    %v3619 = vand.u32 %v3444, 4294901760
    %v3620 = vsub.f32 %v3444, %v3619
    %3621 = vmatpush.msra.mxu0 %v3620
    %v3622 = vand.u32 %v3443, 4294901760
    %v3623 = vsub.f32 %v3443, %v3622
    %3624 = vmatpush.msra.mxu0 %v3623
    %v3625 = vand.u32 %v3442, 4294901760
    %v3626 = vsub.f32 %v3442, %v3625
    %3627 = vmatpush.msra.mxu0 %v3626
    %v3628 = vand.u32 %v3441, 4294901760
    %v3629 = vsub.f32 %v3441, %v3628
    %3630 = vmatpush.msra.mxu0 %v3629
    %v3631 = vand.u32 %v3440, 4294901760
    %v3632 = vsub.f32 %v3440, %v3631
    %3633 = vmatpush.msra.mxu0 %v3632
    %v3634 = vand.u32 %v3439, 4294901760
    %v3635 = vsub.f32 %v3439, %v3634
    %3636 = vmatpush.msra.mxu0 %v3635
    %v3637 = vand.u32 %v3438, 4294901760
    %v3638 = vsub.f32 %v3438, %v3637
    %3639 = vmatpush.msra.mxu0 %v3638
    %v3640 = vand.u32 %v3437, 4294901760
    %v3641 = vsub.f32 %v3437, %v3640
    %3642 = vmatpush.msra.mxu0 %v3641
    %v3643 = vand.u32 %v3436, 4294901760
    %v3644 = vsub.f32 %v3436, %v3643
    %3645 = vmatpush.msra.mxu0 %v3644
    %v3646 = vand.u32 %v3435, 4294901760
    %v3647 = vsub.f32 %v3435, %v3646
    %3648 = vmatpush.msra.mxu0 %v3647
    %v3649 = vand.u32 %v3434, 4294901760
    %v3650 = vsub.f32 %v3434, %v3649
    %3651 = vmatpush.msra.mxu0 %v3650
    %v3652 = vand.u32 %v3433, 4294901760
    %v3653 = vsub.f32 %v3433, %v3652
    %3654 = vmatpush.msra.mxu0 %v3653
    %v3655 = vand.u32 %v3450, 4294901760
    %v3656 = vsub.f32 %v3450, %v3655
    %3657 = vmatmul.f32.gmra.mxu0 %v3656
    %v3658 = vpop.f32.mrf.mxu0
    %v3659 = vadd.f32 %v3601, %v3658
    %v3660 = vand.u32 %v3453, 4294901760
    %v3661 = vsub.f32 %v3453, %v3660
    %3662 = vmatmul.f32.gmra.mxu0 %v3661
    %v3663 = vpop.f32.mrf.mxu0
    %v3664 = vadd.f32 %v3605, %v3663
    %v3665 = vand.u32 %v3456, 4294901760
    %v3666 = vsub.f32 %v3456, %v3665
    %3667 = vmatmul.f32.gmra.mxu0 %v3666
    %v3668 = vpop.f32.mrf.mxu0
    %v3669 = vadd.f32 %v3609, %v3668
    %v3670 = vand.u32 %v3459, 4294901760
    %v3671 = vsub.f32 %v3459, %v3670
    %3672 = vmatmul.f32.gmra.mxu0 %v3671
    %v3673 = vpop.f32.mrf.mxu0
    %v3674 = vadd.f32 %v3613, %v3673
    %3675 = vdwg.mxu0
    %3676 = vmatpush.msra.mxu0 0.0
    %3677 = vmatpush.msra.mxu0 0.0
    %3678 = vmatpush.msra.mxu0 0.0
    %3679 = vmatpush.msra.mxu0 0.0
    %v3680 = vand.u32 %v3444, 4294901760
    %3681 = vmatpush.msra.mxu0 %v3680
    %v3682 = vand.u32 %v3443, 4294901760
    %3683 = vmatpush.msra.mxu0 %v3682
    %v3684 = vand.u32 %v3442, 4294901760
    %3685 = vmatpush.msra.mxu0 %v3684
    %v3686 = vand.u32 %v3441, 4294901760
    %3687 = vmatpush.msra.mxu0 %v3686
    %v3688 = vand.u32 %v3440, 4294901760
    %3689 = vmatpush.msra.mxu0 %v3688
    %v3690 = vand.u32 %v3439, 4294901760
    %3691 = vmatpush.msra.mxu0 %v3690
    %v3692 = vand.u32 %v3438, 4294901760
    %3693 = vmatpush.msra.mxu0 %v3692
    %v3694 = vand.u32 %v3437, 4294901760
    %3695 = vmatpush.msra.mxu0 %v3694
    %v3696 = vand.u32 %v3436, 4294901760
    %3697 = vmatpush.msra.mxu0 %v3696
    %v3698 = vand.u32 %v3435, 4294901760
    %3699 = vmatpush.msra.mxu0 %v3698
    %v3700 = vand.u32 %v3434, 4294901760
    %3701 = vmatpush.msra.mxu0 %v3700
    %v3702 = vand.u32 %v3433, 4294901760
    %3703 = vmatpush.msra.mxu0 %v3702
    %v3704 = vand.u32 %v3450, 4294901760
    %v3705 = vsub.f32 %v3450, %v3704
    %v3706 = vand.u32 %v3705, 4294901760
    %3707 = vmatmul.f32.gmra.mxu0 %v3706
    %v3708 = vpop.f32.mrf.mxu0
    %v3709 = vadd.f32 %v3659, %v3708
    %v3710 = vand.u32 %v3453, 4294901760
    %v3711 = vsub.f32 %v3453, %v3710
    %v3712 = vand.u32 %v3711, 4294901760
    %3713 = vmatmul.f32.gmra.mxu0 %v3712
    %v3714 = vpop.f32.mrf.mxu0
    %v3715 = vadd.f32 %v3664, %v3714
    %v3716 = vand.u32 %v3456, 4294901760
    %v3717 = vsub.f32 %v3456, %v3716
    %v3718 = vand.u32 %v3717, 4294901760
    %3719 = vmatmul.f32.gmra.mxu0 %v3718
    %v3720 = vpop.f32.mrf.mxu0
    %v3721 = vadd.f32 %v3669, %v3720
    %v3722 = vand.u32 %v3459, 4294901760
    %v3723 = vsub.f32 %v3459, %v3722
    %v3724 = vand.u32 %v3723, 4294901760
    %3725 = vmatmul.f32.gmra.mxu0 %v3724
    %v3726 = vpop.f32.mrf.mxu0
    %v3727 = vadd.f32 %v3674, %v3726
    %3728 = vdwg.mxu0
    %3729 = vmatpush.msra.mxu0 0.0
    %3730 = vmatpush.msra.mxu0 0.0
    %3731 = vmatpush.msra.mxu0 0.0
    %3732 = vmatpush.msra.mxu0 0.0
    %v3733 = vand.u32 %v3444, 4294901760
    %v3734 = vsub.f32 %v3444, %v3733
    %v3735 = vand.u32 %v3734, 4294901760
    %3736 = vmatpush.msra.mxu0 %v3735
    %v3737 = vand.u32 %v3443, 4294901760
    %v3738 = vsub.f32 %v3443, %v3737
    %v3739 = vand.u32 %v3738, 4294901760
    %3740 = vmatpush.msra.mxu0 %v3739
    %v3741 = vand.u32 %v3442, 4294901760
    %v3742 = vsub.f32 %v3442, %v3741
    %v3743 = vand.u32 %v3742, 4294901760
    %3744 = vmatpush.msra.mxu0 %v3743
    %v3745 = vand.u32 %v3441, 4294901760
    %v3746 = vsub.f32 %v3441, %v3745
    %v3747 = vand.u32 %v3746, 4294901760
    %3748 = vmatpush.msra.mxu0 %v3747
    %v3749 = vand.u32 %v3440, 4294901760
    %v3750 = vsub.f32 %v3440, %v3749
    %v3751 = vand.u32 %v3750, 4294901760
    %3752 = vmatpush.msra.mxu0 %v3751
    %v3753 = vand.u32 %v3439, 4294901760
    %v3754 = vsub.f32 %v3439, %v3753
    %v3755 = vand.u32 %v3754, 4294901760
    %3756 = vmatpush.msra.mxu0 %v3755
    %v3757 = vand.u32 %v3438, 4294901760
    %v3758 = vsub.f32 %v3438, %v3757
    %v3759 = vand.u32 %v3758, 4294901760
    %3760 = vmatpush.msra.mxu0 %v3759
    %v3761 = vand.u32 %v3437, 4294901760
    %v3762 = vsub.f32 %v3437, %v3761
    %v3763 = vand.u32 %v3762, 4294901760
    %3764 = vmatpush.msra.mxu0 %v3763
    %v3765 = vand.u32 %v3436, 4294901760
    %v3766 = vsub.f32 %v3436, %v3765
    %v3767 = vand.u32 %v3766, 4294901760
    %3768 = vmatpush.msra.mxu0 %v3767
    %v3769 = vand.u32 %v3435, 4294901760
    %v3770 = vsub.f32 %v3435, %v3769
    %v3771 = vand.u32 %v3770, 4294901760
    %3772 = vmatpush.msra.mxu0 %v3771
    %v3773 = vand.u32 %v3434, 4294901760
    %v3774 = vsub.f32 %v3434, %v3773
    %v3775 = vand.u32 %v3774, 4294901760
    %3776 = vmatpush.msra.mxu0 %v3775
    %v3777 = vand.u32 %v3433, 4294901760
    %v3778 = vsub.f32 %v3433, %v3777
    %v3779 = vand.u32 %v3778, 4294901760
    %3780 = vmatpush.msra.mxu0 %v3779
    %v3781 = vand.u32 %v3450, 4294901760
    %3782 = vmatmul.f32.gmra.mxu0 %v3781
    %v3783 = vpop.f32.mrf.mxu0
    %v3784 = vadd.f32 %v3709, %v3783
    %v3785 = vand.u32 %v3453, 4294901760
    %3786 = vmatmul.f32.gmra.mxu0 %v3785
    %v3787 = vpop.f32.mrf.mxu0
    %v3788 = vadd.f32 %v3715, %v3787
    %v3789 = vand.u32 %v3456, 4294901760
    %3790 = vmatmul.f32.gmra.mxu0 %v3789
    %v3791 = vpop.f32.mrf.mxu0
    %v3792 = vadd.f32 %v3721, %v3791
    %v3793 = vand.u32 %v3459, 4294901760
    %3794 = vmatmul.f32.gmra.mxu0 %v3793
    %v3795 = vpop.f32.mrf.mxu0
    %v3796 = vadd.f32 %v3727, %v3795
    %3797 = vdwg.mxu0
    %3798 = vmatpush.msra.mxu0 0.0
    %3799 = vmatpush.msra.mxu0 0.0
    %3800 = vmatpush.msra.mxu0 0.0
    %3801 = vmatpush.msra.mxu0 0.0
    %v3802 = vand.u32 %v3444, 4294901760
    %3803 = vmatpush.msra.mxu0 %v3802
    %v3804 = vand.u32 %v3443, 4294901760
    %3805 = vmatpush.msra.mxu0 %v3804
    %v3806 = vand.u32 %v3442, 4294901760
    %3807 = vmatpush.msra.mxu0 %v3806
    %v3808 = vand.u32 %v3441, 4294901760
    %3809 = vmatpush.msra.mxu0 %v3808
    %v3810 = vand.u32 %v3440, 4294901760
    %3811 = vmatpush.msra.mxu0 %v3810
    %v3812 = vand.u32 %v3439, 4294901760
    %3813 = vmatpush.msra.mxu0 %v3812
    %v3814 = vand.u32 %v3438, 4294901760
    %3815 = vmatpush.msra.mxu0 %v3814
    %v3816 = vand.u32 %v3437, 4294901760
    %3817 = vmatpush.msra.mxu0 %v3816
    %v3818 = vand.u32 %v3436, 4294901760
    %3819 = vmatpush.msra.mxu0 %v3818
    %v3820 = vand.u32 %v3435, 4294901760
    %3821 = vmatpush.msra.mxu0 %v3820
    %v3822 = vand.u32 %v3434, 4294901760
    %3823 = vmatpush.msra.mxu0 %v3822
    %v3824 = vand.u32 %v3433, 4294901760
    %3825 = vmatpush.msra.mxu0 %v3824
    %v3826 = vand.u32 %v3450, 4294901760
    %3827 = vmatmul.f32.gmra.mxu0 %v3826
    %v3828 = vpop.f32.mrf.mxu0
    %v3829 = vadd.f32 %v3784, %v3828
    %v3830 = vand.u32 %v3453, 4294901760
    %3831 = vmatmul.f32.gmra.mxu0 %v3830
    %v3832 = vpop.f32.mrf.mxu0
    %v3833 = vadd.f32 %v3788, %v3832
    %v3834 = vand.u32 %v3456, 4294901760
    %3835 = vmatmul.f32.gmra.mxu0 %v3834
    %v3836 = vpop.f32.mrf.mxu0
    %v3837 = vadd.f32 %v3792, %v3836
    %v3838 = vand.u32 %v3459, 4294901760
    %3839 = vmatmul.f32.gmra.mxu0 %v3838
    %v3840 = vpop.f32.mrf.mxu0
    %v3841 = vadd.f32 %v3796, %v3840
    %3842 = vdwg.mxu0
    %v3843 = vmul.f32 %v3829, 0.5
    %v3844 = vmul.f32 %v3833, 0.5
    %v3845 = vmul.f32 %v3837, 0.5
    %v3846 = vmul.f32 %v3841, 0.5
    %v3847 = vmul.f32 %v3829, 0.70710677
    %v3848 = vmul.f32 %v3833, 0.70710677
    %v3849 = vmul.f32 %v3837, 0.70710677
    %v3850 = vmul.f32 %v3841, 0.70710677
    %v3851 = vand.u32 2147483647, %v3847
    %v3852 = vand.u32 2147483647, %v3848
    %v3853 = vand.u32 2147483647, %v3849
    %v3854 = vand.u32 2147483647, %v3850
    %v3855 = vmul.f32 %v3851, 0.3275911
    %v3856 = vmul.f32 %v3852, 0.3275911
    %v3857 = vmul.f32 %v3853, 0.3275911
    %v3858 = vmul.f32 %v3854, 0.3275911
    %v3859 = vadd.f32 %v3855, 1.0
    %v3860 = vadd.f32 %v3856, 1.0
    %v3861 = vadd.f32 %v3857, 1.0
    %v3862 = vadd.f32 %v3858, 1.0
    %v3863 = vrcp.pop %v3859
    %v3864 = vmul.f32 %v3859, %v3863
    %v3865 = vsub.f32 1.0, %v3864
    %v3866 = vmul.f32 %v3863, %v3865
    %v3867 = vadd.f32 %v3863, %v3866
    %vm3868 = vweird.f32 %v3859
    %vm3869 = vweird.f32 %v3863
    %vm3870 = vmor %vm3868, %vm3869
    %v3871 = vsel %vm3870, %v3863, %v3867
    %v3872 = vand.u32 2147483647, %v3859
    %vm3873 = vcmp.eq.f32.partialorder %v3872, 8.507059e+37
    %v3874 = vand.u32 %v3859, 2147483648
    %v3875 = vor.u32 1.1754944e-38, %v3874
    %v3876 = vsel %vm3873, %v3875, %v3871
    %v3877 = vmul.f32 1.0, %v3876
    %v3878 = vrcp.pop %v3860
    %v3879 = vmul.f32 %v3860, %v3878
    %v3880 = vsub.f32 1.0, %v3879
    %v3881 = vmul.f32 %v3878, %v3880
    %v3882 = vadd.f32 %v3878, %v3881
    %vm3883 = vweird.f32 %v3860
    %vm3884 = vweird.f32 %v3878
    %vm3885 = vmor %vm3883, %vm3884
    %v3886 = vsel %vm3885, %v3878, %v3882
    %v3887 = vand.u32 2147483647, %v3860
    %vm3888 = vcmp.eq.f32.partialorder %v3887, 8.507059e+37
    %v3889 = vand.u32 %v3860, 2147483648
    %v3890 = vor.u32 1.1754944e-38, %v3889
    %v3891 = vsel %vm3888, %v3890, %v3886
    %v3892 = vmul.f32 1.0, %v3891
    %v3893 = vrcp.pop %v3861
    %v3894 = vmul.f32 %v3861, %v3893
    %v3895 = vsub.f32 1.0, %v3894
    %v3896 = vmul.f32 %v3893, %v3895
    %v3897 = vadd.f32 %v3893, %v3896
    %vm3898 = vweird.f32 %v3861
    %vm3899 = vweird.f32 %v3893
    %vm3900 = vmor %vm3898, %vm3899
    %v3901 = vsel %vm3900, %v3893, %v3897
    %v3902 = vand.u32 2147483647, %v3861
    %vm3903 = vcmp.eq.f32.partialorder %v3902, 8.507059e+37
    %v3904 = vand.u32 %v3861, 2147483648
    %v3905 = vor.u32 1.1754944e-38, %v3904
    %v3906 = vsel %vm3903, %v3905, %v3901
    %v3907 = vmul.f32 1.0, %v3906
    %v3908 = vrcp.pop %v3862
    %v3909 = vmul.f32 %v3862, %v3908
    %v3910 = vsub.f32 1.0, %v3909
    %v3911 = vmul.f32 %v3908, %v3910
    %v3912 = vadd.f32 %v3908, %v3911
    %vm3913 = vweird.f32 %v3862
    %vm3914 = vweird.f32 %v3908
    %vm3915 = vmor %vm3913, %vm3914
    %v3916 = vsel %vm3915, %v3908, %v3912
    %v3917 = vand.u32 2147483647, %v3862
    %vm3918 = vcmp.eq.f32.partialorder %v3917, 8.507059e+37
    %v3919 = vand.u32 %v3862, 2147483648
    %v3920 = vor.u32 1.1754944e-38, %v3919
    %v3921 = vsel %vm3918, %v3920, %v3916
    %v3922 = vmul.f32 1.0, %v3921
    %v3923 = vmul.f32 %v3877, 1.0614054
    %v3924 = vmul.f32 %v3892, 1.0614054
    %v3925 = vmul.f32 %v3907, 1.0614054
    %v3926 = vmul.f32 %v3922, 1.0614054
    %v3927 = vadd.f32 %v3923, -1.4531521
    %v3928 = vadd.f32 %v3924, -1.4531521
    %v3929 = vadd.f32 %v3925, -1.4531521
    %v3930 = vadd.f32 %v3926, -1.4531521
    %v3931 = vmul.f32 %v3877, %v3927
    %v3932 = vmul.f32 %v3892, %v3928
    %v3933 = vmul.f32 %v3907, %v3929
    %v3934 = vmul.f32 %v3922, %v3930
    %v3935 = vadd.f32 %v3931, 1.4214138
    %v3936 = vadd.f32 %v3932, 1.4214138
    %v3937 = vadd.f32 %v3933, 1.4214138
    %v3938 = vadd.f32 %v3934, 1.4214138
    %v3939 = vmul.f32 %v3877, %v3935
    %v3940 = vmul.f32 %v3892, %v3936
    %v3941 = vmul.f32 %v3907, %v3937
    %v3942 = vmul.f32 %v3922, %v3938
    %v3943 = vadd.f32 %v3939, -0.28449672
    %v3944 = vadd.f32 %v3940, -0.28449672
    %v3945 = vadd.f32 %v3941, -0.28449672
    %v3946 = vadd.f32 %v3942, -0.28449672
    %v3947 = vmul.f32 %v3877, %v3943
    %v3948 = vmul.f32 %v3892, %v3944
    %v3949 = vmul.f32 %v3907, %v3945
    %v3950 = vmul.f32 %v3922, %v3946
    %v3951 = vadd.f32 %v3947, 0.2548296
    %v3952 = vadd.f32 %v3948, 0.2548296
    %v3953 = vadd.f32 %v3949, 0.2548296
    %v3954 = vadd.f32 %v3950, 0.2548296
    %v3955 = vmul.f32 %v3877, %v3951
    %v3956 = vmul.f32 %v3892, %v3952
    %v3957 = vmul.f32 %v3907, %v3953
    %v3958 = vmul.f32 %v3922, %v3954
    %v3959 = vmul.f32 %v3851, %v3851
    %v3960 = vmul.f32 %v3852, %v3852
    %v3961 = vmul.f32 %v3853, %v3853
    %v3962 = vmul.f32 %v3854, %v3854
    %v3963 = vsub.f32 0.0, %v3959
    %v3964 = vsub.f32 0.0, %v3960
    %v3965 = vsub.f32 0.0, %v3961
    %v3966 = vsub.f32 0.0, %v3962
    %v3967 = vmul.f32 %v3963, 1.442695
    %v3968 = vpow.pop %v3967
    %v3969 = vmul.f32 %v3964, 1.442695
    %v3970 = vpow.pop %v3969
    %v3971 = vmul.f32 %v3965, 1.442695
    %v3972 = vpow.pop %v3971
    %v3973 = vmul.f32 %v3966, 1.442695
    %v3974 = vpow.pop %v3973
    %v3975 = vmul.f32 %v3955, %v3968
    %v3976 = vmul.f32 %v3956, %v3970
    %v3977 = vmul.f32 %v3957, %v3972
    %v3978 = vmul.f32 %v3958, %v3974
    %v3979 = vsub.f32 1.0, %v3975
    %v3980 = vsub.f32 1.0, %v3976
    %v3981 = vsub.f32 1.0, %v3977
    %v3982 = vsub.f32 1.0, %v3978
    %vm3983 = vcmp.ge.f32.partialorder %v3847, 0.0
    %vm3984 = vcmp.ge.f32.partialorder %v3848, 0.0
    %vm3985 = vcmp.ge.f32.partialorder %v3849, 0.0
    %vm3986 = vcmp.ge.f32.partialorder %v3850, 0.0
    %v3987 = vsub.f32 0.0, %v3979
    %v3988 = vsub.f32 0.0, %v3980
    %v3989 = vsub.f32 0.0, %v3981
    %v3990 = vsub.f32 0.0, %v3982
    %v3991 = vsel %vm3983, %v3979, %v3987
    %v3992 = vsel %vm3984, %v3980, %v3988
    %v3993 = vsel %vm3985, %v3981, %v3989
    %v3994 = vsel %vm3986, %v3982, %v3990
    %v3995 = vadd.f32 %v3991, 1.0
    %v3996 = vadd.f32 %v3992, 1.0
    %v3997 = vadd.f32 %v3993, 1.0
    %v3998 = vadd.f32 %v3994, 1.0
    %v3999 = vmul.f32 %v3843, %v3995
    %v4000 = vmul.f32 %v3844, %v3996
    %v4001 = vmul.f32 %v3845, %v3997
    %v4002 = vmul.f32 %v3846, %v3998
    %v4007 = vrot.slane %v3999, 4
    %v4008 = vrot.slane %v4000, 4
    %v4009 = vsel %vm79, %v4007, %v4008
    %v4010 = vrot.slane %v4001, 4
    %v4011 = vrot.slane %v4002, 4
    %v4012 = vsel %vm79, %v4010, %v4011
    %v4019 = vsel %vm79, 0.0, %v4007
    %v4020 = vsel %vm79, 0.0, %v4010
    %v4021 = vsel %vm79, %v4008, 0.0
    %v4022 = vsel %vm79, %v4011, 0.0
    %v4027 = vrot.slane %v4019, 4
    %v4028 = vrot.slane %v4009, 4
    %v4029 = vsel %vm79, %v4027, %v4028
    %v4030 = vrot.slane %v4021, 4
    %v4031 = vsel %vm79, %v4028, %v4030
    %v4032 = vrot.slane %v4020, 4
    %v4033 = vrot.slane %v4012, 4
    %v4034 = vsel %vm79, %v4032, %v4033
    %v4035 = vrot.slane %v4022, 4
    %v4036 = vsel %vm79, %v4033, %v4035
    %4037 = vrot.lane.b32.xlu0 %v4029, 64
    %v4038 = vpop.permute.xlu0 %4037
    %4039 = vrot.lane.b32.xlu0 %v4031, 64
    %v4040 = vpop.permute.xlu0 %4039
    %4041 = vrot.lane.b32.xlu0 %v4034, 64
    %v4042 = vpop.permute.xlu0 %4041
    %4043 = vrot.lane.b32.xlu0 %v4036, 64
    %v4044 = vpop.permute.xlu0 %4043
    %v4049 = vsel %vm558, %v4019, %v4038
    %v4050 = vsel %vm558, %v4009, %v4040
    %v4051 = vsel %vm558, %v4020, %v4042
    %v4052 = vsel %vm558, %v4012, %v4044
    %v4053 = vld [vmem:[%s15] sm:$0xff]
    %v4054 = vld [vmem:[%s15 + $0x8] sm:$0xff]
    %v4055 = vld [vmem:[%s15 + $0x10] sm:$0xff]
    %v4056 = vld [vmem:[%s15 + $0x18] sm:$0xff]
    %v4057 = vld [vmem:[%s15 + $0x20] sm:$0xff]
    %v4058 = vld [vmem:[%s15 + $0x28] sm:$0xff]
    %v4059 = vld [vmem:[%s15 + $0x30] sm:$0xff]
    %v4060 = vld [vmem:[%s15 + $0x38] sm:$0xff]
    %v4061 = vld [vmem:[%s15 + $0x40] sm:$0xff]
    %v4062 = vld [vmem:[%s15 + $0x48] sm:$0xff]
    %v4063 = vld [vmem:[%s15 + $0x50] sm:$0xff]
    %v4064 = vld [vmem:[%s15 + $0x58] sm:$0xff]
    %v4065 = vld [vmem:[%s15 + $0x60] sm:$0xff]
    %v4066 = vld [vmem:[%s15 + $0x68] sm:$0xff]
    %v4067 = vld [vmem:[%s15 + $0x70] sm:$0xff]
    %v4068 = vld [vmem:[%s15 + $0x78] sm:$0xff]
    %v4069 = vld [vmem:[%s15 + $0x80] sm:$0xff]
    %v4070 = vld [vmem:[%s15 + $0x88] sm:$0xff]
    %v4071 = vld [vmem:[%s15 + $0x90] sm:$0xff]
    %v4072 = vld [vmem:[%s15 + $0x98] sm:$0xff]
    %v4073 = vld [vmem:[%s15 + $0xa0] sm:$0xff]
    %v4074 = vld [vmem:[%s15 + $0xa8] sm:$0xff]
    %v4075 = vld [vmem:[%s15 + $0xb0] sm:$0xff]
    %v4076 = vld [vmem:[%s15 + $0xb8] sm:$0xff]
    %v4077 = vld [vmem:[%s16] sm:$0x1]
    %v4079 = vperm.slane %v4077, 0
    %v4081 = vsel %vm558, %v4009, 0
    %v4083 = vsel %vm558, %v4021, 0
    %v4085 = vsel %vm558, %v4012, 0
    %v4087 = vsel %vm558, %v4022, 0
    %v4089 = vand.u32 %v4068, 4294901760
    %4090 = vmatpush.msra.mxu0 %v4089
    %v4091 = vand.u32 %v4067, 4294901760
    %4092 = vmatpush.msra.mxu0 %v4091
    %v4093 = vand.u32 %v4066, 4294901760
    %4094 = vmatpush.msra.mxu0 %v4093
    %v4095 = vand.u32 %v4065, 4294901760
    %4096 = vmatpush.msra.mxu0 %v4095
    %v4097 = vand.u32 %v4064, 4294901760
    %4098 = vmatpush.msra.mxu0 %v4097
    %v4099 = vand.u32 %v4063, 4294901760
    %4100 = vmatpush.msra.mxu0 %v4099
    %v4101 = vand.u32 %v4062, 4294901760
    %4102 = vmatpush.msra.mxu0 %v4101
    %v4103 = vand.u32 %v4061, 4294901760
    %4104 = vmatpush.msra.mxu0 %v4103
    %v4105 = vand.u32 %v4060, 4294901760
    %4106 = vmatpush.msra.mxu0 %v4105
    %v4107 = vand.u32 %v4059, 4294901760
    %4108 = vmatpush.msra.mxu0 %v4107
    %v4109 = vand.u32 %v4058, 4294901760
    %4110 = vmatpush.msra.mxu0 %v4109
    %v4111 = vand.u32 %v4057, 4294901760
    %4112 = vmatpush.msra.mxu0 %v4111
    %v4113 = vand.u32 %v4056, 4294901760
    %4114 = vmatpush.msra.mxu0 %v4113
    %v4115 = vand.u32 %v4055, 4294901760
    %4116 = vmatpush.msra.mxu0 %v4115
    %v4117 = vand.u32 %v4054, 4294901760
    %4118 = vmatpush.msra.mxu0 %v4117
    %v4119 = vand.u32 %v4053, 4294901760
    %4120 = vmatpush.msra.mxu0 %v4119
    %v4121 = vand.u32 %v4049, 4294901760
    %v4122 = vsub.f32 %v4049, %v4121
    %v4123 = vand.u32 %v4122, 4294901760
    %v4124 = vsub.f32 %v4122, %v4123
    %v4125 = vand.u32 %v4124, 4294901760
    %4126 = vmatmul.f32.gmra.mxu0 %v4125
    %v4127 = vpop.f32.mrf.mxu0
    %v4128 = vand.u32 %v4050, 4294901760
    %v4129 = vsub.f32 %v4050, %v4128
    %v4130 = vand.u32 %v4129, 4294901760
    %v4131 = vsub.f32 %v4129, %v4130
    %v4132 = vand.u32 %v4131, 4294901760
    %4133 = vmatmul.f32.gmra.mxu0 %v4132
    %v4134 = vpop.f32.mrf.mxu0
    %v4135 = vadd.f32 %v4079, %v4134
    %v4136 = vand.u32 %v4051, 4294901760
    %v4137 = vsub.f32 %v4051, %v4136
    %v4138 = vand.u32 %v4137, 4294901760
    %v4139 = vsub.f32 %v4137, %v4138
    %v4140 = vand.u32 %v4139, 4294901760
    %4141 = vmatmul.f32.gmra.mxu0 %v4140
    %v4142 = vpop.f32.mrf.mxu0
    %v4143 = vand.u32 %v4052, 4294901760
    %v4144 = vsub.f32 %v4052, %v4143
    %v4145 = vand.u32 %v4144, 4294901760
    %v4146 = vsub.f32 %v4144, %v4145
    %v4147 = vand.u32 %v4146, 4294901760
    %4148 = vmatmul.f32.gmra.mxu0 %v4147
    %v4149 = vpop.f32.mrf.mxu0
    %v4150 = vadd.f32 %v4079, %v4149
    %4151 = vdwg.mxu0
    %v4152 = vand.u32 %v4068, 4294901760
    %v4153 = vsub.f32 %v4068, %v4152
    %v4154 = vand.u32 %v4153, 4294901760
    %v4155 = vsub.f32 %v4153, %v4154
    %v4156 = vand.u32 %v4155, 4294901760
    %4157 = vmatpush.msra.mxu0 %v4156
    %v4158 = vand.u32 %v4067, 4294901760
    %v4159 = vsub.f32 %v4067, %v4158
    %v4160 = vand.u32 %v4159, 4294901760
    %v4161 = vsub.f32 %v4159, %v4160
    %v4162 = vand.u32 %v4161, 4294901760
    %4163 = vmatpush.msra.mxu0 %v4162
    %v4164 = vand.u32 %v4066, 4294901760
    %v4165 = vsub.f32 %v4066, %v4164
    %v4166 = vand.u32 %v4165, 4294901760
    %v4167 = vsub.f32 %v4165, %v4166
    %v4168 = vand.u32 %v4167, 4294901760
    %4169 = vmatpush.msra.mxu0 %v4168
    %v4170 = vand.u32 %v4065, 4294901760
    %v4171 = vsub.f32 %v4065, %v4170
    %v4172 = vand.u32 %v4171, 4294901760
    %v4173 = vsub.f32 %v4171, %v4172
    %v4174 = vand.u32 %v4173, 4294901760
    %4175 = vmatpush.msra.mxu0 %v4174
    %v4176 = vand.u32 %v4064, 4294901760
    %v4177 = vsub.f32 %v4064, %v4176
    %v4178 = vand.u32 %v4177, 4294901760
    %v4179 = vsub.f32 %v4177, %v4178
    %v4180 = vand.u32 %v4179, 4294901760
    %4181 = vmatpush.msra.mxu0 %v4180
    %v4182 = vand.u32 %v4063, 4294901760
    %v4183 = vsub.f32 %v4063, %v4182
    %v4184 = vand.u32 %v4183, 4294901760
    %v4185 = vsub.f32 %v4183, %v4184
    %v4186 = vand.u32 %v4185, 4294901760
    %4187 = vmatpush.msra.mxu0 %v4186
    %v4188 = vand.u32 %v4062, 4294901760
    %v4189 = vsub.f32 %v4062, %v4188
    %v4190 = vand.u32 %v4189, 4294901760
    %v4191 = vsub.f32 %v4189, %v4190
    %v4192 = vand.u32 %v4191, 4294901760
    %4193 = vmatpush.msra.mxu0 %v4192
    %v4194 = vand.u32 %v4061, 4294901760
    %v4195 = vsub.f32 %v4061, %v4194
    %v4196 = vand.u32 %v4195, 4294901760
    %v4197 = vsub.f32 %v4195, %v4196
    %v4198 = vand.u32 %v4197, 4294901760
    %4199 = vmatpush.msra.mxu0 %v4198
    %v4200 = vand.u32 %v4060, 4294901760
    %v4201 = vsub.f32 %v4060, %v4200
    %v4202 = vand.u32 %v4201, 4294901760
    %v4203 = vsub.f32 %v4201, %v4202
    %v4204 = vand.u32 %v4203, 4294901760
    %4205 = vmatpush.msra.mxu0 %v4204
    %v4206 = vand.u32 %v4059, 4294901760
    %v4207 = vsub.f32 %v4059, %v4206
    %v4208 = vand.u32 %v4207, 4294901760
    %v4209 = vsub.f32 %v4207, %v4208
    %v4210 = vand.u32 %v4209, 4294901760
    %4211 = vmatpush.msra.mxu0 %v4210
    %v4212 = vand.u32 %v4058, 4294901760
    %v4213 = vsub.f32 %v4058, %v4212
    %v4214 = vand.u32 %v4213, 4294901760
    %v4215 = vsub.f32 %v4213, %v4214
    %v4216 = vand.u32 %v4215, 4294901760
    %4217 = vmatpush.msra.mxu0 %v4216
    %v4218 = vand.u32 %v4057, 4294901760
    %v4219 = vsub.f32 %v4057, %v4218
    %v4220 = vand.u32 %v4219, 4294901760
    %v4221 = vsub.f32 %v4219, %v4220
    %v4222 = vand.u32 %v4221, 4294901760
    %4223 = vmatpush.msra.mxu0 %v4222
    %v4224 = vand.u32 %v4056, 4294901760
    %v4225 = vsub.f32 %v4056, %v4224
    %v4226 = vand.u32 %v4225, 4294901760
    %v4227 = vsub.f32 %v4225, %v4226
    %v4228 = vand.u32 %v4227, 4294901760
    %4229 = vmatpush.msra.mxu0 %v4228
    %v4230 = vand.u32 %v4055, 4294901760
    %v4231 = vsub.f32 %v4055, %v4230
    %v4232 = vand.u32 %v4231, 4294901760
    %v4233 = vsub.f32 %v4231, %v4232
    %v4234 = vand.u32 %v4233, 4294901760
    %4235 = vmatpush.msra.mxu0 %v4234
    %v4236 = vand.u32 %v4054, 4294901760
    %v4237 = vsub.f32 %v4054, %v4236
    %v4238 = vand.u32 %v4237, 4294901760
    %v4239 = vsub.f32 %v4237, %v4238
    %v4240 = vand.u32 %v4239, 4294901760
    %4241 = vmatpush.msra.mxu0 %v4240
    %v4242 = vand.u32 %v4053, 4294901760
    %v4243 = vsub.f32 %v4053, %v4242
    %v4244 = vand.u32 %v4243, 4294901760
    %v4245 = vsub.f32 %v4243, %v4244
    %v4246 = vand.u32 %v4245, 4294901760
    %4247 = vmatpush.msra.mxu0 %v4246
    %v4248 = vand.u32 %v4049, 4294901760
    %4249 = vmatmul.f32.gmra.mxu0 %v4248
    %v4250 = vpop.f32.mrf.mxu0
    %v4251 = vand.u32 %v4050, 4294901760
    %4252 = vmatmul.f32.gmra.mxu0 %v4251
    %v4253 = vpop.f32.mrf.mxu0
    %v4254 = vadd.f32 %v4135, %v4253
    %v4255 = vand.u32 %v4051, 4294901760
    %4256 = vmatmul.f32.gmra.mxu0 %v4255
    %v4257 = vpop.f32.mrf.mxu0
    %v4258 = vand.u32 %v4052, 4294901760
    %4259 = vmatmul.f32.gmra.mxu0 %v4258
    %v4260 = vpop.f32.mrf.mxu0
    %v4261 = vadd.f32 %v4150, %v4260
    %4262 = vdwg.mxu0
    %v4263 = vand.u32 %v4068, 4294901760
    %v4264 = vsub.f32 %v4068, %v4263
    %4265 = vmatpush.msra.mxu0 %v4264
    %v4266 = vand.u32 %v4067, 4294901760
    %v4267 = vsub.f32 %v4067, %v4266
    %4268 = vmatpush.msra.mxu0 %v4267
    %v4269 = vand.u32 %v4066, 4294901760
    %v4270 = vsub.f32 %v4066, %v4269
    %4271 = vmatpush.msra.mxu0 %v4270
    %v4272 = vand.u32 %v4065, 4294901760
    %v4273 = vsub.f32 %v4065, %v4272
    %4274 = vmatpush.msra.mxu0 %v4273
    %v4275 = vand.u32 %v4064, 4294901760
    %v4276 = vsub.f32 %v4064, %v4275
    %4277 = vmatpush.msra.mxu0 %v4276
    %v4278 = vand.u32 %v4063, 4294901760
    %v4279 = vsub.f32 %v4063, %v4278
    %4280 = vmatpush.msra.mxu0 %v4279
    %v4281 = vand.u32 %v4062, 4294901760
    %v4282 = vsub.f32 %v4062, %v4281
    %4283 = vmatpush.msra.mxu0 %v4282
    %v4284 = vand.u32 %v4061, 4294901760
    %v4285 = vsub.f32 %v4061, %v4284
    %4286 = vmatpush.msra.mxu0 %v4285
    %v4287 = vand.u32 %v4060, 4294901760
    %v4288 = vsub.f32 %v4060, %v4287
    %4289 = vmatpush.msra.mxu0 %v4288
    %v4290 = vand.u32 %v4059, 4294901760
    %v4291 = vsub.f32 %v4059, %v4290
    %4292 = vmatpush.msra.mxu0 %v4291
    %v4293 = vand.u32 %v4058, 4294901760
    %v4294 = vsub.f32 %v4058, %v4293
    %4295 = vmatpush.msra.mxu0 %v4294
    %v4296 = vand.u32 %v4057, 4294901760
    %v4297 = vsub.f32 %v4057, %v4296
    %4298 = vmatpush.msra.mxu0 %v4297
    %v4299 = vand.u32 %v4056, 4294901760
    %v4300 = vsub.f32 %v4056, %v4299
    %4301 = vmatpush.msra.mxu0 %v4300
    %v4302 = vand.u32 %v4055, 4294901760
    %v4303 = vsub.f32 %v4055, %v4302
    %4304 = vmatpush.msra.mxu0 %v4303
    %v4305 = vand.u32 %v4054, 4294901760
    %v4306 = vsub.f32 %v4054, %v4305
    %4307 = vmatpush.msra.mxu0 %v4306
    %v4308 = vand.u32 %v4053, 4294901760
    %v4309 = vsub.f32 %v4053, %v4308
    %4310 = vmatpush.msra.mxu0 %v4309
    %v4311 = vand.u32 %v4049, 4294901760
    %v4312 = vsub.f32 %v4049, %v4311
    %4313 = vmatmul.f32.gmra.mxu0 %v4312
    %v4314 = vpop.f32.mrf.mxu0
    %v4315 = vand.u32 %v4050, 4294901760
    %v4316 = vsub.f32 %v4050, %v4315
    %4317 = vmatmul.f32.gmra.mxu0 %v4316
    %v4318 = vpop.f32.mrf.mxu0
    %v4319 = vadd.f32 %v4254, %v4318
    %v4320 = vand.u32 %v4051, 4294901760
    %v4321 = vsub.f32 %v4051, %v4320
    %4322 = vmatmul.f32.gmra.mxu0 %v4321
    %v4323 = vpop.f32.mrf.mxu0
    %v4324 = vand.u32 %v4052, 4294901760
    %v4325 = vsub.f32 %v4052, %v4324
    %4326 = vmatmul.f32.gmra.mxu0 %v4325
    %v4327 = vpop.f32.mrf.mxu0
    %v4328 = vadd.f32 %v4261, %v4327
    %4329 = vdwg.mxu0
    %v4330 = vand.u32 %v4068, 4294901760
    %4331 = vmatpush.msra.mxu0 %v4330
    %v4332 = vand.u32 %v4067, 4294901760
    %4333 = vmatpush.msra.mxu0 %v4332
    %v4334 = vand.u32 %v4066, 4294901760
    %4335 = vmatpush.msra.mxu0 %v4334
    %v4336 = vand.u32 %v4065, 4294901760
    %4337 = vmatpush.msra.mxu0 %v4336
    %v4338 = vand.u32 %v4064, 4294901760
    %4339 = vmatpush.msra.mxu0 %v4338
    %v4340 = vand.u32 %v4063, 4294901760
    %4341 = vmatpush.msra.mxu0 %v4340
    %v4342 = vand.u32 %v4062, 4294901760
    %4343 = vmatpush.msra.mxu0 %v4342
    %v4344 = vand.u32 %v4061, 4294901760
    %4345 = vmatpush.msra.mxu0 %v4344
    %v4346 = vand.u32 %v4060, 4294901760
    %4347 = vmatpush.msra.mxu0 %v4346
    %v4348 = vand.u32 %v4059, 4294901760
    %4349 = vmatpush.msra.mxu0 %v4348
    %v4350 = vand.u32 %v4058, 4294901760
    %4351 = vmatpush.msra.mxu0 %v4350
    %v4352 = vand.u32 %v4057, 4294901760
    %4353 = vmatpush.msra.mxu0 %v4352
    %v4354 = vand.u32 %v4056, 4294901760
    %4355 = vmatpush.msra.mxu0 %v4354
    %v4356 = vand.u32 %v4055, 4294901760
    %4357 = vmatpush.msra.mxu0 %v4356
    %v4358 = vand.u32 %v4054, 4294901760
    %4359 = vmatpush.msra.mxu0 %v4358
    %v4360 = vand.u32 %v4053, 4294901760
    %4361 = vmatpush.msra.mxu0 %v4360
    %v4362 = vand.u32 %v4049, 4294901760
    %v4363 = vsub.f32 %v4049, %v4362
    %v4364 = vand.u32 %v4363, 4294901760
    %4365 = vmatmul.f32.gmra.mxu0 %v4364
    %v4366 = vpop.f32.mrf.mxu0
    %v4367 = vand.u32 %v4050, 4294901760
    %v4368 = vsub.f32 %v4050, %v4367
    %v4369 = vand.u32 %v4368, 4294901760
    %4370 = vmatmul.f32.gmra.mxu0 %v4369
    %v4371 = vpop.f32.mrf.mxu0
    %v4372 = vadd.f32 %v4319, %v4371
    %v4373 = vand.u32 %v4051, 4294901760
    %v4374 = vsub.f32 %v4051, %v4373
    %v4375 = vand.u32 %v4374, 4294901760
    %4376 = vmatmul.f32.gmra.mxu0 %v4375
    %v4377 = vpop.f32.mrf.mxu0
    %v4378 = vand.u32 %v4052, 4294901760
    %v4379 = vsub.f32 %v4052, %v4378
    %v4380 = vand.u32 %v4379, 4294901760
    %4381 = vmatmul.f32.gmra.mxu0 %v4380
    %v4382 = vpop.f32.mrf.mxu0
    %v4383 = vadd.f32 %v4328, %v4382
    %4384 = vdwg.mxu0
    %v4385 = vand.u32 %v4068, 4294901760
    %v4386 = vsub.f32 %v4068, %v4385
    %v4387 = vand.u32 %v4386, 4294901760
    %4388 = vmatpush.msra.mxu0 %v4387
    %v4389 = vand.u32 %v4067, 4294901760
    %v4390 = vsub.f32 %v4067, %v4389
    %v4391 = vand.u32 %v4390, 4294901760
    %4392 = vmatpush.msra.mxu0 %v4391
    %v4393 = vand.u32 %v4066, 4294901760
    %v4394 = vsub.f32 %v4066, %v4393
    %v4395 = vand.u32 %v4394, 4294901760
    %4396 = vmatpush.msra.mxu0 %v4395
    %v4397 = vand.u32 %v4065, 4294901760
    %v4398 = vsub.f32 %v4065, %v4397
    %v4399 = vand.u32 %v4398, 4294901760
    %4400 = vmatpush.msra.mxu0 %v4399
    %v4401 = vand.u32 %v4064, 4294901760
    %v4402 = vsub.f32 %v4064, %v4401
    %v4403 = vand.u32 %v4402, 4294901760
    %4404 = vmatpush.msra.mxu0 %v4403
    %v4405 = vand.u32 %v4063, 4294901760
    %v4406 = vsub.f32 %v4063, %v4405
    %v4407 = vand.u32 %v4406, 4294901760
    %4408 = vmatpush.msra.mxu0 %v4407
    %v4409 = vand.u32 %v4062, 4294901760
    %v4410 = vsub.f32 %v4062, %v4409
    %v4411 = vand.u32 %v4410, 4294901760
    %4412 = vmatpush.msra.mxu0 %v4411
    %v4413 = vand.u32 %v4061, 4294901760
    %v4414 = vsub.f32 %v4061, %v4413
    %v4415 = vand.u32 %v4414, 4294901760
    %4416 = vmatpush.msra.mxu0 %v4415
    %v4417 = vand.u32 %v4060, 4294901760
    %v4418 = vsub.f32 %v4060, %v4417
    %v4419 = vand.u32 %v4418, 4294901760
    %4420 = vmatpush.msra.mxu0 %v4419
    %v4421 = vand.u32 %v4059, 4294901760
    %v4422 = vsub.f32 %v4059, %v4421
    %v4423 = vand.u32 %v4422, 4294901760
    %4424 = vmatpush.msra.mxu0 %v4423
    %v4425 = vand.u32 %v4058, 4294901760
    %v4426 = vsub.f32 %v4058, %v4425
    %v4427 = vand.u32 %v4426, 4294901760
    %4428 = vmatpush.msra.mxu0 %v4427
    %v4429 = vand.u32 %v4057, 4294901760
    %v4430 = vsub.f32 %v4057, %v4429
    %v4431 = vand.u32 %v4430, 4294901760
    %4432 = vmatpush.msra.mxu0 %v4431
    %v4433 = vand.u32 %v4056, 4294901760
    %v4434 = vsub.f32 %v4056, %v4433
    %v4435 = vand.u32 %v4434, 4294901760
    %4436 = vmatpush.msra.mxu0 %v4435
    %v4437 = vand.u32 %v4055, 4294901760
    %v4438 = vsub.f32 %v4055, %v4437
    %v4439 = vand.u32 %v4438, 4294901760
    %4440 = vmatpush.msra.mxu0 %v4439
    %v4441 = vand.u32 %v4054, 4294901760
    %v4442 = vsub.f32 %v4054, %v4441
    %v4443 = vand.u32 %v4442, 4294901760
    %4444 = vmatpush.msra.mxu0 %v4443
    %v4445 = vand.u32 %v4053, 4294901760
    %v4446 = vsub.f32 %v4053, %v4445
    %v4447 = vand.u32 %v4446, 4294901760
    %4448 = vmatpush.msra.mxu0 %v4447
    %v4449 = vand.u32 %v4049, 4294901760
    %4450 = vmatmul.f32.gmra.mxu0 %v4449
    %v4451 = vpop.f32.mrf.mxu0
    %v4452 = vand.u32 %v4050, 4294901760
    %4453 = vmatmul.f32.gmra.mxu0 %v4452
    %v4454 = vpop.f32.mrf.mxu0
    %v4455 = vadd.f32 %v4372, %v4454
    %v4456 = vand.u32 %v4051, 4294901760
    %4457 = vmatmul.f32.gmra.mxu0 %v4456
    %v4458 = vpop.f32.mrf.mxu0
    %v4459 = vand.u32 %v4052, 4294901760
    %4460 = vmatmul.f32.gmra.mxu0 %v4459
    %v4461 = vpop.f32.mrf.mxu0
    %v4462 = vadd.f32 %v4383, %v4461
    %4463 = vdwg.mxu0
    %v4464 = vand.u32 %v4068, 4294901760
    %4465 = vmatpush.msra.mxu0 %v4464
    %v4466 = vand.u32 %v4067, 4294901760
    %4467 = vmatpush.msra.mxu0 %v4466
    %v4468 = vand.u32 %v4066, 4294901760
    %4469 = vmatpush.msra.mxu0 %v4468
    %v4470 = vand.u32 %v4065, 4294901760
    %4471 = vmatpush.msra.mxu0 %v4470
    %v4472 = vand.u32 %v4064, 4294901760
    %4473 = vmatpush.msra.mxu0 %v4472
    %v4474 = vand.u32 %v4063, 4294901760
    %4475 = vmatpush.msra.mxu0 %v4474
    %v4476 = vand.u32 %v4062, 4294901760
    %4477 = vmatpush.msra.mxu0 %v4476
    %v4478 = vand.u32 %v4061, 4294901760
    %4479 = vmatpush.msra.mxu0 %v4478
    %v4480 = vand.u32 %v4060, 4294901760
    %4481 = vmatpush.msra.mxu0 %v4480
    %v4482 = vand.u32 %v4059, 4294901760
    %4483 = vmatpush.msra.mxu0 %v4482
    %v4484 = vand.u32 %v4058, 4294901760
    %4485 = vmatpush.msra.mxu0 %v4484
    %v4486 = vand.u32 %v4057, 4294901760
    %4487 = vmatpush.msra.mxu0 %v4486
    %v4488 = vand.u32 %v4056, 4294901760
    %4489 = vmatpush.msra.mxu0 %v4488
    %v4490 = vand.u32 %v4055, 4294901760
    %4491 = vmatpush.msra.mxu0 %v4490
    %v4492 = vand.u32 %v4054, 4294901760
    %4493 = vmatpush.msra.mxu0 %v4492
    %v4494 = vand.u32 %v4053, 4294901760
    %4495 = vmatpush.msra.mxu0 %v4494
    %v4496 = vand.u32 %v4049, 4294901760
    %4497 = vmatmul.f32.gmra.mxu0 %v4496
    %v4498 = vpop.f32.mrf.mxu0
    %v4499 = vand.u32 %v4050, 4294901760
    %4500 = vmatmul.f32.gmra.mxu0 %v4499
    %v4501 = vpop.f32.mrf.mxu0
    %v4502 = vadd.f32 %v4455, %v4501
    %v4503 = vand.u32 %v4051, 4294901760
    %4504 = vmatmul.f32.gmra.mxu0 %v4503
    %v4505 = vpop.f32.mrf.mxu0
    %v4506 = vand.u32 %v4052, 4294901760
    %4507 = vmatmul.f32.gmra.mxu0 %v4506
    %v4508 = vpop.f32.mrf.mxu0
    %v4509 = vadd.f32 %v4462, %v4508
    %4510 = vdwg.mxu0
    %4511 = vmatpush.msra.mxu0 0.0
    %4512 = vmatpush.msra.mxu0 0.0
    %4513 = vmatpush.msra.mxu0 0.0
    %4514 = vmatpush.msra.mxu0 0.0
    %4515 = vmatpush.msra.mxu0 0.0
    %4516 = vmatpush.msra.mxu0 0.0
    %4517 = vmatpush.msra.mxu0 0.0
    %4518 = vmatpush.msra.mxu0 0.0
    %v4519 = vand.u32 %v4076, 4294901760
    %4520 = vmatpush.msra.mxu0 %v4519
    %v4521 = vand.u32 %v4075, 4294901760
    %4522 = vmatpush.msra.mxu0 %v4521
    %v4523 = vand.u32 %v4074, 4294901760
    %4524 = vmatpush.msra.mxu0 %v4523
    %v4525 = vand.u32 %v4073, 4294901760
    %4526 = vmatpush.msra.mxu0 %v4525
    %v4527 = vand.u32 %v4072, 4294901760
    %4528 = vmatpush.msra.mxu0 %v4527
    %v4529 = vand.u32 %v4071, 4294901760
    %4530 = vmatpush.msra.mxu0 %v4529
    %v4531 = vand.u32 %v4070, 4294901760
    %4532 = vmatpush.msra.mxu0 %v4531
    %v4533 = vand.u32 %v4069, 4294901760
    %4534 = vmatpush.msra.mxu0 %v4533
    %v4535 = vand.u32 %v4081, 4294901760
    %v4536 = vsub.f32 %v4081, %v4535
    %v4537 = vand.u32 %v4536, 4294901760
    %v4538 = vsub.f32 %v4536, %v4537
    %v4539 = vand.u32 %v4538, 4294901760
    %4540 = vmatmul.f32.gmra.mxu0 %v4539
    %v4541 = vpop.f32.mrf.mxu0
    %v4542 = vand.u32 %v4083, 4294901760
    %v4543 = vsub.f32 %v4083, %v4542
    %v4544 = vand.u32 %v4543, 4294901760
    %v4545 = vsub.f32 %v4543, %v4544
    %v4546 = vand.u32 %v4545, 4294901760
    %4547 = vmatmul.f32.gmra.mxu0 %v4546
    %v4548 = vpop.f32.mrf.mxu0
    %v4549 = vadd.f32 %v4502, %v4548
    %v4550 = vand.u32 %v4085, 4294901760
    %v4551 = vsub.f32 %v4085, %v4550
    %v4552 = vand.u32 %v4551, 4294901760
    %v4553 = vsub.f32 %v4551, %v4552
    %v4554 = vand.u32 %v4553, 4294901760
    %4555 = vmatmul.f32.gmra.mxu0 %v4554
    %v4556 = vpop.f32.mrf.mxu0
    %v4557 = vand.u32 %v4087, 4294901760
    %v4558 = vsub.f32 %v4087, %v4557
    %v4559 = vand.u32 %v4558, 4294901760
    %v4560 = vsub.f32 %v4558, %v4559
    %v4561 = vand.u32 %v4560, 4294901760
    %4562 = vmatmul.f32.gmra.mxu0 %v4561
    %v4563 = vpop.f32.mrf.mxu0
    %v4564 = vadd.f32 %v4509, %v4563
    %4565 = vdwg.mxu0
    %4566 = vmatpush.msra.mxu0 0.0
    %4567 = vmatpush.msra.mxu0 0.0
    %4568 = vmatpush.msra.mxu0 0.0
    %4569 = vmatpush.msra.mxu0 0.0
    %4570 = vmatpush.msra.mxu0 0.0
    %4571 = vmatpush.msra.mxu0 0.0
    %4572 = vmatpush.msra.mxu0 0.0
    %4573 = vmatpush.msra.mxu0 0.0
    %v4574 = vand.u32 %v4076, 4294901760
    %v4575 = vsub.f32 %v4076, %v4574
    %v4576 = vand.u32 %v4575, 4294901760
    %v4577 = vsub.f32 %v4575, %v4576
    %v4578 = vand.u32 %v4577, 4294901760
    %4579 = vmatpush.msra.mxu0 %v4578
    %v4580 = vand.u32 %v4075, 4294901760
    %v4581 = vsub.f32 %v4075, %v4580
    %v4582 = vand.u32 %v4581, 4294901760
    %v4583 = vsub.f32 %v4581, %v4582
    %v4584 = vand.u32 %v4583, 4294901760
    %4585 = vmatpush.msra.mxu0 %v4584
    %v4586 = vand.u32 %v4074, 4294901760
    %v4587 = vsub.f32 %v4074, %v4586
    %v4588 = vand.u32 %v4587, 4294901760
    %v4589 = vsub.f32 %v4587, %v4588
    %v4590 = vand.u32 %v4589, 4294901760
    %4591 = vmatpush.msra.mxu0 %v4590
    %v4592 = vand.u32 %v4073, 4294901760
    %v4593 = vsub.f32 %v4073, %v4592
    %v4594 = vand.u32 %v4593, 4294901760
    %v4595 = vsub.f32 %v4593, %v4594
    %v4596 = vand.u32 %v4595, 4294901760
    %4597 = vmatpush.msra.mxu0 %v4596
    %v4598 = vand.u32 %v4072, 4294901760
    %v4599 = vsub.f32 %v4072, %v4598
    %v4600 = vand.u32 %v4599, 4294901760
    %v4601 = vsub.f32 %v4599, %v4600
    %v4602 = vand.u32 %v4601, 4294901760
    %4603 = vmatpush.msra.mxu0 %v4602
    %v4604 = vand.u32 %v4071, 4294901760
    %v4605 = vsub.f32 %v4071, %v4604
    %v4606 = vand.u32 %v4605, 4294901760
    %v4607 = vsub.f32 %v4605, %v4606
    %v4608 = vand.u32 %v4607, 4294901760
    %4609 = vmatpush.msra.mxu0 %v4608
    %v4610 = vand.u32 %v4070, 4294901760
    %v4611 = vsub.f32 %v4070, %v4610
    %v4612 = vand.u32 %v4611, 4294901760
    %v4613 = vsub.f32 %v4611, %v4612
    %v4614 = vand.u32 %v4613, 4294901760
    %4615 = vmatpush.msra.mxu0 %v4614
    %v4616 = vand.u32 %v4069, 4294901760
    %v4617 = vsub.f32 %v4069, %v4616
    %v4618 = vand.u32 %v4617, 4294901760
    %v4619 = vsub.f32 %v4617, %v4618
    %v4620 = vand.u32 %v4619, 4294901760
    %4621 = vmatpush.msra.mxu0 %v4620
    %v4622 = vand.u32 %v4081, 4294901760
    %4623 = vmatmul.f32.gmra.mxu0 %v4622
    %v4624 = vpop.f32.mrf.mxu0
    %v4625 = vand.u32 %v4083, 4294901760
    %4626 = vmatmul.f32.gmra.mxu0 %v4625
    %v4627 = vpop.f32.mrf.mxu0
    %v4628 = vadd.f32 %v4549, %v4627
    %v4629 = vand.u32 %v4085, 4294901760
    %4630 = vmatmul.f32.gmra.mxu0 %v4629
    %v4631 = vpop.f32.mrf.mxu0
    %v4632 = vand.u32 %v4087, 4294901760
    %4633 = vmatmul.f32.gmra.mxu0 %v4632
    %v4634 = vpop.f32.mrf.mxu0
    %v4635 = vadd.f32 %v4564, %v4634
    %4636 = vdwg.mxu0
    %4637 = vmatpush.msra.mxu0 0.0
    %4638 = vmatpush.msra.mxu0 0.0
    %4639 = vmatpush.msra.mxu0 0.0
    %4640 = vmatpush.msra.mxu0 0.0
    %4641 = vmatpush.msra.mxu0 0.0
    %4642 = vmatpush.msra.mxu0 0.0
    %4643 = vmatpush.msra.mxu0 0.0
    %4644 = vmatpush.msra.mxu0 0.0
    %v4645 = vand.u32 %v4076, 4294901760
    %v4646 = vsub.f32 %v4076, %v4645
    %4647 = vmatpush.msra.mxu0 %v4646
    %v4648 = vand.u32 %v4075, 4294901760
    %v4649 = vsub.f32 %v4075, %v4648
    %4650 = vmatpush.msra.mxu0 %v4649
    %v4651 = vand.u32 %v4074, 4294901760
    %v4652 = vsub.f32 %v4074, %v4651
    %4653 = vmatpush.msra.mxu0 %v4652
    %v4654 = vand.u32 %v4073, 4294901760
    %v4655 = vsub.f32 %v4073, %v4654
    %4656 = vmatpush.msra.mxu0 %v4655
    %v4657 = vand.u32 %v4072, 4294901760
    %v4658 = vsub.f32 %v4072, %v4657
    %4659 = vmatpush.msra.mxu0 %v4658
    %v4660 = vand.u32 %v4071, 4294901760
    %v4661 = vsub.f32 %v4071, %v4660
    %4662 = vmatpush.msra.mxu0 %v4661
    %v4663 = vand.u32 %v4070, 4294901760
    %v4664 = vsub.f32 %v4070, %v4663
    %4665 = vmatpush.msra.mxu0 %v4664
    %v4666 = vand.u32 %v4069, 4294901760
    %v4667 = vsub.f32 %v4069, %v4666
    %4668 = vmatpush.msra.mxu0 %v4667
    %v4669 = vand.u32 %v4081, 4294901760
    %v4670 = vsub.f32 %v4081, %v4669
    %4671 = vmatmul.f32.gmra.mxu0 %v4670
    %v4672 = vpop.f32.mrf.mxu0
    %v4673 = vand.u32 %v4083, 4294901760
    %v4674 = vsub.f32 %v4083, %v4673
    %4675 = vmatmul.f32.gmra.mxu0 %v4674
    %v4676 = vpop.f32.mrf.mxu0
    %v4677 = vadd.f32 %v4628, %v4676
    %v4678 = vand.u32 %v4085, 4294901760
    %v4679 = vsub.f32 %v4085, %v4678
    %4680 = vmatmul.f32.gmra.mxu0 %v4679
    %v4681 = vpop.f32.mrf.mxu0
    %v4682 = vand.u32 %v4087, 4294901760
    %v4683 = vsub.f32 %v4087, %v4682
    %4684 = vmatmul.f32.gmra.mxu0 %v4683
    %v4685 = vpop.f32.mrf.mxu0
    %v4686 = vadd.f32 %v4635, %v4685
    %4687 = vdwg.mxu0
    %4688 = vmatpush.msra.mxu0 0.0
    %4689 = vmatpush.msra.mxu0 0.0
    %4690 = vmatpush.msra.mxu0 0.0
    %4691 = vmatpush.msra.mxu0 0.0
    %4692 = vmatpush.msra.mxu0 0.0
    %4693 = vmatpush.msra.mxu0 0.0
    %4694 = vmatpush.msra.mxu0 0.0
    %4695 = vmatpush.msra.mxu0 0.0
    %v4696 = vand.u32 %v4076, 4294901760
    %4697 = vmatpush.msra.mxu0 %v4696
    %v4698 = vand.u32 %v4075, 4294901760
    %4699 = vmatpush.msra.mxu0 %v4698
    %v4700 = vand.u32 %v4074, 4294901760
    %4701 = vmatpush.msra.mxu0 %v4700
    %v4702 = vand.u32 %v4073, 4294901760
    %4703 = vmatpush.msra.mxu0 %v4702
    %v4704 = vand.u32 %v4072, 4294901760
    %4705 = vmatpush.msra.mxu0 %v4704
    %v4706 = vand.u32 %v4071, 4294901760
    %4707 = vmatpush.msra.mxu0 %v4706
    %v4708 = vand.u32 %v4070, 4294901760
    %4709 = vmatpush.msra.mxu0 %v4708
    %v4710 = vand.u32 %v4069, 4294901760
    %4711 = vmatpush.msra.mxu0 %v4710
    %v4712 = vand.u32 %v4081, 4294901760
    %v4713 = vsub.f32 %v4081, %v4712
    %v4714 = vand.u32 %v4713, 4294901760
    %4715 = vmatmul.f32.gmra.mxu0 %v4714
    %v4716 = vpop.f32.mrf.mxu0
    %v4717 = vand.u32 %v4083, 4294901760
    %v4718 = vsub.f32 %v4083, %v4717
    %v4719 = vand.u32 %v4718, 4294901760
    %4720 = vmatmul.f32.gmra.mxu0 %v4719
    %v4721 = vpop.f32.mrf.mxu0
    %v4722 = vadd.f32 %v4677, %v4721
    %v4723 = vand.u32 %v4085, 4294901760
    %v4724 = vsub.f32 %v4085, %v4723
    %v4725 = vand.u32 %v4724, 4294901760
    %4726 = vmatmul.f32.gmra.mxu0 %v4725
    %v4727 = vpop.f32.mrf.mxu0
    %v4728 = vand.u32 %v4087, 4294901760
    %v4729 = vsub.f32 %v4087, %v4728
    %v4730 = vand.u32 %v4729, 4294901760
    %4731 = vmatmul.f32.gmra.mxu0 %v4730
    %v4732 = vpop.f32.mrf.mxu0
    %v4733 = vadd.f32 %v4686, %v4732
    %4734 = vdwg.mxu0
    %4735 = vmatpush.msra.mxu0 0.0
    %4736 = vmatpush.msra.mxu0 0.0
    %4737 = vmatpush.msra.mxu0 0.0
    %4738 = vmatpush.msra.mxu0 0.0
    %4739 = vmatpush.msra.mxu0 0.0
    %4740 = vmatpush.msra.mxu0 0.0
    %4741 = vmatpush.msra.mxu0 0.0
    %4742 = vmatpush.msra.mxu0 0.0
    %v4743 = vand.u32 %v4076, 4294901760
    %v4744 = vsub.f32 %v4076, %v4743
    %v4745 = vand.u32 %v4744, 4294901760
    %4746 = vmatpush.msra.mxu0 %v4745
    %v4747 = vand.u32 %v4075, 4294901760
    %v4748 = vsub.f32 %v4075, %v4747
    %v4749 = vand.u32 %v4748, 4294901760
    %4750 = vmatpush.msra.mxu0 %v4749
    %v4751 = vand.u32 %v4074, 4294901760
    %v4752 = vsub.f32 %v4074, %v4751
    %v4753 = vand.u32 %v4752, 4294901760
    %4754 = vmatpush.msra.mxu0 %v4753
    %v4755 = vand.u32 %v4073, 4294901760
    %v4756 = vsub.f32 %v4073, %v4755
    %v4757 = vand.u32 %v4756, 4294901760
    %4758 = vmatpush.msra.mxu0 %v4757
    %v4759 = vand.u32 %v4072, 4294901760
    %v4760 = vsub.f32 %v4072, %v4759
    %v4761 = vand.u32 %v4760, 4294901760
    %4762 = vmatpush.msra.mxu0 %v4761
    %v4763 = vand.u32 %v4071, 4294901760
    %v4764 = vsub.f32 %v4071, %v4763
    %v4765 = vand.u32 %v4764, 4294901760
    %4766 = vmatpush.msra.mxu0 %v4765
    %v4767 = vand.u32 %v4070, 4294901760
    %v4768 = vsub.f32 %v4070, %v4767
    %v4769 = vand.u32 %v4768, 4294901760
    %4770 = vmatpush.msra.mxu0 %v4769
    %v4771 = vand.u32 %v4069, 4294901760
    %v4772 = vsub.f32 %v4069, %v4771
    %v4773 = vand.u32 %v4772, 4294901760
    %4774 = vmatpush.msra.mxu0 %v4773
    %v4775 = vand.u32 %v4081, 4294901760
    %4776 = vmatmul.f32.gmra.mxu0 %v4775
    %v4777 = vpop.f32.mrf.mxu0
    %v4778 = vand.u32 %v4083, 4294901760
    %4779 = vmatmul.f32.gmra.mxu0 %v4778
    %v4780 = vpop.f32.mrf.mxu0
    %v4781 = vadd.f32 %v4722, %v4780
    %v4782 = vand.u32 %v4085, 4294901760
    %4783 = vmatmul.f32.gmra.mxu0 %v4782
    %v4784 = vpop.f32.mrf.mxu0
    %v4785 = vand.u32 %v4087, 4294901760
    %4786 = vmatmul.f32.gmra.mxu0 %v4785
    %v4787 = vpop.f32.mrf.mxu0
    %v4788 = vadd.f32 %v4733, %v4787
    %4789 = vdwg.mxu0
    %4790 = vmatpush.msra.mxu0 0.0
    %4791 = vmatpush.msra.mxu0 0.0
    %4792 = vmatpush.msra.mxu0 0.0
    %4793 = vmatpush.msra.mxu0 0.0
    %4794 = vmatpush.msra.mxu0 0.0
    %4795 = vmatpush.msra.mxu0 0.0
    %4796 = vmatpush.msra.mxu0 0.0
    %4797 = vmatpush.msra.mxu0 0.0
    %v4798 = vand.u32 %v4076, 4294901760
    %4799 = vmatpush.msra.mxu0 %v4798
    %v4800 = vand.u32 %v4075, 4294901760
    %4801 = vmatpush.msra.mxu0 %v4800
    %v4802 = vand.u32 %v4074, 4294901760
    %4803 = vmatpush.msra.mxu0 %v4802
    %v4804 = vand.u32 %v4073, 4294901760
    %4805 = vmatpush.msra.mxu0 %v4804
    %v4806 = vand.u32 %v4072, 4294901760
    %4807 = vmatpush.msra.mxu0 %v4806
    %v4808 = vand.u32 %v4071, 4294901760
    %4809 = vmatpush.msra.mxu0 %v4808
    %v4810 = vand.u32 %v4070, 4294901760
    %4811 = vmatpush.msra.mxu0 %v4810
    %v4812 = vand.u32 %v4069, 4294901760
    %4813 = vmatpush.msra.mxu0 %v4812
    %v4814 = vand.u32 %v4081, 4294901760
    %4815 = vmatmul.f32.gmra.mxu0 %v4814
    %v4816 = vpop.f32.mrf.mxu0
    %v4817 = vand.u32 %v4083, 4294901760
    %4818 = vmatmul.f32.gmra.mxu0 %v4817
    %v4819 = vpop.f32.mrf.mxu0
    %v4820 = vadd.f32 %v4781, %v4819
    %v4821 = vand.u32 %v4085, 4294901760
    %4822 = vmatmul.f32.gmra.mxu0 %v4821
    %v4823 = vpop.f32.mrf.mxu0
    %v4824 = vand.u32 %v4087, 4294901760
    %4825 = vmatmul.f32.gmra.mxu0 %v4824
    %v4826 = vpop.f32.mrf.mxu0
    %v4827 = vadd.f32 %v4788, %v4826
    %4828 = vdwg.mxu0
    %v4829 = vadd.f32 %v4820, %v3198
    %v4830 = vadd.f32 %v4827, %v3205
    %v4833 = vrot.slane %v4830, 7
    %vm4836 = vcmask 523271
    %4837 = vst.msk [vmem:[#allocation2 - $0x7] sm:$0x80] %vm4836, %v4829
    %vm4838 = vcmask 516096
    %4839 = vst.msk [vmem:[#allocation2 + $0x1] sm:$0x1] %vm4838, %v4833
    // Predicated region
    $region70: #{tpu_custom_call.1} parent=1 // pred_check
      _
    $region71: #{tpu_custom_call.1} parent=1 // pred_check_branch
      %4841 = sbr.rel (0) target = $region73
    $region72: #{tpu_custom_call.1} parent=1 // pred_region
      %4843 = vsyncadd [#allocation3], 0
      %s4845 = sshll.u32 [#allocation2], 4
      %s4846 = int_to_ptr.vmem [resolvable:$true] %s4845
      %s4847 = sshll.u32 %s17, 4
      %s4848 = int_to_ptr.hbm [resolvable:$true] %s4847
      %4850 = dma.vmem_to_hbm [thread:$0]  %s4846, 32, %s4848, [#allocation3]
    $region73: #{tpu_custom_call.1} parent=1 // pred_fallthru
      _
    // Predicated region
    $region74: #{tpu_custom_call.1} parent=1 // pred_check
      _
    $region75: #{tpu_custom_call.1} parent=1 // pred_check_branch
      %4852 = sbr.rel (0) target = $region77
    $region76: #{tpu_custom_call.1} parent=1 // pred_region
      %4854 = dma.done [#allocation3], 32
    $region77: #{tpu_custom_call.1} parent=1 // pred_fallthru
      _
    %4855 = vsyncpa [#allocation3], 1

</llo_original>
